<compile_context>
chip_gen: v7x
topology: tpu7x:2x2x1
jax: 0.10.0
libtpu: 0.0.40
codegen_flags: <defaults>
</compile_context>

<pallas_src>
import jax
import jax.numpy as jnp
from jax import lax
from jax.experimental import pallas as pl
from jax.experimental.pallas import tpu as pltpu

VMEM = pltpu.MemorySpace.VMEM


# ----------------------------------------------------------------------------
# Fused forward kernel
# ----------------------------------------------------------------------------
def _make_fused_kernel(num_layers, hidden_dim):
    H = hidden_dim

    def kernel(*refs):
        (x_ref, ea_ref, cs_ref,
         src_col_ref, dst_col_ref, eb_col_ref, nb_col_ref) = refs[:7]

        pidx = 7

        def nxt(n):
            nonlocal pidx
            p = tuple(refs[pidx + j][...] for j in range(n))
            pidx += n
            return p

        enc_node = nxt(4)
        enc_edge = nxt(4)
        enc_cs = nxt(4)      # merged (block-diagonal) cond+scale encoder
        enc_u = nxt(4)
        layers = [(nxt(6), nxt(6)) for _ in range(num_layers)]
        dec_node = nxt(4)
        head = nxt(4)

        xo_ref = refs[pidx]
        lr_ref = refs[pidx + 1]

        f32 = jnp.float32
        bf16 = jnp.bfloat16
        TN = (((0,), (0,)), ((), ()))   # contract axis 0 with axis 0 (LHS^T @ RHS)

        def mlp(v, p):
            # Linear -> ReLU -> Linear ; bf16 operands, f32 accumulation.
            w1, b1, w2, b2 = p
            h = jnp.dot(v.astype(bf16), w1, preferred_element_type=f32) + b1
            h = jnp.maximum(h, 0.0)
            return jnp.dot(h.astype(bf16), w2, preferred_element_type=f32) + b2

        x_in = x_ref[...]
        ea_in = ea_ref[...]
        cs_in = cs_ref[...]

        src_col = src_col_ref[...]      # [E,1] i32
        dst_col = dst_col_ref[...]      # [E,1] i32
        eb_col = eb_col_ref[...]        # [E,1] i32
        nb_col = nb_col_ref[...]        # [N,1] i32

        N = x_in.shape[0]
        E = ea_in.shape[0]
        B = cs_in.shape[0]

        # ---- bf16 one-hot masks (in-kernel, no HBM one-hots, no transposed
        # copies).  int32 compare on the VPU; bf16 only at the final store. ----
        iota_en = lax.broadcasted_iota(jnp.int32, (E, N), 1)
        src_oh = (iota_en == src_col).astype(bf16)          # [E,N]
        dst_oh = (iota_en == dst_col).astype(bf16)          # [E,N]
        iota_eb = lax.broadcasted_iota(jnp.int32, (E, B), 1)
        eb_oh = (iota_eb == eb_col).astype(bf16)            # [E,B]
        iota_nb = lax.broadcasted_iota(jnp.int32, (N, B), 1)
        nb_oh = (iota_nb == nb_col).astype(bf16)            # [N,B]

        # ---- counts via mask^T @ ones (loop-invariant, hoisted) ----
        ones_e = jnp.ones((E, 1), bf16)
        ones_n = jnp.ones((N, 1), bf16)
        agg_cnt = lax.dot_general(src_oh, ones_e, TN, preferred_element_type=f32)  # [N,1]
        agg_recip = 1.0 / jnp.maximum(agg_cnt, 1.0)
        ncnt = lax.dot_general(nb_oh, ones_n, TN, preferred_element_type=f32)      # [B,1]
        ecnt = lax.dot_general(eb_oh, ones_e, TN, preferred_element_type=f32)      # [B,1]
        n_recip = 1.0 / jnp.maximum(ncnt, 1.0)
        e_recip = 1.0 / jnp.maximum(ecnt, 1.0)

        # ---- encoders ----
        hx = mlp(x_in, enc_node)       # [N,H]
        he = mlp(ea_in, enc_edge)      # [E,H]
        u_cs = mlp(cs_in, enc_cs)      # [B,2H]  == concat([uc, us]) (block-diag merge)
        u = mlp(u_cs, enc_u)           # [B,H]
        u_bf = u.astype(bf16)

        # ---- processor (MetaLayers) ----
        for edge_p, node_p in layers:
            we_sd, we_e, we_u, be1, we2, be2 = edge_p
            wn_x, wn_a, wn_u, bn1, wn2, bn2 = node_p

            hx_bf = hx.astype(bf16)
            he_bf = he.astype(bf16)

            # Edge update: gathers reassociated through the first-layer weight.
            hx_sd = jnp.dot(hx_bf, we_sd, preferred_element_type=f32)      # [N,2H]
            hx_sd_bf = hx_sd.astype(bf16)
            e_acc = jnp.dot(src_oh, hx_sd_bf[:, :H], preferred_element_type=f32)
            e_acc = e_acc + jnp.dot(dst_oh, hx_sd_bf[:, H:], preferred_element_type=f32)
            e_acc = e_acc + jnp.dot(he_bf, we_e, preferred_element_type=f32)
            u_e = jnp.dot(u_bf, we_u, preferred_element_type=f32)          # [B,H]
            e_acc = e_acc + jnp.dot(eb_oh, u_e.astype(bf16), preferred_element_type=f32)
            h1 = jnp.maximum(e_acc + be1, 0.0)
            he = jnp.dot(h1.astype(bf16), we2, preferred_element_type=f32) + be2

            # Node update: scatter_mean via axis-0 contraction on src_oh.
            agg = lax.dot_general(src_oh, he.astype(bf16), TN,
                                  preferred_element_type=f32) * agg_recip  # [N,H]
            n_acc = jnp.dot(hx_bf, wn_x, preferred_element_type=f32)
            n_acc = n_acc + jnp.dot(agg.astype(bf16), wn_a, preferred_element_type=f32)
            u_n = jnp.dot(u_bf, wn_u, preferred_element_type=f32)          # [B,H]
            n_acc = n_acc + jnp.dot(nb_oh, u_n.astype(bf16), preferred_element_type=f32)
            h2 = jnp.maximum(n_acc + bn1, 0.0)
            # residual connection folded in
            hx = jnp.dot(h2.astype(bf16), wn2, preferred_element_type=f32) + bn2 + hx

        # ---- decoder + global mean pools + log-ratio head ----
        x_out = mlp(hx, dec_node)                                          # [N,node_out]
        node_global = lax.dot_general(nb_oh, x_out.astype(bf16), TN,
                                      preferred_element_type=f32) * n_recip
        edge_global = lax.dot_general(eb_oh, he.astype(bf16), TN,
                                      preferred_element_type=f32) * e_recip
        log_ratios = mlp(jnp.concatenate([node_global, edge_global], axis=1), head)

        xo_ref[...] = x_out
        lr_ref[...] = log_ratios

    return kernel


# ----------------------------------------------------------------------------
# One-time (outside jit) parameter preparation: bf16 cast, weight splits for
# the reassociated layer math, block-diagonal cond+scale encoder merge.
# ----------------------------------------------------------------------------
def prepare_params(params, num_layers):
    bf16 = jnp.bfloat16
    f32 = jnp.float32
    flat = []

    def add_mlp(p):
        w1, b1, w2, b2 = p
        flat.extend([w1.astype(bf16), b1.astype(f32),
                     w2.astype(bf16), b2.astype(f32)])

    add_mlp(params["node_encoder"])
    add_mlp(params["edge_encoder"])

    # Merge cond_encoder + scale_encoder into one block-diagonal MLP operating
    # on concat([conditions, scale]); exact (zero blocks contribute exactly 0).
    wc1, bc1, wc2, bc2 = params["cond_encoder"]
    ws1, bs1, ws2, bs2 = params["scale_encoder"]
    H = wc1.shape[1]
    cin, sin = wc1.shape[0], ws1.shape[0]
    w_cs1 = jnp.zeros((cin + sin, 2 * H), f32)
    w_cs1 = w_cs1.at[:cin, :H].set(wc1).at[cin:, H:].set(ws1)
    b_cs1 = jnp.concatenate([bc1, bs1], axis=1)
    w_cs2 = jnp.zeros((2 * H, 2 * H), f32)
    w_cs2 = w_cs2.at[:H, :H].set(wc2).at[H:, H:].set(ws2)
    b_cs2 = jnp.concatenate([bc2, bs2], axis=1)
    flat.extend([w_cs1.astype(bf16), b_cs1.astype(f32),
                 w_cs2.astype(bf16), b_cs2.astype(f32)])

    add_mlp(params["u_encoder"])

    for l in range(num_layers):
        we1, be1, we2, be2 = params["edge_models"][l]      # we1: [4H, H]
        we_sd = jnp.concatenate([we1[:H, :], we1[H:2 * H, :]], axis=1)   # [H, 2H]
        we_e = we1[2 * H:3 * H, :]                                       # [H, H]
        we_u = we1[3 * H:, :]                                            # [H, H]
        flat.extend([we_sd.astype(bf16), we_e.astype(bf16), we_u.astype(bf16),
                     be1.astype(f32), we2.astype(bf16), be2.astype(f32)])

        wn1, bn1, wn2, bn2 = params["node_models"][l]      # wn1: [3H, H]
        wn_x = wn1[:H, :]
        wn_a = wn1[H:2 * H, :]
        wn_u = wn1[2 * H:, :]
        flat.extend([wn_x.astype(bf16), wn_a.astype(bf16), wn_u.astype(bf16),
                     bn1.astype(f32), wn2.astype(bf16), bn2.astype(f32)])

    add_mlp(params["node_decoder"])
    add_mlp(params["log_ratio_head"])
    return tuple(flat)


# ----------------------------------------------------------------------------
# Host-side wrapper: build index vectors, launch the single fused pallas_call.
# ----------------------------------------------------------------------------
def forward(flat_params, x, edge_index, edge_attr, conditions, scale, batch,
            num_layers, num_graphs):
    N = x.shape[0]
    B = num_graphs
    H = flat_params[0].shape[1]
    base = 16 + 12 * num_layers
    node_out_dim = flat_params[base + 2].shape[1]
    log_ratio_dim = flat_params[base + 6].shape[1]

    src = edge_index[0].astype(jnp.int32)
    dst = edge_index[1].astype(jnp.int32)
    batch_i = batch.astype(jnp.int32)
    ebatch = batch_i[src]

    cond_scale = jnp.concatenate([conditions, scale], axis=1)

    kernel = _make_fused_kernel(num_layers, H)
    n_inputs = 7 + len(flat_params)

    # TODO(synk): when graphs grow, raise vmem_limit_bytes on v5e/v6e (128 MiB
    # physical) but NOT on v7x (64 MiB), and re-grid per the kernel header TODO.
    x_out, log_ratios = pl.pallas_call(
        kernel,
        out_shape=(jax.ShapeDtypeStruct((N, node_out_dim), jnp.float32),
                   jax.ShapeDtypeStruct((B, log_ratio_dim), jnp.float32)),
        in_specs=[pl.BlockSpec(memory_space=VMEM)] * n_inputs,
        out_specs=(pl.BlockSpec(memory_space=VMEM),
                   pl.BlockSpec(memory_space=VMEM)),
        compiler_params=pltpu.CompilerParams(vmem_limit_bytes=32 * 1024 * 1024),
    )(x, edge_attr, cond_scale,
      src[:, None], dst[:, None], ebatch[:, None], batch_i[:, None],
      *flat_params)
    return x_out, log_ratios


# ----------------------------------------------------------------------------
# Pure-JAX f32 reference (independent formulation) for correctness check.
# ----------------------------------------------------------------------------
def _mlp_ref(x, p):
    w1, b1, w2, b2 = p
    return jnp.maximum(x @ w1 + b1, 0.0) @ w2 + b2


def forward_ref(params, x, edge_index, edge_attr, conditions, scale, batch,
                num_layers, num_graphs):
    N = x.shape[0]
    B = num_graphs
    src, dst = edge_index[0], edge_index[1]
    hx = _mlp_ref(x, params["node_encoder"])
    he = _mlp_ref(edge_attr, params["edge_encoder"])
    uc = _mlp_ref(conditions, params["cond_encoder"])
    us = _mlp_ref(scale, params["scale_encoder"])
    u = _mlp_ref(jnp.concatenate([uc, us], axis=1), params["u_encoder"])

    def seg_mean(v, idx, size):
        s = jax.ops.segment_sum(v, idx, num_segments=size)
        c = jnp.maximum(jax.ops.segment_sum(jnp.ones((v.shape[0],)), idx,
                                            num_segments=size), 1.0)
        return s / c[:, None]

    for l in range(num_layers):
        x_res = hx
        comb_e = jnp.concatenate([hx[src], hx[dst], he, u[batch[src]]], axis=1)
        he = _mlp_ref(comb_e, params["edge_models"][l])
        agg = seg_mean(he, src, N)
        comb_n = jnp.concatenate([hx, agg, u[batch]], axis=1)
        hx = _mlp_ref(comb_n, params["node_models"][l]) + x_res

    x_out = _mlp_ref(hx, params["node_decoder"])
    node_global = seg_mean(x_out, batch, B)
    edge_global = seg_mean(he, batch[src], B)
    log_ratios = _mlp_ref(jnp.concatenate([node_global, edge_global], axis=1),
                          params["log_ratio_head"])
    return x_out, log_ratios


# ----------------------------------------------------------------------------
# Deterministic parameter init (PyTorch-Linear-style uniform bounds).
# ----------------------------------------------------------------------------
def init_linear(key, fan_in, fan_out):
    k1, k2 = jax.random.split(key)
    bound = 1.0 / jnp.sqrt(jnp.float32(fan_in))
    w = jax.random.uniform(k1, (fan_in, fan_out), jnp.float32, -bound, bound)
    b = jax.random.uniform(k2, (1, fan_out), jnp.float32, -bound, bound)
    return w, b


def init_mlp(key, din, dhid, dout):
    k1, k2 = jax.random.split(key)
    w1, b1 = init_linear(k1, din, dhid)
    w2, b2 = init_linear(k2, dhid, dout)
    return (w1, b1, w2, b2)


if __name__ == "__main__":
    node_in_dim, edge_in_dim, cond_in_dim, scale_dim = 6, 4, 3, 2
    hidden_dim, num_layers, log_ratio_dim = 128, 2, 5
    node_out_dim = hidden_dim  # module's log_ratio_head implicitly requires this
    N, E, B = 16, 32, 2

    key = jax.random.PRNGKey(0)
    keys = jax.random.split(key, 24)

    params = {
        "node_encoder": init_mlp(keys[0], node_in_dim, hidden_dim, hidden_dim),
        "edge_encoder": init_mlp(keys[1], edge_in_dim, hidden_dim, hidden_dim),
        "cond_encoder": init_mlp(keys[2], cond_in_dim, hidden_dim, hidden_dim),
        "scale_encoder": init_mlp(keys[3], scale_dim, hidden_dim, hidden_dim),
        "u_encoder": init_mlp(keys[4], 2 * hidden_dim, hidden_dim, hidden_dim),
        "edge_models": [init_mlp(keys[5 + l], 4 * hidden_dim, hidden_dim, hidden_dim)
                        for l in range(num_layers)],
        "node_models": [init_mlp(keys[9 + l], 3 * hidden_dim, hidden_dim, hidden_dim)
                        for l in range(num_layers)],
        "node_decoder": init_mlp(keys[13], hidden_dim, hidden_dim, node_out_dim),
        "log_ratio_head": init_mlp(keys[14], 2 * hidden_dim, hidden_dim, log_ratio_dim),
    }

    dk = jax.random.split(keys[20], 8)
    x = jax.random.normal(dk[0], (N, node_in_dim), jnp.float32)
    edge_attr = jax.random.normal(dk[1], (E, edge_in_dim), jnp.float32)
    conditions = jax.random.normal(dk[2], (B, cond_in_dim), jnp.float32)
    scale = jax.random.normal(dk[3], (B, scale_dim), jnp.float32)
    batch = jnp.repeat(jnp.arange(B, dtype=jnp.int32), N // B)            # [N]
    # edges kept within each graph
    src = jnp.concatenate([jax.random.randint(dk[4], (E // 2,), 0, N // 2),
                           jax.random.randint(dk[5], (E // 2,), N // 2, N)])
    dst = jnp.concatenate([jax.random.randint(dk[6], (E // 2,), 0, N // 2),
                           jax.random.randint(dk[7], (E // 2,), N // 2, N)])
    edge_index = jnp.stack([src, dst]).astype(jnp.int32)                   # [2, E]

    # One-time, outside-jit: bf16 cast + weight splits + block-diag merge.
    flat_params = prepare_params(params, num_layers)

    fwd = jax.jit(forward, static_argnames=("num_layers", "num_graphs"))
    x_out, log_ratios = fwd(flat_params, x, edge_index, edge_attr, conditions,
                            scale, batch, num_layers=num_layers, num_graphs=B)
    jax.block_until_ready((x_out, log_ratios))

    x_ref, lr_ref = forward_ref(params, x, edge_index, edge_attr, conditions,
                                scale, batch, num_layers, B)
    assert x_out.shape == (N, node_out_dim) and log_ratios.shape == (B, log_ratio_dim)
    # bf16-operand MXU path vs f32 reference: allow small accumulated error.
    assert jnp.allclose(x_out, x_ref, atol=5e-2, rtol=5e-2)
    assert jnp.allclose(log_ratios, lr_ref, atol=5e-2, rtol=5e-2)
    print("KERNEL_OK")
</pallas_src>

<mosaic_0001>
module attributes {stable_mosaic.version = 11 : i64} {
  func.func @kernel(%arg0: memref<16x6xf32, #tpu.memory_space<vmem>>, %arg1: memref<32x4xf32, #tpu.memory_space<vmem>>, %arg2: memref<2x5xf32, #tpu.memory_space<vmem>>, %arg3: memref<32x1xi32, #tpu.memory_space<vmem>>, %arg4: memref<32x1xi32, #tpu.memory_space<vmem>>, %arg5: memref<32x1xi32, #tpu.memory_space<vmem>>, %arg6: memref<16x1xi32, #tpu.memory_space<vmem>>, %arg7: memref<6x128xbf16, #tpu.memory_space<vmem>>, %arg8: memref<1x128xf32, #tpu.memory_space<vmem>>, %arg9: memref<128x128xbf16, #tpu.memory_space<vmem>>, %arg10: memref<1x128xf32, #tpu.memory_space<vmem>>, %arg11: memref<4x128xbf16, #tpu.memory_space<vmem>>, %arg12: memref<1x128xf32, #tpu.memory_space<vmem>>, %arg13: memref<128x128xbf16, #tpu.memory_space<vmem>>, %arg14: memref<1x128xf32, #tpu.memory_space<vmem>>, %arg15: memref<5x256xbf16, #tpu.memory_space<vmem>>, %arg16: memref<1x256xf32, #tpu.memory_space<vmem>>, %arg17: memref<256x256xbf16, #tpu.memory_space<vmem>>, %arg18: memref<1x256xf32, #tpu.memory_space<vmem>>, %arg19: memref<256x128xbf16, #tpu.memory_space<vmem>>, %arg20: memref<1x128xf32, #tpu.memory_space<vmem>>, %arg21: memref<128x128xbf16, #tpu.memory_space<vmem>>, %arg22: memref<1x128xf32, #tpu.memory_space<vmem>>, %arg23: memref<128x256xbf16, #tpu.memory_space<vmem>>, %arg24: memref<128x128xbf16, #tpu.memory_space<vmem>>, %arg25: memref<128x128xbf16, #tpu.memory_space<vmem>>, %arg26: memref<1x128xf32, #tpu.memory_space<vmem>>, %arg27: memref<128x128xbf16, #tpu.memory_space<vmem>>, %arg28: memref<1x128xf32, #tpu.memory_space<vmem>>, %arg29: memref<128x128xbf16, #tpu.memory_space<vmem>>, %arg30: memref<128x128xbf16, #tpu.memory_space<vmem>>, %arg31: memref<128x128xbf16, #tpu.memory_space<vmem>>, %arg32: memref<1x128xf32, #tpu.memory_space<vmem>>, %arg33: memref<128x128xbf16, #tpu.memory_space<vmem>>, %arg34: memref<1x128xf32, #tpu.memory_space<vmem>>, %arg35: memref<128x256xbf16, #tpu.memory_space<vmem>>, %arg36: memref<128x128xbf16, #tpu.memory_space<vmem>>, %arg37: memref<128x128xbf16, #tpu.memory_space<vmem>>, %arg38: memref<1x128xf32, #tpu.memory_space<vmem>>, %arg39: memref<128x128xbf16, #tpu.memory_space<vmem>>, %arg40: memref<1x128xf32, #tpu.memory_space<vmem>>, %arg41: memref<128x128xbf16, #tpu.memory_space<vmem>>, %arg42: memref<128x128xbf16, #tpu.memory_space<vmem>>, %arg43: memref<128x128xbf16, #tpu.memory_space<vmem>>, %arg44: memref<1x128xf32, #tpu.memory_space<vmem>>, %arg45: memref<128x128xbf16, #tpu.memory_space<vmem>>, %arg46: memref<1x128xf32, #tpu.memory_space<vmem>>, %arg47: memref<128x128xbf16, #tpu.memory_space<vmem>>, %arg48: memref<1x128xf32, #tpu.memory_space<vmem>>, %arg49: memref<128x128xbf16, #tpu.memory_space<vmem>>, %arg50: memref<1x128xf32, #tpu.memory_space<vmem>>, %arg51: memref<256x128xbf16, #tpu.memory_space<vmem>>, %arg52: memref<1x128xf32, #tpu.memory_space<vmem>>, %arg53: memref<128x5xbf16, #tpu.memory_space<vmem>>, %arg54: memref<1x5xf32, #tpu.memory_space<vmem>>, %arg55: memref<16x128xf32, #tpu.memory_space<vmem>>, %arg56: memref<2x5xf32, #tpu.memory_space<vmem>>) attributes {dimension_semantics = [], scalar_prefetch = 0 : i64, scratch_operands = 0 : i64, tpu.core_type = #tpu.core_type<tc>} {
    %c0 = arith.constant 0 : index
    %c0_0 = arith.constant 0 : index
    %0 = vector.load %arg7[%c0, %c0_0] : memref<6x128xbf16, #tpu.memory_space<vmem>>, vector<6x128xbf16>
    %c0_1 = arith.constant 0 : index
    %c0_2 = arith.constant 0 : index
    %1 = vector.load %arg8[%c0_1, %c0_2] : memref<1x128xf32, #tpu.memory_space<vmem>>, vector<1x128xf32>
    %c0_3 = arith.constant 0 : index
    %c0_4 = arith.constant 0 : index
    %2 = vector.load %arg9[%c0_3, %c0_4] : memref<128x128xbf16, #tpu.memory_space<vmem>>, vector<128x128xbf16>
    %c0_5 = arith.constant 0 : index
    %c0_6 = arith.constant 0 : index
    %3 = vector.load %arg10[%c0_5, %c0_6] : memref<1x128xf32, #tpu.memory_space<vmem>>, vector<1x128xf32>
    %c0_7 = arith.constant 0 : index
    %c0_8 = arith.constant 0 : index
    %4 = vector.load %arg11[%c0_7, %c0_8] : memref<4x128xbf16, #tpu.memory_space<vmem>>, vector<4x128xbf16>
    %c0_9 = arith.constant 0 : index
    %c0_10 = arith.constant 0 : index
    %5 = vector.load %arg12[%c0_9, %c0_10] : memref<1x128xf32, #tpu.memory_space<vmem>>, vector<1x128xf32>
    %c0_11 = arith.constant 0 : index
    %c0_12 = arith.constant 0 : index
    %6 = vector.load %arg13[%c0_11, %c0_12] : memref<128x128xbf16, #tpu.memory_space<vmem>>, vector<128x128xbf16>
    %c0_13 = arith.constant 0 : index
    %c0_14 = arith.constant 0 : index
    %7 = vector.load %arg14[%c0_13, %c0_14] : memref<1x128xf32, #tpu.memory_space<vmem>>, vector<1x128xf32>
    %c0_15 = arith.constant 0 : index
    %c0_16 = arith.constant 0 : index
    %8 = vector.load %arg15[%c0_15, %c0_16] : memref<5x256xbf16, #tpu.memory_space<vmem>>, vector<5x256xbf16>
    %c0_17 = arith.constant 0 : index
    %c0_18 = arith.constant 0 : index
    %9 = vector.load %arg16[%c0_17, %c0_18] : memref<1x256xf32, #tpu.memory_space<vmem>>, vector<1x256xf32>
    %c0_19 = arith.constant 0 : index
    %c0_20 = arith.constant 0 : index
    %10 = vector.load %arg17[%c0_19, %c0_20] : memref<256x256xbf16, #tpu.memory_space<vmem>>, vector<256x256xbf16>
    %c0_21 = arith.constant 0 : index
    %c0_22 = arith.constant 0 : index
    %11 = vector.load %arg18[%c0_21, %c0_22] : memref<1x256xf32, #tpu.memory_space<vmem>>, vector<1x256xf32>
    %c0_23 = arith.constant 0 : index
    %c0_24 = arith.constant 0 : index
    %12 = vector.load %arg19[%c0_23, %c0_24] : memref<256x128xbf16, #tpu.memory_space<vmem>>, vector<256x128xbf16>
    %c0_25 = arith.constant 0 : index
    %c0_26 = arith.constant 0 : index
    %13 = vector.load %arg20[%c0_25, %c0_26] : memref<1x128xf32, #tpu.memory_space<vmem>>, vector<1x128xf32>
    %c0_27 = arith.constant 0 : index
    %c0_28 = arith.constant 0 : index
    %14 = vector.load %arg21[%c0_27, %c0_28] : memref<128x128xbf16, #tpu.memory_space<vmem>>, vector<128x128xbf16>
    %c0_29 = arith.constant 0 : index
    %c0_30 = arith.constant 0 : index
    %15 = vector.load %arg22[%c0_29, %c0_30] : memref<1x128xf32, #tpu.memory_space<vmem>>, vector<1x128xf32>
    %c0_31 = arith.constant 0 : index
    %c0_32 = arith.constant 0 : index
    %16 = vector.load %arg23[%c0_31, %c0_32] : memref<128x256xbf16, #tpu.memory_space<vmem>>, vector<128x256xbf16>
    %c0_33 = arith.constant 0 : index
    %c0_34 = arith.constant 0 : index
    %17 = vector.load %arg24[%c0_33, %c0_34] : memref<128x128xbf16, #tpu.memory_space<vmem>>, vector<128x128xbf16>
    %c0_35 = arith.constant 0 : index
    %c0_36 = arith.constant 0 : index
    %18 = vector.load %arg25[%c0_35, %c0_36] : memref<128x128xbf16, #tpu.memory_space<vmem>>, vector<128x128xbf16>
    %c0_37 = arith.constant 0 : index
    %c0_38 = arith.constant 0 : index
    %19 = vector.load %arg26[%c0_37, %c0_38] : memref<1x128xf32, #tpu.memory_space<vmem>>, vector<1x128xf32>
    %c0_39 = arith.constant 0 : index
    %c0_40 = arith.constant 0 : index
    %20 = vector.load %arg27[%c0_39, %c0_40] : memref<128x128xbf16, #tpu.memory_space<vmem>>, vector<128x128xbf16>
    %c0_41 = arith.constant 0 : index
    %c0_42 = arith.constant 0 : index
    %21 = vector.load %arg28[%c0_41, %c0_42] : memref<1x128xf32, #tpu.memory_space<vmem>>, vector<1x128xf32>
    %c0_43 = arith.constant 0 : index
    %c0_44 = arith.constant 0 : index
    %22 = vector.load %arg29[%c0_43, %c0_44] : memref<128x128xbf16, #tpu.memory_space<vmem>>, vector<128x128xbf16>
    %c0_45 = arith.constant 0 : index
    %c0_46 = arith.constant 0 : index
    %23 = vector.load %arg30[%c0_45, %c0_46] : memref<128x128xbf16, #tpu.memory_space<vmem>>, vector<128x128xbf16>
    %c0_47 = arith.constant 0 : index
    %c0_48 = arith.constant 0 : index
    %24 = vector.load %arg31[%c0_47, %c0_48] : memref<128x128xbf16, #tpu.memory_space<vmem>>, vector<128x128xbf16>
    %c0_49 = arith.constant 0 : index
    %c0_50 = arith.constant 0 : index
    %25 = vector.load %arg32[%c0_49, %c0_50] : memref<1x128xf32, #tpu.memory_space<vmem>>, vector<1x128xf32>
    %c0_51 = arith.constant 0 : index
    %c0_52 = arith.constant 0 : index
    %26 = vector.load %arg33[%c0_51, %c0_52] : memref<128x128xbf16, #tpu.memory_space<vmem>>, vector<128x128xbf16>
    %c0_53 = arith.constant 0 : index
    %c0_54 = arith.constant 0 : index
    %27 = vector.load %arg34[%c0_53, %c0_54] : memref<1x128xf32, #tpu.memory_space<vmem>>, vector<1x128xf32>
    %c0_55 = arith.constant 0 : index
    %c0_56 = arith.constant 0 : index
    %28 = vector.load %arg35[%c0_55, %c0_56] : memref<128x256xbf16, #tpu.memory_space<vmem>>, vector<128x256xbf16>
    %c0_57 = arith.constant 0 : index
    %c0_58 = arith.constant 0 : index
    %29 = vector.load %arg36[%c0_57, %c0_58] : memref<128x128xbf16, #tpu.memory_space<vmem>>, vector<128x128xbf16>
    %c0_59 = arith.constant 0 : index
    %c0_60 = arith.constant 0 : index
    %30 = vector.load %arg37[%c0_59, %c0_60] : memref<128x128xbf16, #tpu.memory_space<vmem>>, vector<128x128xbf16>
    %c0_61 = arith.constant 0 : index
    %c0_62 = arith.constant 0 : index
    %31 = vector.load %arg38[%c0_61, %c0_62] : memref<1x128xf32, #tpu.memory_space<vmem>>, vector<1x128xf32>
    %c0_63 = arith.constant 0 : index
    %c0_64 = arith.constant 0 : index
    %32 = vector.load %arg39[%c0_63, %c0_64] : memref<128x128xbf16, #tpu.memory_space<vmem>>, vector<128x128xbf16>
    %c0_65 = arith.constant 0 : index
    %c0_66 = arith.constant 0 : index
    %33 = vector.load %arg40[%c0_65, %c0_66] : memref<1x128xf32, #tpu.memory_space<vmem>>, vector<1x128xf32>
    %c0_67 = arith.constant 0 : index
    %c0_68 = arith.constant 0 : index
    %34 = vector.load %arg41[%c0_67, %c0_68] : memref<128x128xbf16, #tpu.memory_space<vmem>>, vector<128x128xbf16>
    %c0_69 = arith.constant 0 : index
    %c0_70 = arith.constant 0 : index
    %35 = vector.load %arg42[%c0_69, %c0_70] : memref<128x128xbf16, #tpu.memory_space<vmem>>, vector<128x128xbf16>
    %c0_71 = arith.constant 0 : index
    %c0_72 = arith.constant 0 : index
    %36 = vector.load %arg43[%c0_71, %c0_72] : memref<128x128xbf16, #tpu.memory_space<vmem>>, vector<128x128xbf16>
    %c0_73 = arith.constant 0 : index
    %c0_74 = arith.constant 0 : index
    %37 = vector.load %arg44[%c0_73, %c0_74] : memref<1x128xf32, #tpu.memory_space<vmem>>, vector<1x128xf32>
    %c0_75 = arith.constant 0 : index
    %c0_76 = arith.constant 0 : index
    %38 = vector.load %arg45[%c0_75, %c0_76] : memref<128x128xbf16, #tpu.memory_space<vmem>>, vector<128x128xbf16>
    %c0_77 = arith.constant 0 : index
    %c0_78 = arith.constant 0 : index
    %39 = vector.load %arg46[%c0_77, %c0_78] : memref<1x128xf32, #tpu.memory_space<vmem>>, vector<1x128xf32>
    %c0_79 = arith.constant 0 : index
    %c0_80 = arith.constant 0 : index
    %40 = vector.load %arg47[%c0_79, %c0_80] : memref<128x128xbf16, #tpu.memory_space<vmem>>, vector<128x128xbf16>
    %c0_81 = arith.constant 0 : index
    %c0_82 = arith.constant 0 : index
    %41 = vector.load %arg48[%c0_81, %c0_82] : memref<1x128xf32, #tpu.memory_space<vmem>>, vector<1x128xf32>
    %c0_83 = arith.constant 0 : index
    %c0_84 = arith.constant 0 : index
    %42 = vector.load %arg49[%c0_83, %c0_84] : memref<128x128xbf16, #tpu.memory_space<vmem>>, vector<128x128xbf16>
    %c0_85 = arith.constant 0 : index
    %c0_86 = arith.constant 0 : index
    %43 = vector.load %arg50[%c0_85, %c0_86] : memref<1x128xf32, #tpu.memory_space<vmem>>, vector<1x128xf32>
    %c0_87 = arith.constant 0 : index
    %c0_88 = arith.constant 0 : index
    %44 = vector.load %arg51[%c0_87, %c0_88] : memref<256x128xbf16, #tpu.memory_space<vmem>>, vector<256x128xbf16>
    %c0_89 = arith.constant 0 : index
    %c0_90 = arith.constant 0 : index
    %45 = vector.load %arg52[%c0_89, %c0_90] : memref<1x128xf32, #tpu.memory_space<vmem>>, vector<1x128xf32>
    %c0_91 = arith.constant 0 : index
    %c0_92 = arith.constant 0 : index
    %46 = vector.load %arg53[%c0_91, %c0_92] : memref<128x5xbf16, #tpu.memory_space<vmem>>, vector<128x5xbf16>
    %c0_93 = arith.constant 0 : index
    %c0_94 = arith.constant 0 : index
    %47 = vector.load %arg54[%c0_93, %c0_94] : memref<1x5xf32, #tpu.memory_space<vmem>>, vector<1x5xf32>
    %c0_95 = arith.constant 0 : index
    %c0_96 = arith.constant 0 : index
    %48 = vector.load %arg0[%c0_95, %c0_96] : memref<16x6xf32, #tpu.memory_space<vmem>>, vector<16x6xf32>
    %c0_97 = arith.constant 0 : index
    %c0_98 = arith.constant 0 : index
    %49 = vector.load %arg1[%c0_97, %c0_98] : memref<32x4xf32, #tpu.memory_space<vmem>>, vector<32x4xf32>
    %c0_99 = arith.constant 0 : index
    %c0_100 = arith.constant 0 : index
    %50 = vector.load %arg2[%c0_99, %c0_100] : memref<2x5xf32, #tpu.memory_space<vmem>>, vector<2x5xf32>
    %c0_101 = arith.constant 0 : index
    %c0_102 = arith.constant 0 : index
    %51 = vector.load %arg3[%c0_101, %c0_102] : memref<32x1xi32, #tpu.memory_space<vmem>>, vector<32x1xi32>
    %c0_103 = arith.constant 0 : index
    %c0_104 = arith.constant 0 : index
    %52 = vector.load %arg4[%c0_103, %c0_104] : memref<32x1xi32, #tpu.memory_space<vmem>>, vector<32x1xi32>
    %c0_105 = arith.constant 0 : index
    %c0_106 = arith.constant 0 : index
    %53 = vector.load %arg5[%c0_105, %c0_106] : memref<32x1xi32, #tpu.memory_space<vmem>>, vector<32x1xi32>
    %c0_107 = arith.constant 0 : index
    %c0_108 = arith.constant 0 : index
    %54 = vector.load %arg6[%c0_107, %c0_108] : memref<16x1xi32, #tpu.memory_space<vmem>>, vector<16x1xi32>
    %55 = tpu.iota {dimensions = array<i32: 1>} : vector<32x16xi32>
    %56 = vector.broadcast %51 : vector<32x1xi32> to vector<32x16xi32>
    %57 = arith.cmpi eq, %55, %56 : vector<32x16xi32>
    %58 = arith.extui %57 : vector<32x16xi1> to vector<32x16xi32>
    %59 = arith.sitofp %58 : vector<32x16xi32> to vector<32x16xf32>
    %60 = arith.truncf %59 : vector<32x16xf32> to vector<32x16xbf16>
    %61 = vector.broadcast %52 : vector<32x1xi32> to vector<32x16xi32>
    %62 = arith.cmpi eq, %55, %61 : vector<32x16xi32>
    %63 = arith.extui %62 : vector<32x16xi1> to vector<32x16xi32>
    %64 = arith.sitofp %63 : vector<32x16xi32> to vector<32x16xf32>
    %65 = arith.truncf %64 : vector<32x16xf32> to vector<32x16xbf16>
    %66 = tpu.iota {dimensions = array<i32: 1>} : vector<32x2xi32>
    %67 = vector.broadcast %53 : vector<32x1xi32> to vector<32x2xi32>
    %68 = arith.cmpi eq, %66, %67 : vector<32x2xi32>
    %69 = arith.extui %68 : vector<32x2xi1> to vector<32x2xi32>
    %70 = arith.sitofp %69 : vector<32x2xi32> to vector<32x2xf32>
    %71 = arith.truncf %70 : vector<32x2xf32> to vector<32x2xbf16>
    %72 = tpu.iota {dimensions = array<i32: 1>} : vector<16x2xi32>
    %73 = vector.broadcast %54 : vector<16x1xi32> to vector<16x2xi32>
    %74 = arith.cmpi eq, %72, %73 : vector<16x2xi32>
    %75 = arith.extui %74 : vector<16x2xi1> to vector<16x2xi32>
    %76 = arith.sitofp %75 : vector<16x2xi32> to vector<16x2xf32>
    %77 = arith.truncf %76 : vector<16x2xf32> to vector<16x2xbf16>
    %cst = arith.constant 1.000000e+00 : bf16
    %78 = vector.broadcast %cst : bf16 to vector<32x1xbf16>
    %cst_109 = arith.constant 1.000000e+00 : bf16
    %79 = vector.broadcast %cst_109 : bf16 to vector<16x1xbf16>
    %cst_110 = arith.constant dense<0.000000e+00> : vector<16x1xf32>
    %80 = tpu.matmul %60, %78, %cst_110 {dimension_numbers = #tpu.dot_dimension_numbers<[0], [0], [1], [1], [0, 1, 1, 1], [], []>} : vector<32x16xbf16>, vector<32x1xbf16>, vector<16x1xf32> -> vector<16x1xf32>
    %cst_111 = arith.constant 1.000000e+00 : f32
    %81 = vector.broadcast %cst_111 : f32 to vector<16x1xf32>
    %82 = arith.maximumf %80, %81 : vector<16x1xf32>
    %cst_112 = arith.constant 1.000000e+00 : f32
    %83 = vector.broadcast %cst_112 : f32 to vector<16x1xf32>
    %84 = arith.divf %83, %82 : vector<16x1xf32>
    %cst_113 = arith.constant dense<0.000000e+00> : vector<2x1xf32>
    %85 = tpu.matmul %77, %79, %cst_113 {dimension_numbers = #tpu.dot_dimension_numbers<[0], [0], [1], [1], [0, 1, 1, 1], [], []>} : vector<16x2xbf16>, vector<16x1xbf16>, vector<2x1xf32> -> vector<2x1xf32>
    %cst_114 = arith.constant dense<0.000000e+00> : vector<2x1xf32>
    %86 = tpu.matmul %71, %78, %cst_114 {dimension_numbers = #tpu.dot_dimension_numbers<[0], [0], [1], [1], [0, 1, 1, 1], [], []>} : vector<32x2xbf16>, vector<32x1xbf16>, vector<2x1xf32> -> vector<2x1xf32>
    %cst_115 = arith.constant 1.000000e+00 : f32
    %87 = vector.broadcast %cst_115 : f32 to vector<2x1xf32>
    %88 = arith.maximumf %85, %87 : vector<2x1xf32>
    %cst_116 = arith.constant 1.000000e+00 : f32
    %89 = vector.broadcast %cst_116 : f32 to vector<2x1xf32>
    %90 = arith.divf %89, %88 : vector<2x1xf32>
    %cst_117 = arith.constant 1.000000e+00 : f32
    %91 = vector.broadcast %cst_117 : f32 to vector<2x1xf32>
    %92 = arith.maximumf %86, %91 : vector<2x1xf32>
    %cst_118 = arith.constant 1.000000e+00 : f32
    %93 = vector.broadcast %cst_118 : f32 to vector<2x1xf32>
    %94 = arith.divf %93, %92 : vector<2x1xf32>
    %95 = arith.truncf %48 : vector<16x6xf32> to vector<16x6xbf16>
    %cst_119 = arith.constant dense<0.000000e+00> : vector<16x128xf32>
    %96 = tpu.matmul %95, %0, %cst_119 {dimension_numbers = #tpu.dot_dimension_numbers<[1], [0], [0], [1], [0, 0, 1, 1], [], []>} : vector<16x6xbf16>, vector<6x128xbf16>, vector<16x128xf32> -> vector<16x128xf32>
    %97 = vector.broadcast %1 : vector<1x128xf32> to vector<16x128xf32>
    %98 = arith.addf %96, %97 : vector<16x128xf32>
    %cst_120 = arith.constant 0.000000e+00 : f32
    %99 = vector.broadcast %cst_120 : f32 to vector<16x128xf32>
    %100 = arith.maximumf %98, %99 : vector<16x128xf32>
    %101 = arith.truncf %100 : vector<16x128xf32> to vector<16x128xbf16>
    %cst_121 = arith.constant dense<0.000000e+00> : vector<16x128xf32>
    %102 = tpu.matmul %101, %2, %cst_121 {dimension_numbers = #tpu.dot_dimension_numbers<[1], [0], [0], [1], [0, 0, 1, 1], [], []>} : vector<16x128xbf16>, vector<128x128xbf16>, vector<16x128xf32> -> vector<16x128xf32>
    %103 = vector.broadcast %3 : vector<1x128xf32> to vector<16x128xf32>
    %104 = arith.addf %102, %103 : vector<16x128xf32>
    %105 = arith.truncf %49 : vector<32x4xf32> to vector<32x4xbf16>
    %cst_122 = arith.constant dense<0.000000e+00> : vector<32x128xf32>
    %106 = tpu.matmul %105, %4, %cst_122 {dimension_numbers = #tpu.dot_dimension_numbers<[1], [0], [0], [1], [0, 0, 1, 1], [], []>} : vector<32x4xbf16>, vector<4x128xbf16>, vector<32x128xf32> -> vector<32x128xf32>
    %107 = vector.broadcast %5 : vector<1x128xf32> to vector<32x128xf32>
    %108 = arith.addf %106, %107 : vector<32x128xf32>
    %cst_123 = arith.constant 0.000000e+00 : f32
    %109 = vector.broadcast %cst_123 : f32 to vector<32x128xf32>
    %110 = arith.maximumf %108, %109 : vector<32x128xf32>
    %111 = arith.truncf %110 : vector<32x128xf32> to vector<32x128xbf16>
    %cst_124 = arith.constant dense<0.000000e+00> : vector<32x128xf32>
    %112 = tpu.matmul %111, %6, %cst_124 {dimension_numbers = #tpu.dot_dimension_numbers<[1], [0], [0], [1], [0, 0, 1, 1], [], []>} : vector<32x128xbf16>, vector<128x128xbf16>, vector<32x128xf32> -> vector<32x128xf32>
    %113 = vector.broadcast %7 : vector<1x128xf32> to vector<32x128xf32>
    %114 = arith.addf %112, %113 : vector<32x128xf32>
    %115 = arith.truncf %50 : vector<2x5xf32> to vector<2x5xbf16>
    %cst_125 = arith.constant dense<0.000000e+00> : vector<2x256xf32>
    %116 = tpu.matmul %115, %8, %cst_125 {dimension_numbers = #tpu.dot_dimension_numbers<[1], [0], [0], [1], [0, 0, 1, 1], [], []>} : vector<2x5xbf16>, vector<5x256xbf16>, vector<2x256xf32> -> vector<2x256xf32>
    %117 = vector.broadcast %9 : vector<1x256xf32> to vector<2x256xf32>
    %118 = arith.addf %116, %117 : vector<2x256xf32>
    %cst_126 = arith.constant 0.000000e+00 : f32
    %119 = vector.broadcast %cst_126 : f32 to vector<2x256xf32>
    %120 = arith.maximumf %118, %119 : vector<2x256xf32>
    %121 = arith.truncf %120 : vector<2x256xf32> to vector<2x256xbf16>
    %cst_127 = arith.constant dense<0.000000e+00> : vector<2x256xf32>
    %122 = tpu.matmul %121, %10, %cst_127 {dimension_numbers = #tpu.dot_dimension_numbers<[1], [0], [0], [1], [0, 0, 1, 1], [], []>} : vector<2x256xbf16>, vector<256x256xbf16>, vector<2x256xf32> -> vector<2x256xf32>
    %123 = vector.broadcast %11 : vector<1x256xf32> to vector<2x256xf32>
    %124 = arith.addf %122, %123 : vector<2x256xf32>
    %125 = arith.truncf %124 : vector<2x256xf32> to vector<2x256xbf16>
    %cst_128 = arith.constant dense<0.000000e+00> : vector<2x128xf32>
    %126 = tpu.matmul %125, %12, %cst_128 {dimension_numbers = #tpu.dot_dimension_numbers<[1], [0], [0], [1], [0, 0, 1, 1], [], []>} : vector<2x256xbf16>, vector<256x128xbf16>, vector<2x128xf32> -> vector<2x128xf32>
    %127 = vector.broadcast %13 : vector<1x128xf32> to vector<2x128xf32>
    %128 = arith.addf %126, %127 : vector<2x128xf32>
    %cst_129 = arith.constant 0.000000e+00 : f32
    %129 = vector.broadcast %cst_129 : f32 to vector<2x128xf32>
    %130 = arith.maximumf %128, %129 : vector<2x128xf32>
    %131 = arith.truncf %130 : vector<2x128xf32> to vector<2x128xbf16>
    %cst_130 = arith.constant dense<0.000000e+00> : vector<2x128xf32>
    %132 = tpu.matmul %131, %14, %cst_130 {dimension_numbers = #tpu.dot_dimension_numbers<[1], [0], [0], [1], [0, 0, 1, 1], [], []>} : vector<2x128xbf16>, vector<128x128xbf16>, vector<2x128xf32> -> vector<2x128xf32>
    %133 = vector.broadcast %15 : vector<1x128xf32> to vector<2x128xf32>
    %134 = arith.addf %132, %133 : vector<2x128xf32>
    %135 = arith.truncf %134 : vector<2x128xf32> to vector<2x128xbf16>
    %136 = arith.truncf %104 : vector<16x128xf32> to vector<16x128xbf16>
    %137 = arith.truncf %114 : vector<32x128xf32> to vector<32x128xbf16>
    %cst_131 = arith.constant dense<0.000000e+00> : vector<16x256xf32>
    %138 = tpu.matmul %136, %16, %cst_131 {dimension_numbers = #tpu.dot_dimension_numbers<[1], [0], [0], [1], [0, 0, 1, 1], [], []>} : vector<16x128xbf16>, vector<128x256xbf16>, vector<16x256xf32> -> vector<16x256xf32>
    %139 = arith.truncf %138 : vector<16x256xf32> to vector<16x256xbf16>
    %140 = vector.extract_strided_slice %139 {offsets = [0, 0], sizes = [16, 128], strides = [1, 1]} : vector<16x256xbf16> to vector<16x128xbf16>
    %cst_132 = arith.constant dense<0.000000e+00> : vector<32x128xf32>
    %141 = tpu.matmul %60, %140, %cst_132 {dimension_numbers = #tpu.dot_dimension_numbers<[1], [0], [0], [1], [0, 0, 1, 1], [], []>} : vector<32x16xbf16>, vector<16x128xbf16>, vector<32x128xf32> -> vector<32x128xf32>
    %142 = vector.extract_strided_slice %139 {offsets = [0, 128], sizes = [16, 128], strides = [1, 1]} : vector<16x256xbf16> to vector<16x128xbf16>
    %cst_133 = arith.constant dense<0.000000e+00> : vector<32x128xf32>
    %143 = tpu.matmul %65, %142, %cst_133 {dimension_numbers = #tpu.dot_dimension_numbers<[1], [0], [0], [1], [0, 0, 1, 1], [], []>} : vector<32x16xbf16>, vector<16x128xbf16>, vector<32x128xf32> -> vector<32x128xf32>
    %144 = arith.addf %141, %143 : vector<32x128xf32>
    %cst_134 = arith.constant dense<0.000000e+00> : vector<32x128xf32>
    %145 = tpu.matmul %137, %17, %cst_134 {dimension_numbers = #tpu.dot_dimension_numbers<[1], [0], [0], [1], [0, 0, 1, 1], [], []>} : vector<32x128xbf16>, vector<128x128xbf16>, vector<32x128xf32> -> vector<32x128xf32>
    %146 = arith.addf %144, %145 : vector<32x128xf32>
    %cst_135 = arith.constant dense<0.000000e+00> : vector<2x128xf32>
    %147 = tpu.matmul %135, %18, %cst_135 {dimension_numbers = #tpu.dot_dimension_numbers<[1], [0], [0], [1], [0, 0, 1, 1], [], []>} : vector<2x128xbf16>, vector<128x128xbf16>, vector<2x128xf32> -> vector<2x128xf32>
    %148 = arith.truncf %147 : vector<2x128xf32> to vector<2x128xbf16>
    %cst_136 = arith.constant dense<0.000000e+00> : vector<32x128xf32>
    %149 = tpu.matmul %71, %148, %cst_136 {dimension_numbers = #tpu.dot_dimension_numbers<[1], [0], [0], [1], [0, 0, 1, 1], [], []>} : vector<32x2xbf16>, vector<2x128xbf16>, vector<32x128xf32> -> vector<32x128xf32>
    %150 = arith.addf %146, %149 : vector<32x128xf32>
    %151 = vector.broadcast %19 : vector<1x128xf32> to vector<32x128xf32>
    %152 = arith.addf %150, %151 : vector<32x128xf32>
    %cst_137 = arith.constant 0.000000e+00 : f32
    %153 = vector.broadcast %cst_137 : f32 to vector<32x128xf32>
    %154 = arith.maximumf %152, %153 : vector<32x128xf32>
    %155 = arith.truncf %154 : vector<32x128xf32> to vector<32x128xbf16>
    %cst_138 = arith.constant dense<0.000000e+00> : vector<32x128xf32>
    %156 = tpu.matmul %155, %20, %cst_138 {dimension_numbers = #tpu.dot_dimension_numbers<[1], [0], [0], [1], [0, 0, 1, 1], [], []>} : vector<32x128xbf16>, vector<128x128xbf16>, vector<32x128xf32> -> vector<32x128xf32>
    %157 = vector.broadcast %21 : vector<1x128xf32> to vector<32x128xf32>
    %158 = arith.addf %156, %157 : vector<32x128xf32>
    %159 = arith.truncf %158 : vector<32x128xf32> to vector<32x128xbf16>
    %cst_139 = arith.constant dense<0.000000e+00> : vector<16x128xf32>
    %160 = tpu.matmul %60, %159, %cst_139 {dimension_numbers = #tpu.dot_dimension_numbers<[0], [0], [1], [1], [0, 1, 1, 1], [], []>} : vector<32x16xbf16>, vector<32x128xbf16>, vector<16x128xf32> -> vector<16x128xf32>
    %161 = vector.broadcast %84 : vector<16x1xf32> to vector<16x128xf32>
    %162 = arith.mulf %160, %161 : vector<16x128xf32>
    %cst_140 = arith.constant dense<0.000000e+00> : vector<16x128xf32>
    %163 = tpu.matmul %136, %22, %cst_140 {dimension_numbers = #tpu.dot_dimension_numbers<[1], [0], [0], [1], [0, 0, 1, 1], [], []>} : vector<16x128xbf16>, vector<128x128xbf16>, vector<16x128xf32> -> vector<16x128xf32>
    %164 = arith.truncf %162 : vector<16x128xf32> to vector<16x128xbf16>
    %cst_141 = arith.constant dense<0.000000e+00> : vector<16x128xf32>
    %165 = tpu.matmul %164, %23, %cst_141 {dimension_numbers = #tpu.dot_dimension_numbers<[1], [0], [0], [1], [0, 0, 1, 1], [], []>} : vector<16x128xbf16>, vector<128x128xbf16>, vector<16x128xf32> -> vector<16x128xf32>
    %166 = arith.addf %163, %165 : vector<16x128xf32>
    %cst_142 = arith.constant dense<0.000000e+00> : vector<2x128xf32>
    %167 = tpu.matmul %135, %24, %cst_142 {dimension_numbers = #tpu.dot_dimension_numbers<[1], [0], [0], [1], [0, 0, 1, 1], [], []>} : vector<2x128xbf16>, vector<128x128xbf16>, vector<2x128xf32> -> vector<2x128xf32>
    %168 = arith.truncf %167 : vector<2x128xf32> to vector<2x128xbf16>
    %cst_143 = arith.constant dense<0.000000e+00> : vector<16x128xf32>
    %169 = tpu.matmul %77, %168, %cst_143 {dimension_numbers = #tpu.dot_dimension_numbers<[1], [0], [0], [1], [0, 0, 1, 1], [], []>} : vector<16x2xbf16>, vector<2x128xbf16>, vector<16x128xf32> -> vector<16x128xf32>
    %170 = arith.addf %166, %169 : vector<16x128xf32>
    %171 = vector.broadcast %25 : vector<1x128xf32> to vector<16x128xf32>
    %172 = arith.addf %170, %171 : vector<16x128xf32>
    %cst_144 = arith.constant 0.000000e+00 : f32
    %173 = vector.broadcast %cst_144 : f32 to vector<16x128xf32>
    %174 = arith.maximumf %172, %173 : vector<16x128xf32>
    %175 = arith.truncf %174 : vector<16x128xf32> to vector<16x128xbf16>
    %cst_145 = arith.constant dense<0.000000e+00> : vector<16x128xf32>
    %176 = tpu.matmul %175, %26, %cst_145 {dimension_numbers = #tpu.dot_dimension_numbers<[1], [0], [0], [1], [0, 0, 1, 1], [], []>} : vector<16x128xbf16>, vector<128x128xbf16>, vector<16x128xf32> -> vector<16x128xf32>
    %177 = vector.broadcast %27 : vector<1x128xf32> to vector<16x128xf32>
    %178 = arith.addf %176, %177 : vector<16x128xf32>
    %179 = arith.addf %178, %104 : vector<16x128xf32>
    %180 = arith.truncf %179 : vector<16x128xf32> to vector<16x128xbf16>
    %181 = arith.truncf %158 : vector<32x128xf32> to vector<32x128xbf16>
    %cst_146 = arith.constant dense<0.000000e+00> : vector<16x256xf32>
    %182 = tpu.matmul %180, %28, %cst_146 {dimension_numbers = #tpu.dot_dimension_numbers<[1], [0], [0], [1], [0, 0, 1, 1], [], []>} : vector<16x128xbf16>, vector<128x256xbf16>, vector<16x256xf32> -> vector<16x256xf32>
    %183 = arith.truncf %182 : vector<16x256xf32> to vector<16x256xbf16>
    %184 = vector.extract_strided_slice %183 {offsets = [0, 0], sizes = [16, 128], strides = [1, 1]} : vector<16x256xbf16> to vector<16x128xbf16>
    %cst_147 = arith.constant dense<0.000000e+00> : vector<32x128xf32>
    %185 = tpu.matmul %60, %184, %cst_147 {dimension_numbers = #tpu.dot_dimension_numbers<[1], [0], [0], [1], [0, 0, 1, 1], [], []>} : vector<32x16xbf16>, vector<16x128xbf16>, vector<32x128xf32> -> vector<32x128xf32>
    %186 = vector.extract_strided_slice %183 {offsets = [0, 128], sizes = [16, 128], strides = [1, 1]} : vector<16x256xbf16> to vector<16x128xbf16>
    %cst_148 = arith.constant dense<0.000000e+00> : vector<32x128xf32>
    %187 = tpu.matmul %65, %186, %cst_148 {dimension_numbers = #tpu.dot_dimension_numbers<[1], [0], [0], [1], [0, 0, 1, 1], [], []>} : vector<32x16xbf16>, vector<16x128xbf16>, vector<32x128xf32> -> vector<32x128xf32>
    %188 = arith.addf %185, %187 : vector<32x128xf32>
    %cst_149 = arith.constant dense<0.000000e+00> : vector<32x128xf32>
    %189 = tpu.matmul %181, %29, %cst_149 {dimension_numbers = #tpu.dot_dimension_numbers<[1], [0], [0], [1], [0, 0, 1, 1], [], []>} : vector<32x128xbf16>, vector<128x128xbf16>, vector<32x128xf32> -> vector<32x128xf32>
    %190 = arith.addf %188, %189 : vector<32x128xf32>
    %cst_150 = arith.constant dense<0.000000e+00> : vector<2x128xf32>
    %191 = tpu.matmul %135, %30, %cst_150 {dimension_numbers = #tpu.dot_dimension_numbers<[1], [0], [0], [1], [0, 0, 1, 1], [], []>} : vector<2x128xbf16>, vector<128x128xbf16>, vector<2x128xf32> -> vector<2x128xf32>
    %192 = arith.truncf %191 : vector<2x128xf32> to vector<2x128xbf16>
    %cst_151 = arith.constant dense<0.000000e+00> : vector<32x128xf32>
    %193 = tpu.matmul %71, %192, %cst_151 {dimension_numbers = #tpu.dot_dimension_numbers<[1], [0], [0], [1], [0, 0, 1, 1], [], []>} : vector<32x2xbf16>, vector<2x128xbf16>, vector<32x128xf32> -> vector<32x128xf32>
    %194 = arith.addf %190, %193 : vector<32x128xf32>
    %195 = vector.broadcast %31 : vector<1x128xf32> to vector<32x128xf32>
    %196 = arith.addf %194, %195 : vector<32x128xf32>
    %cst_152 = arith.constant 0.000000e+00 : f32
    %197 = vector.broadcast %cst_152 : f32 to vector<32x128xf32>
    %198 = arith.maximumf %196, %197 : vector<32x128xf32>
    %199 = arith.truncf %198 : vector<32x128xf32> to vector<32x128xbf16>
    %cst_153 = arith.constant dense<0.000000e+00> : vector<32x128xf32>
    %200 = tpu.matmul %199, %32, %cst_153 {dimension_numbers = #tpu.dot_dimension_numbers<[1], [0], [0], [1], [0, 0, 1, 1], [], []>} : vector<32x128xbf16>, vector<128x128xbf16>, vector<32x128xf32> -> vector<32x128xf32>
    %201 = vector.broadcast %33 : vector<1x128xf32> to vector<32x128xf32>
    %202 = arith.addf %200, %201 : vector<32x128xf32>
    %203 = arith.truncf %202 : vector<32x128xf32> to vector<32x128xbf16>
    %cst_154 = arith.constant dense<0.000000e+00> : vector<16x128xf32>
    %204 = tpu.matmul %60, %203, %cst_154 {dimension_numbers = #tpu.dot_dimension_numbers<[0], [0], [1], [1], [0, 1, 1, 1], [], []>} : vector<32x16xbf16>, vector<32x128xbf16>, vector<16x128xf32> -> vector<16x128xf32>
    %205 = vector.broadcast %84 : vector<16x1xf32> to vector<16x128xf32>
    %206 = arith.mulf %204, %205 : vector<16x128xf32>
    %cst_155 = arith.constant dense<0.000000e+00> : vector<16x128xf32>
    %207 = tpu.matmul %180, %34, %cst_155 {dimension_numbers = #tpu.dot_dimension_numbers<[1], [0], [0], [1], [0, 0, 1, 1], [], []>} : vector<16x128xbf16>, vector<128x128xbf16>, vector<16x128xf32> -> vector<16x128xf32>
    %208 = arith.truncf %206 : vector<16x128xf32> to vector<16x128xbf16>
    %cst_156 = arith.constant dense<0.000000e+00> : vector<16x128xf32>
    %209 = tpu.matmul %208, %35, %cst_156 {dimension_numbers = #tpu.dot_dimension_numbers<[1], [0], [0], [1], [0, 0, 1, 1], [], []>} : vector<16x128xbf16>, vector<128x128xbf16>, vector<16x128xf32> -> vector<16x128xf32>
    %210 = arith.addf %207, %209 : vector<16x128xf32>
    %cst_157 = arith.constant dense<0.000000e+00> : vector<2x128xf32>
    %211 = tpu.matmul %135, %36, %cst_157 {dimension_numbers = #tpu.dot_dimension_numbers<[1], [0], [0], [1], [0, 0, 1, 1], [], []>} : vector<2x128xbf16>, vector<128x128xbf16>, vector<2x128xf32> -> vector<2x128xf32>
    %212 = arith.truncf %211 : vector<2x128xf32> to vector<2x128xbf16>
    %cst_158 = arith.constant dense<0.000000e+00> : vector<16x128xf32>
    %213 = tpu.matmul %77, %212, %cst_158 {dimension_numbers = #tpu.dot_dimension_numbers<[1], [0], [0], [1], [0, 0, 1, 1], [], []>} : vector<16x2xbf16>, vector<2x128xbf16>, vector<16x128xf32> -> vector<16x128xf32>
    %214 = arith.addf %210, %213 : vector<16x128xf32>
    %215 = vector.broadcast %37 : vector<1x128xf32> to vector<16x128xf32>
    %216 = arith.addf %214, %215 : vector<16x128xf32>
    %cst_159 = arith.constant 0.000000e+00 : f32
    %217 = vector.broadcast %cst_159 : f32 to vector<16x128xf32>
    %218 = arith.maximumf %216, %217 : vector<16x128xf32>
    %219 = arith.truncf %218 : vector<16x128xf32> to vector<16x128xbf16>
    %cst_160 = arith.constant dense<0.000000e+00> : vector<16x128xf32>
    %220 = tpu.matmul %219, %38, %cst_160 {dimension_numbers = #tpu.dot_dimension_numbers<[1], [0], [0], [1], [0, 0, 1, 1], [], []>} : vector<16x128xbf16>, vector<128x128xbf16>, vector<16x128xf32> -> vector<16x128xf32>
    %221 = vector.broadcast %39 : vector<1x128xf32> to vector<16x128xf32>
    %222 = arith.addf %220, %221 : vector<16x128xf32>
    %223 = arith.addf %222, %179 : vector<16x128xf32>
    %224 = arith.truncf %223 : vector<16x128xf32> to vector<16x128xbf16>
    %cst_161 = arith.constant dense<0.000000e+00> : vector<16x128xf32>
    %225 = tpu.matmul %224, %40, %cst_161 {dimension_numbers = #tpu.dot_dimension_numbers<[1], [0], [0], [1], [0, 0, 1, 1], [], []>} : vector<16x128xbf16>, vector<128x128xbf16>, vector<16x128xf32> -> vector<16x128xf32>
    %226 = vector.broadcast %41 : vector<1x128xf32> to vector<16x128xf32>
    %227 = arith.addf %225, %226 : vector<16x128xf32>
    %cst_162 = arith.constant 0.000000e+00 : f32
    %228 = vector.broadcast %cst_162 : f32 to vector<16x128xf32>
    %229 = arith.maximumf %227, %228 : vector<16x128xf32>
    %230 = arith.truncf %229 : vector<16x128xf32> to vector<16x128xbf16>
    %cst_163 = arith.constant dense<0.000000e+00> : vector<16x128xf32>
    %231 = tpu.matmul %230, %42, %cst_163 {dimension_numbers = #tpu.dot_dimension_numbers<[1], [0], [0], [1], [0, 0, 1, 1], [], []>} : vector<16x128xbf16>, vector<128x128xbf16>, vector<16x128xf32> -> vector<16x128xf32>
    %232 = vector.broadcast %43 : vector<1x128xf32> to vector<16x128xf32>
    %233 = arith.addf %231, %232 : vector<16x128xf32>
    %234 = arith.truncf %233 : vector<16x128xf32> to vector<16x128xbf16>
    %cst_164 = arith.constant dense<0.000000e+00> : vector<2x128xf32>
    %235 = tpu.matmul %77, %234, %cst_164 {dimension_numbers = #tpu.dot_dimension_numbers<[0], [0], [1], [1], [0, 1, 1, 1], [], []>} : vector<16x2xbf16>, vector<16x128xbf16>, vector<2x128xf32> -> vector<2x128xf32>
    %236 = vector.broadcast %90 : vector<2x1xf32> to vector<2x128xf32>
    %237 = arith.mulf %235, %236 : vector<2x128xf32>
    %238 = arith.truncf %202 : vector<32x128xf32> to vector<32x128xbf16>
    %cst_165 = arith.constant dense<0.000000e+00> : vector<2x128xf32>
    %239 = tpu.matmul %71, %238, %cst_165 {dimension_numbers = #tpu.dot_dimension_numbers<[0], [0], [1], [1], [0, 1, 1, 1], [], []>} : vector<32x2xbf16>, vector<32x128xbf16>, vector<2x128xf32> -> vector<2x128xf32>
    %240 = vector.broadcast %94 : vector<2x1xf32> to vector<2x128xf32>
    %241 = arith.mulf %239, %240 : vector<2x128xf32>
    %242 = tpu.concatenate %237, %241 in 1 : vector<2x128xf32>, vector<2x128xf32> -> vector<2x256xf32>
    %243 = arith.truncf %242 : vector<2x256xf32> to vector<2x256xbf16>
    %cst_166 = arith.constant dense<0.000000e+00> : vector<2x128xf32>
    %244 = tpu.matmul %243, %44, %cst_166 {dimension_numbers = #tpu.dot_dimension_numbers<[1], [0], [0], [1], [0, 0, 1, 1], [], []>} : vector<2x256xbf16>, vector<256x128xbf16>, vector<2x128xf32> -> vector<2x128xf32>
    %245 = vector.broadcast %45 : vector<1x128xf32> to vector<2x128xf32>
    %246 = arith.addf %244, %245 : vector<2x128xf32>
    %cst_167 = arith.constant 0.000000e+00 : f32
    %247 = vector.broadcast %cst_167 : f32 to vector<2x128xf32>
    %248 = arith.maximumf %246, %247 : vector<2x128xf32>
    %249 = arith.truncf %248 : vector<2x128xf32> to vector<2x128xbf16>
    %cst_168 = arith.constant dense<0.000000e+00> : vector<2x5xf32>
    %250 = tpu.matmul %249, %46, %cst_168 {dimension_numbers = #tpu.dot_dimension_numbers<[1], [0], [0], [1], [0, 0, 1, 1], [], []>} : vector<2x128xbf16>, vector<128x5xbf16>, vector<2x5xf32> -> vector<2x5xf32>
    %251 = vector.broadcast %47 : vector<1x5xf32> to vector<2x5xf32>
    %252 = arith.addf %250, %251 : vector<2x5xf32>
    %c0_169 = arith.constant 0 : index
    %c0_170 = arith.constant 0 : index
    %253 = vector.load %arg55[%c0_169, %c0_170] : memref<16x128xf32, #tpu.memory_space<vmem>>, vector<16x128xf32>
    tpu.vector_store %arg55[%c0_169, %c0_170], %233 {strides = array<i32>} : memref<16x128xf32, #tpu.memory_space<vmem>>, vector<16x128xf32>,
    %c0_171 = arith.constant 0 : index
    %c0_172 = arith.constant 0 : index
    %254 = vector.load %arg56[%c0_171, %c0_172] : memref<2x5xf32, #tpu.memory_space<vmem>>, vector<2x5xf32>
    tpu.vector_store %arg56[%c0_171, %c0_172], %252 {strides = array<i32>} : memref<2x5xf32, #tpu.memory_space<vmem>>, vector<2x5xf32>,
    return
  }
}

</mosaic_0001>

<llo_original>
// kernel: forward.1
$region0: #{forward.1}
  #allocation0 [shape = 'u32[]', space=smem, size = 0x4, offset = 0x4, fixed_abs, tag = 'smem constant byte address 0x4 - core index']
  #allocation1 [shape = 'u32[144,128]{1,0:T(1,128)}', space=vmem, size = 0x12000, scoped, tag = 'internal scratch']
  %s0 = inlined_call_operand.smem [shape: u32[57], index: -1, kind: input, shape index: {}]
  %s1 = sld [smem:[%s0]]
  %s2 = scalar_lea.smem %s0, 1
  %s3 = sld [smem:[%s2]]
  %s4 = scalar_lea.smem %s0, 2
  %s5 = sld [smem:[%s4]]
  %s6 = scalar_lea.smem %s0, 3
  %s7 = sld [smem:[%s6]]
  %s8 = scalar_lea.smem %s0, 4
  %s9 = sld [smem:[%s8]]
  %s10 = scalar_lea.smem %s0, 5
  %s11 = sld [smem:[%s10]]
  %s12 = scalar_lea.smem %s0, 6
  %s13 = sld [smem:[%s12]]
  %s14 = scalar_lea.smem %s0, 7
  %s15 = sld [smem:[%s14]]
  %s16 = scalar_lea.smem %s0, 8
  %s17 = sld [smem:[%s16]]
  %s18 = scalar_lea.smem %s0, 9
  %s19 = sld [smem:[%s18]]
  %s20 = scalar_lea.smem %s0, 10
  %s21 = sld [smem:[%s20]]
  %s22 = scalar_lea.smem %s0, 11
  %s23 = sld [smem:[%s22]]
  %s24 = scalar_lea.smem %s0, 12
  %s25 = sld [smem:[%s24]]
  %s26 = scalar_lea.smem %s0, 13
  %s27 = sld [smem:[%s26]]
  %s28 = scalar_lea.smem %s0, 14
  %s29 = sld [smem:[%s28]]
  %s30 = scalar_lea.smem %s0, 15
  %s31 = sld [smem:[%s30]]
  %s32 = scalar_lea.smem %s0, 16
  %s33 = sld [smem:[%s32]]
  %s34 = scalar_lea.smem %s0, 17
  %s35 = sld [smem:[%s34]]
  %s36 = scalar_lea.smem %s0, 18
  %s37 = sld [smem:[%s36]]
  %s38 = scalar_lea.smem %s0, 19
  %s39 = sld [smem:[%s38]]
  %s40 = scalar_lea.smem %s0, 20
  %s41 = sld [smem:[%s40]]
  %s42 = scalar_lea.smem %s0, 21
  %s43 = sld [smem:[%s42]]
  %s44 = scalar_lea.smem %s0, 22
  %s45 = sld [smem:[%s44]]
  %s46 = scalar_lea.smem %s0, 23
  %s47 = sld [smem:[%s46]]
  %s48 = scalar_lea.smem %s0, 24
  %s49 = sld [smem:[%s48]]
  %s50 = scalar_lea.smem %s0, 25
  %s51 = sld [smem:[%s50]]
  %s52 = scalar_lea.smem %s0, 26
  %s53 = sld [smem:[%s52]]
  %s54 = scalar_lea.smem %s0, 27
  %s55 = sld [smem:[%s54]]
  %s56 = scalar_lea.smem %s0, 28
  %s57 = sld [smem:[%s56]]
  %s58 = scalar_lea.smem %s0, 29
  %s59 = sld [smem:[%s58]]
  %s60 = scalar_lea.smem %s0, 30
  %s61 = sld [smem:[%s60]]
  %s62 = scalar_lea.smem %s0, 31
  %s63 = sld [smem:[%s62]]
  %s64 = scalar_lea.smem %s0, 32
  %s65 = sld [smem:[%s64]]
  %s66 = scalar_lea.smem %s0, 33
  %s67 = sld [smem:[%s66]]
  %s68 = scalar_lea.smem %s0, 34
  %s69 = sld [smem:[%s68]]
  %s70 = scalar_lea.smem %s0, 35
  %s71 = sld [smem:[%s70]]
  %s72 = scalar_lea.smem %s0, 36
  %s73 = sld [smem:[%s72]]
  %s74 = scalar_lea.smem %s0, 37
  %s75 = sld [smem:[%s74]]
  %s76 = scalar_lea.smem %s0, 38
  %s77 = sld [smem:[%s76]]
  %s78 = scalar_lea.smem %s0, 39
  %s79 = sld [smem:[%s78]]
  %s80 = scalar_lea.smem %s0, 40
  %s81 = sld [smem:[%s80]]
  %s82 = scalar_lea.smem %s0, 41
  %s83 = sld [smem:[%s82]]
  %s84 = scalar_lea.smem %s0, 42
  %s85 = sld [smem:[%s84]]
  %s86 = scalar_lea.smem %s0, 43
  %s87 = sld [smem:[%s86]]
  %s88 = scalar_lea.smem %s0, 44
  %s89 = sld [smem:[%s88]]
  %s90 = scalar_lea.smem %s0, 45
  %s91 = sld [smem:[%s90]]
  %s92 = scalar_lea.smem %s0, 46
  %s93 = sld [smem:[%s92]]
  %s94 = scalar_lea.smem %s0, 47
  %s95 = sld [smem:[%s94]]
  %s96 = scalar_lea.smem %s0, 48
  %s97 = sld [smem:[%s96]]
  %s98 = scalar_lea.smem %s0, 49
  %s99 = sld [smem:[%s98]]
  %s100 = scalar_lea.smem %s0, 50
  %s101 = sld [smem:[%s100]]
  %s102 = scalar_lea.smem %s0, 51
  %s103 = sld [smem:[%s102]]
  %s104 = scalar_lea.smem %s0, 52
  %s105 = sld [smem:[%s104]]
  %s106 = scalar_lea.smem %s0, 53
  %s107 = sld [smem:[%s106]]
  %s108 = scalar_lea.smem %s0, 54
  %s109 = sld [smem:[%s108]]
  %s110 = scalar_lea.smem %s0, 55
  %s111 = sld [smem:[%s110]]
  %s112 = scalar_lea.smem %s0, 56
  %s113 = sld [smem:[%s112]]
  %114 = xla_tuple %s111, %s113
  %s115 = sld [smem:[#allocation0]]
  $region278: #{forward.1} parent=0
    _
  %s117 = ssub.s32 1, %s115
  %s118 = scalar_select 0, %s117, %s115
  $region1: #{forward.1} parent=0
    #allocation2 [shape = 'u8[32768]{0}', space=vmem, size = 0x8000, scoped, tag = 'input window, operand 31, single buffered']
    #allocation3 [shape = 's32[1]{0}', space=sflag, size = 0x4, scoped, tag = 'scoped memory for forward.1']
    #allocation4 [shape = 's32[1]{0}', space=sflag, size = 0x4, scoped, tag = 'scoped memory for forward.1']
    #allocation5 [shape = 'u8[32768]{0}', space=vmem, size = 0x8000, scoped, tag = 'input window, operand 33, single buffered']
    #allocation6 [shape = 's32[1]{0}', space=sflag, size = 0x4, scoped, tag = 'scoped memory for forward.1']
    #allocation7 [shape = 'u8[32768]{0}', space=vmem, size = 0x8000, scoped, tag = 'input window, operand 37, single buffered']
    #allocation8 [shape = 'u8[32768]{0}', space=vmem, size = 0x8000, scoped, tag = 'input window, operand 39, single buffered']
    #allocation9 [shape = 's32[1]{0}', space=sflag, size = 0x4, scoped, tag = 'scoped memory for forward.1']
    #allocation10 [shape = 'u8[32768]{0}', space=vmem, size = 0x8000, scoped, tag = 'input window, operand 41, single buffered']
    #allocation11 [shape = 'u8[32768]{0}', space=vmem, size = 0x8000, scoped, tag = 'input window, operand 42, single buffered']
    #allocation12 [shape = 's32[1]{0}', space=sflag, size = 0x4, scoped, tag = 'scoped memory for forward.1']
    #allocation13 [shape = 'u8[32768]{0}', space=vmem, size = 0x8000, scoped, tag = 'input window, operand 43, single buffered']
    #allocation14 [shape = 'u8[32768]{0}', space=vmem, size = 0x8000, scoped, tag = 'input window, operand 45, single buffered']
    #allocation15 [shape = 's32[1]{0}', space=sflag, size = 0x4, scoped, tag = 'scoped memory for forward.1']
    #allocation16 [shape = 'u8[32768]{0}', space=vmem, size = 0x8000, scoped, tag = 'input window, operand 47, single buffered']
    #allocation17 [shape = 'u8[32768]{0}', space=vmem, size = 0x8000, scoped, tag = 'input window, operand 49, single buffered']
    #allocation18 [shape = 's32[1]{0}', space=sflag, size = 0x4, scoped, tag = 'scoped memory for forward.1']
    #allocation19 [shape = 'u8[8192]{0}', space=vmem, size = 0x2000, scoped, tag = 'output window, operand 0, single buffered']
    #allocation20 [shape = 'u8[1024]{0}', space=vmem, size = 0x400, scoped, tag = 'output window, operand 1, single buffered']
    #allocation21 [shape = 's32[1]{0}', space=sflag, size = 0x4, scoped, tag = 'scoped memory for forward.1']
    %119 = vsyncpa [#allocation3], 0
    %120 = vsyncpa [#allocation6], 0
    %121 = vsyncpa [#allocation9], 0
    %122 = vsyncpa [#allocation12], 0
    %123 = vsyncpa [#allocation15], 0
    %124 = vsyncpa [#allocation18], 0
    %125 = vsyncpa [#allocation4], 0
    %126 = vsyncpa [#allocation21], 0
    // Predicated region
    $region2: #{forward.1} parent=1 // pred_check
      _
    $region3: #{forward.1} parent=1 // pred_check_branch
      %128 = sbr.rel (0) target = $region5
    $region4: #{forward.1} parent=1 // pred_region
      _
    $region5: #{forward.1} parent=1 // pred_fallthru
      _
    // Predicated region
    $region6: #{forward.1} parent=1 // pred_check
      _
    $region7: #{forward.1} parent=1 // pred_check_branch
      %130 = sbr.rel (0) target = $region9
    $region8: #{forward.1} parent=1 // pred_region
      _
    $region9: #{forward.1} parent=1 // pred_fallthru
      _
    // Predicated region
    $region10: #{forward.1} parent=1 // pred_check
      _
    $region11: #{forward.1} parent=1 // pred_check_branch
      %132 = sbr.rel (0) target = $region13
    $region12: #{forward.1} parent=1 // pred_region
      _
    $region13: #{forward.1} parent=1 // pred_fallthru
      _
    // Predicated region
    $region14: #{forward.1} parent=1 // pred_check
      _
    $region15: #{forward.1} parent=1 // pred_check_branch
      %134 = sbr.rel (0) target = $region17
    $region16: #{forward.1} parent=1 // pred_region
      _
    $region17: #{forward.1} parent=1 // pred_fallthru
      _
    // Predicated region
    $region18: #{forward.1} parent=1 // pred_check
      _
    $region19: #{forward.1} parent=1 // pred_check_branch
      %136 = sbr.rel (0) target = $region21
    $region20: #{forward.1} parent=1 // pred_region
      _
    $region21: #{forward.1} parent=1 // pred_fallthru
      _
    // Predicated region
    $region22: #{forward.1} parent=1 // pred_check
      _
    $region23: #{forward.1} parent=1 // pred_check_branch
      %138 = sbr.rel (0) target = $region25
    $region24: #{forward.1} parent=1 // pred_region
      _
    $region25: #{forward.1} parent=1 // pred_fallthru
      _
    // Predicated region
    $region26: #{forward.1} parent=1 // pred_check
      _
    $region27: #{forward.1} parent=1 // pred_check_branch
      %140 = sbr.rel (0) target = $region29
    $region28: #{forward.1} parent=1 // pred_region
      _
    $region29: #{forward.1} parent=1 // pred_fallthru
      _
    // Predicated region
    $region30: #{forward.1} parent=1 // pred_check
      _
    $region31: #{forward.1} parent=1 // pred_check_branch
      %142 = sbr.rel (0) target = $region33
    $region32: #{forward.1} parent=1 // pred_region
      _
    $region33: #{forward.1} parent=1 // pred_fallthru
      _
    // Predicated region
    $region34: #{forward.1} parent=1 // pred_check
      _
    $region35: #{forward.1} parent=1 // pred_check_branch
      %144 = sbr.rel (0) target = $region37
    $region36: #{forward.1} parent=1 // pred_region
      _
    $region37: #{forward.1} parent=1 // pred_fallthru
      _
    // Predicated region
    $region38: #{forward.1} parent=1 // pred_check
      _
    $region39: #{forward.1} parent=1 // pred_check_branch
      %146 = sbr.rel (0) target = $region41
    $region40: #{forward.1} parent=1 // pred_region
      _
    $region41: #{forward.1} parent=1 // pred_fallthru
      _
    // Predicated region
    $region42: #{forward.1} parent=1 // pred_check
      _
    $region43: #{forward.1} parent=1 // pred_check_branch
      %148 = sbr.rel (0) target = $region45
    $region44: #{forward.1} parent=1 // pred_region
      _
    $region45: #{forward.1} parent=1 // pred_fallthru
      _
    // Predicated region
    $region46: #{forward.1} parent=1 // pred_check
      _
    $region47: #{forward.1} parent=1 // pred_check_branch
      %150 = sbr.rel (0) target = $region49
    $region48: #{forward.1} parent=1 // pred_region
      _
    $region49: #{forward.1} parent=1 // pred_fallthru
      _
    // Predicated region
    $region50: #{forward.1} parent=1 // pred_check
      _
    $region51: #{forward.1} parent=1 // pred_check_branch
      %152 = sbr.rel (0) target = $region53
    $region52: #{forward.1} parent=1 // pred_region
      _
    $region53: #{forward.1} parent=1 // pred_fallthru
      _
    // Predicated region
    $region54: #{forward.1} parent=1 // pred_check
      _
    $region55: #{forward.1} parent=1 // pred_check_branch
      %154 = sbr.rel (0) target = $region57
    $region56: #{forward.1} parent=1 // pred_region
      _
    $region57: #{forward.1} parent=1 // pred_fallthru
      _
    // Predicated region
    $region58: #{forward.1} parent=1 // pred_check
      _
    $region59: #{forward.1} parent=1 // pred_check_branch
      %156 = sbr.rel (0) target = $region61
    $region60: #{forward.1} parent=1 // pred_region
      _
    $region61: #{forward.1} parent=1 // pred_fallthru
      _
    // Predicated region
    $region62: #{forward.1} parent=1 // pred_check
      _
    $region63: #{forward.1} parent=1 // pred_check_branch
      %158 = sbr.rel (0) target = $region65
    $region64: #{forward.1} parent=1 // pred_region
      _
    $region65: #{forward.1} parent=1 // pred_fallthru
      _
    // Predicated region
    $region66: #{forward.1} parent=1 // pred_check
      _
    $region67: #{forward.1} parent=1 // pred_check_branch
      %160 = sbr.rel (0) target = $region69
    $region68: #{forward.1} parent=1 // pred_region
      _
    $region69: #{forward.1} parent=1 // pred_fallthru
      _
    // Predicated region
    $region70: #{forward.1} parent=1 // pred_check
      _
    $region71: #{forward.1} parent=1 // pred_check_branch
      %162 = sbr.rel (0) target = $region73
    $region72: #{forward.1} parent=1 // pred_region
      _
    $region73: #{forward.1} parent=1 // pred_fallthru
      _
    // Predicated region
    $region74: #{forward.1} parent=1 // pred_check
      _
    $region75: #{forward.1} parent=1 // pred_check_branch
      %164 = sbr.rel (0) target = $region77
    $region76: #{forward.1} parent=1 // pred_region
      _
    $region77: #{forward.1} parent=1 // pred_fallthru
      _
    // Predicated region
    $region78: #{forward.1} parent=1 // pred_check
      _
    $region79: #{forward.1} parent=1 // pred_check_branch
      %166 = sbr.rel (0) target = $region81
    $region80: #{forward.1} parent=1 // pred_region
      _
    $region81: #{forward.1} parent=1 // pred_fallthru
      _
    // Predicated region
    $region82: #{forward.1} parent=1 // pred_check
      _
    $region83: #{forward.1} parent=1 // pred_check_branch
      %168 = sbr.rel (0) target = $region85
    $region84: #{forward.1} parent=1 // pred_region
      _
    $region85: #{forward.1} parent=1 // pred_fallthru
      _
    // Predicated region
    $region86: #{forward.1} parent=1 // pred_check
      _
    $region87: #{forward.1} parent=1 // pred_check_branch
      %170 = sbr.rel (0) target = $region89
    $region88: #{forward.1} parent=1 // pred_region
      _
    $region89: #{forward.1} parent=1 // pred_fallthru
      _
    // Predicated region
    $region90: #{forward.1} parent=1 // pred_check
      _
    $region91: #{forward.1} parent=1 // pred_check_branch
      %172 = sbr.rel (0) target = $region93
    $region92: #{forward.1} parent=1 // pred_region
      _
    $region93: #{forward.1} parent=1 // pred_fallthru
      _
    // Predicated region
    $region94: #{forward.1} parent=1 // pred_check
      _
    $region95: #{forward.1} parent=1 // pred_check_branch
      %174 = sbr.rel (0) target = $region97
    $region96: #{forward.1} parent=1 // pred_region
      _
    $region97: #{forward.1} parent=1 // pred_fallthru
      _
    // Predicated region
    $region98: #{forward.1} parent=1 // pred_check
      _
    $region99: #{forward.1} parent=1 // pred_check_branch
      %176 = sbr.rel (0) target = $region101
    $region100: #{forward.1} parent=1 // pred_region
      _
    $region101: #{forward.1} parent=1 // pred_fallthru
      _
    // Predicated region
    $region102: #{forward.1} parent=1 // pred_check
      _
    $region103: #{forward.1} parent=1 // pred_check_branch
      %178 = sbr.rel (0) target = $region105
    $region104: #{forward.1} parent=1 // pred_region
      _
    $region105: #{forward.1} parent=1 // pred_fallthru
      _
    // Predicated region
    $region106: #{forward.1} parent=1 // pred_check
      _
    $region107: #{forward.1} parent=1 // pred_check_branch
      %180 = sbr.rel (0) target = $region109
    $region108: #{forward.1} parent=1 // pred_region
      _
    $region109: #{forward.1} parent=1 // pred_fallthru
      _
    // Predicated region
    $region110: #{forward.1} parent=1 // pred_check
      _
    $region111: #{forward.1} parent=1 // pred_check_branch
      %182 = sbr.rel (0) target = $region113
    $region112: #{forward.1} parent=1 // pred_region
      _
    $region113: #{forward.1} parent=1 // pred_fallthru
      _
    // Predicated region
    $region114: #{forward.1} parent=1 // pred_check
      _
    $region115: #{forward.1} parent=1 // pred_check_branch
      %184 = sbr.rel (0) target = $region117
    $region116: #{forward.1} parent=1 // pred_region
      _
    $region117: #{forward.1} parent=1 // pred_fallthru
      _
    // Predicated region
    $region118: #{forward.1} parent=1 // pred_check
      _
    $region119: #{forward.1} parent=1 // pred_check_branch
      %186 = sbr.rel (0) target = $region121
    $region120: #{forward.1} parent=1 // pred_region
      _
    $region121: #{forward.1} parent=1 // pred_fallthru
      _
    // Predicated region
    $region122: #{forward.1} parent=1 // pred_check
      _
    $region123: #{forward.1} parent=1 // pred_check_branch
      %188 = sbr.rel (0) target = $region125
    $region124: #{forward.1} parent=1 // pred_region
      _
    $region125: #{forward.1} parent=1 // pred_fallthru
      _
    // Predicated region
    $region126: #{forward.1} parent=1 // pred_check
      _
    $region127: #{forward.1} parent=1 // pred_check_branch
      %190 = sbr.rel (0) target = $region129
    $region128: #{forward.1} parent=1 // pred_region
      %s192 = ssub.s32 1024, 1024
      %193 = vsyncadd [#allocation3], %s192
      %s194 = sshll.u32 [#allocation2], 4
      %s195 = int_to_ptr.vmem [resolvable:$true] %s194
      %200 = dma.hbm_to_vmem [thread:$0]  %s63, 1024, %s195, [#allocation3], 64, 64, 4
    $region129: #{forward.1} parent=1 // pred_fallthru
      _
    // Predicated region
    $region130: #{forward.1} parent=1 // pred_check
      _
    $region131: #{forward.1} parent=1 // pred_check_branch
      %202 = sbr.rel (0) target = $region133
    $region132: #{forward.1} parent=1 // pred_region
      _
    $region133: #{forward.1} parent=1 // pred_fallthru
      _
    // Predicated region
    $region134: #{forward.1} parent=1 // pred_check
      _
    $region135: #{forward.1} parent=1 // pred_check_branch
      %204 = sbr.rel (0) target = $region137
    $region136: #{forward.1} parent=1 // pred_region
      %s206 = ssub.s32 1024, 1024
      %207 = vsyncadd [#allocation6], %s206
      %s208 = sshll.u32 [#allocation5], 4
      %s209 = int_to_ptr.vmem [resolvable:$true] %s208
      %214 = dma.hbm_to_vmem [thread:$0]  %s67, 1024, %s209, [#allocation6], 64, 64, 4
    $region137: #{forward.1} parent=1 // pred_fallthru
      _
    // Predicated region
    $region138: #{forward.1} parent=1 // pred_check
      _
    $region139: #{forward.1} parent=1 // pred_check_branch
      %216 = sbr.rel (0) target = $region141
    $region140: #{forward.1} parent=1 // pred_region
      _
    $region141: #{forward.1} parent=1 // pred_fallthru
      _
    // Predicated region
    $region142: #{forward.1} parent=1 // pred_check
      _
    $region143: #{forward.1} parent=1 // pred_check_branch
      %218 = sbr.rel (0) target = $region145
    $region144: #{forward.1} parent=1 // pred_region
      _
    $region145: #{forward.1} parent=1 // pred_fallthru
      _
    // Predicated region
    $region146: #{forward.1} parent=1 // pred_check
      _
    $region147: #{forward.1} parent=1 // pred_check_branch
      %220 = sbr.rel (0) target = $region149
    $region148: #{forward.1} parent=1 // pred_region
      _
    $region149: #{forward.1} parent=1 // pred_fallthru
      _
    // Predicated region
    $region150: #{forward.1} parent=1 // pred_check
      _
    $region151: #{forward.1} parent=1 // pred_check_branch
      %222 = sbr.rel (0) target = $region153
    $region152: #{forward.1} parent=1 // pred_region
      %s224 = ssub.s32 1024, 1024
      %225 = vsyncadd [#allocation6], %s224
      %s226 = sshll.u32 [#allocation7], 4
      %s227 = int_to_ptr.vmem [resolvable:$true] %s226
      %232 = dma.hbm_to_vmem [thread:$0]  %s75, 1024, %s227, [#allocation6], 64, 64, 4
    $region153: #{forward.1} parent=1 // pred_fallthru
      _
    // Predicated region
    $region154: #{forward.1} parent=1 // pred_check
      _
    $region155: #{forward.1} parent=1 // pred_check_branch
      %234 = sbr.rel (0) target = $region157
    $region156: #{forward.1} parent=1 // pred_region
      _
    $region157: #{forward.1} parent=1 // pred_fallthru
      _
    // Predicated region
    $region158: #{forward.1} parent=1 // pred_check
      _
    $region159: #{forward.1} parent=1 // pred_check_branch
      %236 = sbr.rel (0) target = $region161
    $region160: #{forward.1} parent=1 // pred_region
      %s238 = ssub.s32 1024, 1024
      %239 = vsyncadd [#allocation9], %s238
      %s240 = sshll.u32 [#allocation8], 4
      %s241 = int_to_ptr.vmem [resolvable:$true] %s240
      %246 = dma.hbm_to_vmem [thread:$0]  %s79, 1024, %s241, [#allocation9], 64, 64, 4
    $region161: #{forward.1} parent=1 // pred_fallthru
      _
    // Predicated region
    $region162: #{forward.1} parent=1 // pred_check
      _
    $region163: #{forward.1} parent=1 // pred_check_branch
      %248 = sbr.rel (0) target = $region165
    $region164: #{forward.1} parent=1 // pred_region
      _
    $region165: #{forward.1} parent=1 // pred_fallthru
      _
    // Predicated region
    $region166: #{forward.1} parent=1 // pred_check
      _
    $region167: #{forward.1} parent=1 // pred_check_branch
      %250 = sbr.rel (0) target = $region169
    $region168: #{forward.1} parent=1 // pred_region
      %s252 = ssub.s32 1024, 1024
      %253 = vsyncadd [#allocation9], %s252
      %s254 = sshll.u32 [#allocation10], 4
      %s255 = int_to_ptr.vmem [resolvable:$true] %s254
      %260 = dma.hbm_to_vmem [thread:$0]  %s83, 1024, %s255, [#allocation9], 64, 64, 4
    $region169: #{forward.1} parent=1 // pred_fallthru
      _
    // Predicated region
    $region170: #{forward.1} parent=1 // pred_check
      _
    $region171: #{forward.1} parent=1 // pred_check_branch
      %262 = sbr.rel (0) target = $region173
    $region172: #{forward.1} parent=1 // pred_region
      %s264 = ssub.s32 1024, 1024
      %265 = vsyncadd [#allocation12], %s264
      %s266 = sshll.u32 [#allocation11], 4
      %s267 = int_to_ptr.vmem [resolvable:$true] %s266
      %272 = dma.hbm_to_vmem [thread:$0]  %s85, 1024, %s267, [#allocation12], 64, 64, 4
    $region173: #{forward.1} parent=1 // pred_fallthru
      _
    // Predicated region
    $region174: #{forward.1} parent=1 // pred_check
      _
    $region175: #{forward.1} parent=1 // pred_check_branch
      %274 = sbr.rel (0) target = $region177
    $region176: #{forward.1} parent=1 // pred_region
      %s276 = ssub.s32 1024, 1024
      %277 = vsyncadd [#allocation12], %s276
      %s278 = sshll.u32 [#allocation13], 4
      %s279 = int_to_ptr.vmem [resolvable:$true] %s278
      %284 = dma.hbm_to_vmem [thread:$0]  %s87, 1024, %s279, [#allocation12], 64, 64, 4
    $region177: #{forward.1} parent=1 // pred_fallthru
      _
    // Predicated region
    $region178: #{forward.1} parent=1 // pred_check
      _
    $region179: #{forward.1} parent=1 // pred_check_branch
      %286 = sbr.rel (0) target = $region181
    $region180: #{forward.1} parent=1 // pred_region
      _
    $region181: #{forward.1} parent=1 // pred_fallthru
      _
    // Predicated region
    $region182: #{forward.1} parent=1 // pred_check
      _
    $region183: #{forward.1} parent=1 // pred_check_branch
      %288 = sbr.rel (0) target = $region185
    $region184: #{forward.1} parent=1 // pred_region
      %s290 = ssub.s32 1024, 1024
      %291 = vsyncadd [#allocation15], %s290
      %s292 = sshll.u32 [#allocation14], 4
      %s293 = int_to_ptr.vmem [resolvable:$true] %s292
      %298 = dma.hbm_to_vmem [thread:$0]  %s91, 1024, %s293, [#allocation15], 64, 64, 4
    $region185: #{forward.1} parent=1 // pred_fallthru
      _
    // Predicated region
    $region186: #{forward.1} parent=1 // pred_check
      _
    $region187: #{forward.1} parent=1 // pred_check_branch
      %300 = sbr.rel (0) target = $region189
    $region188: #{forward.1} parent=1 // pred_region
      _
    $region189: #{forward.1} parent=1 // pred_fallthru
      _
    // Predicated region
    $region190: #{forward.1} parent=1 // pred_check
      _
    $region191: #{forward.1} parent=1 // pred_check_branch
      %302 = sbr.rel (0) target = $region193
    $region192: #{forward.1} parent=1 // pred_region
      %s304 = ssub.s32 1024, 1024
      %305 = vsyncadd [#allocation15], %s304
      %s306 = sshll.u32 [#allocation16], 4
      %s307 = int_to_ptr.vmem [resolvable:$true] %s306
      %312 = dma.hbm_to_vmem [thread:$0]  %s95, 1024, %s307, [#allocation15], 64, 64, 4
    $region193: #{forward.1} parent=1 // pred_fallthru
      _
    // Predicated region
    $region194: #{forward.1} parent=1 // pred_check
      _
    $region195: #{forward.1} parent=1 // pred_check_branch
      %314 = sbr.rel (0) target = $region197
    $region196: #{forward.1} parent=1 // pred_region
      _
    $region197: #{forward.1} parent=1 // pred_fallthru
      _
    // Predicated region
    $region198: #{forward.1} parent=1 // pred_check
      _
    $region199: #{forward.1} parent=1 // pred_check_branch
      %316 = sbr.rel (0) target = $region201
    $region200: #{forward.1} parent=1 // pred_region
      %s318 = ssub.s32 1024, 1024
      %319 = vsyncadd [#allocation18], %s318
      %s320 = sshll.u32 [#allocation17], 4
      %s321 = int_to_ptr.vmem [resolvable:$true] %s320
      %326 = dma.hbm_to_vmem [thread:$0]  %s99, 1024, %s321, [#allocation18], 64, 64, 4
    $region201: #{forward.1} parent=1 // pred_fallthru
      _
    // Predicated region
    $region202: #{forward.1} parent=1 // pred_check
      _
    $region203: #{forward.1} parent=1 // pred_check_branch
      %328 = sbr.rel (0) target = $region205
    $region204: #{forward.1} parent=1 // pred_region
      _
    $region205: #{forward.1} parent=1 // pred_fallthru
      _
    // Predicated region
    $region206: #{forward.1} parent=1 // pred_check
      _
    $region207: #{forward.1} parent=1 // pred_check_branch
      %330 = sbr.rel (0) target = $region209
    $region208: #{forward.1} parent=1 // pred_region
      _
    $region209: #{forward.1} parent=1 // pred_fallthru
      _
    // Predicated region
    $region210: #{forward.1} parent=1 // pred_check
      _
    $region211: #{forward.1} parent=1 // pred_check_branch
      %332 = sbr.rel (0) target = $region213
    $region212: #{forward.1} parent=1 // pred_region
      _
    $region213: #{forward.1} parent=1 // pred_fallthru
      _
    // Predicated region
    $region214: #{forward.1} parent=1 // pred_check
      _
    $region215: #{forward.1} parent=1 // pred_check_branch
      %334 = sbr.rel (0) target = $region217
    $region216: #{forward.1} parent=1 // pred_region
      _
    $region217: #{forward.1} parent=1 // pred_fallthru
      _
    // Predicated region
    $region218: #{forward.1} parent=1 // pred_check
      _
    $region219: #{forward.1} parent=1 // pred_check_branch
      %336 = sbr.rel (0) target = $region221
    $region220: #{forward.1} parent=1 // pred_region
      _
    $region221: #{forward.1} parent=1 // pred_fallthru
      _
    // Predicated region
    $region222: #{forward.1} parent=1 // pred_check
      _
    $region223: #{forward.1} parent=1 // pred_check_branch
      %338 = sbr.rel (0) target = $region225
    $region224: #{forward.1} parent=1 // pred_region
      %339 = dma.done [#allocation3], 1024
    $region225: #{forward.1} parent=1 // pred_fallthru
      _
    // Predicated region
    $region226: #{forward.1} parent=1 // pred_check
      _
    $region227: #{forward.1} parent=1 // pred_check_branch
      %341 = sbr.rel (0) target = $region229
    $region228: #{forward.1} parent=1 // pred_region
      %342 = dma.done [#allocation6], 1024
    $region229: #{forward.1} parent=1 // pred_fallthru
      _
    // Predicated region
    $region230: #{forward.1} parent=1 // pred_check
      _
    $region231: #{forward.1} parent=1 // pred_check_branch
      %344 = sbr.rel (0) target = $region233
    $region232: #{forward.1} parent=1 // pred_region
      %345 = dma.done [#allocation6], 1024
    $region233: #{forward.1} parent=1 // pred_fallthru
      _
    // Predicated region
    $region234: #{forward.1} parent=1 // pred_check
      _
    $region235: #{forward.1} parent=1 // pred_check_branch
      %347 = sbr.rel (0) target = $region237
    $region236: #{forward.1} parent=1 // pred_region
      %348 = dma.done [#allocation9], 1024
    $region237: #{forward.1} parent=1 // pred_fallthru
      _
    // Predicated region
    $region238: #{forward.1} parent=1 // pred_check
      _
    $region239: #{forward.1} parent=1 // pred_check_branch
      %350 = sbr.rel (0) target = $region241
    $region240: #{forward.1} parent=1 // pred_region
      %351 = dma.done [#allocation9], 1024
    $region241: #{forward.1} parent=1 // pred_fallthru
      _
    // Predicated region
    $region242: #{forward.1} parent=1 // pred_check
      _
    $region243: #{forward.1} parent=1 // pred_check_branch
      %353 = sbr.rel (0) target = $region245
    $region244: #{forward.1} parent=1 // pred_region
      %354 = dma.done [#allocation12], 1024
    $region245: #{forward.1} parent=1 // pred_fallthru
      _
    // Predicated region
    $region246: #{forward.1} parent=1 // pred_check
      _
    $region247: #{forward.1} parent=1 // pred_check_branch
      %356 = sbr.rel (0) target = $region249
    $region248: #{forward.1} parent=1 // pred_region
      %357 = dma.done [#allocation12], 1024
    $region249: #{forward.1} parent=1 // pred_fallthru
      _
    // Predicated region
    $region250: #{forward.1} parent=1 // pred_check
      _
    $region251: #{forward.1} parent=1 // pred_check_branch
      %359 = sbr.rel (0) target = $region253
    $region252: #{forward.1} parent=1 // pred_region
      %360 = dma.done [#allocation15], 1024
    $region253: #{forward.1} parent=1 // pred_fallthru
      _
    // Predicated region
    $region254: #{forward.1} parent=1 // pred_check
      _
    $region255: #{forward.1} parent=1 // pred_check_branch
      %362 = sbr.rel (0) target = $region257
    $region256: #{forward.1} parent=1 // pred_region
      %363 = dma.done [#allocation15], 1024
    $region257: #{forward.1} parent=1 // pred_fallthru
      _
    // Predicated region
    $region258: #{forward.1} parent=1 // pred_check
      _
    $region259: #{forward.1} parent=1 // pred_check_branch
      %365 = sbr.rel (0) target = $region261
    $region260: #{forward.1} parent=1 // pred_region
      %366 = dma.done [#allocation18], 1024
    $region261: #{forward.1} parent=1 // pred_fallthru
      _
    %v369 = vld [vmem:[%s15] sm:$0x7]
    %v370 = vld [vmem:[%s17] sm:$0x1]
    %v371 = vld [vmem:[%s19] sm:$0xf]
    %v372 = vld [vmem:[%s19 + $0x4] sm:$0xf]
    %v373 = vld [vmem:[%s19 + $0x8] sm:$0xf]
    %v374 = vld [vmem:[%s19 + $0xc] sm:$0xf]
    %v375 = vld [vmem:[%s19 + $0x10] sm:$0xf]
    %v376 = vld [vmem:[%s19 + $0x14] sm:$0xf]
    %v377 = vld [vmem:[%s19 + $0x18] sm:$0xf]
    %v378 = vld [vmem:[%s19 + $0x1c] sm:$0xf]
    %v379 = vld [vmem:[%s19 + $0x20] sm:$0xf]
    %v380 = vld [vmem:[%s19 + $0x24] sm:$0xf]
    %v381 = vld [vmem:[%s19 + $0x28] sm:$0xf]
    %v382 = vld [vmem:[%s19 + $0x2c] sm:$0xf]
    %v383 = vld [vmem:[%s19 + $0x30] sm:$0xf]
    %v384 = vld [vmem:[%s19 + $0x34] sm:$0xf]
    %v385 = vld [vmem:[%s19 + $0x38] sm:$0xf]
    %v386 = vld [vmem:[%s19 + $0x3c] sm:$0xf]
    %v387 = vld [vmem:[%s21] sm:$0x1]
    %v388 = vld [vmem:[%s23] sm:$0x3]
    %v389 = vld [vmem:[%s25] sm:$0x1]
    %v390 = vld [vmem:[%s27] sm:$0xf]
    %v391 = vld [vmem:[%s27 + $0x4] sm:$0xf]
    %v392 = vld [vmem:[%s27 + $0x8] sm:$0xf]
    %v393 = vld [vmem:[%s27 + $0xc] sm:$0xf]
    %v394 = vld [vmem:[%s27 + $0x10] sm:$0xf]
    %v395 = vld [vmem:[%s27 + $0x14] sm:$0xf]
    %v396 = vld [vmem:[%s27 + $0x18] sm:$0xf]
    %v397 = vld [vmem:[%s27 + $0x1c] sm:$0xf]
    %v398 = vld [vmem:[%s27 + $0x20] sm:$0xf]
    %v399 = vld [vmem:[%s27 + $0x24] sm:$0xf]
    %v400 = vld [vmem:[%s27 + $0x28] sm:$0xf]
    %v401 = vld [vmem:[%s27 + $0x2c] sm:$0xf]
    %v402 = vld [vmem:[%s27 + $0x30] sm:$0xf]
    %v403 = vld [vmem:[%s27 + $0x34] sm:$0xf]
    %v404 = vld [vmem:[%s27 + $0x38] sm:$0xf]
    %v405 = vld [vmem:[%s27 + $0x3c] sm:$0xf]
    %v406 = vld [vmem:[%s29] sm:$0x1]
    %v407 = vld [vmem:[%s31] sm:$0x77]
    %v408 = vld [vmem:[%s33] sm:$0x3]
    %v409 = vld [vmem:[%s35] sm:$0xff]
    %v410 = vld [vmem:[%s35 + $0x8] sm:$0xff]
    %v411 = vld [vmem:[%s35 + $0x10] sm:$0xff]
    %v412 = vld [vmem:[%s35 + $0x18] sm:$0xff]
    %v413 = vld [vmem:[%s35 + $0x20] sm:$0xff]
    %v414 = vld [vmem:[%s35 + $0x28] sm:$0xff]
    %v415 = vld [vmem:[%s35 + $0x30] sm:$0xff]
    %v416 = vld [vmem:[%s35 + $0x38] sm:$0xff]
    %v417 = vld [vmem:[%s35 + $0x40] sm:$0xff]
    %v418 = vld [vmem:[%s35 + $0x48] sm:$0xff]
    %v419 = vld [vmem:[%s35 + $0x50] sm:$0xff]
    %v420 = vld [vmem:[%s35 + $0x58] sm:$0xff]
    %v421 = vld [vmem:[%s35 + $0x60] sm:$0xff]
    %v422 = vld [vmem:[%s35 + $0x68] sm:$0xff]
    %v423 = vld [vmem:[%s35 + $0x70] sm:$0xff]
    %v424 = vld [vmem:[%s35 + $0x78] sm:$0xff]
    %v425 = vld [vmem:[%s35 + $0x80] sm:$0xff]
    %v426 = vld [vmem:[%s35 + $0x88] sm:$0xff]
    %v427 = vld [vmem:[%s35 + $0x90] sm:$0xff]
    %v428 = vld [vmem:[%s35 + $0x98] sm:$0xff]
    %v429 = vld [vmem:[%s35 + $0xa0] sm:$0xff]
    %v430 = vld [vmem:[%s35 + $0xa8] sm:$0xff]
    %v431 = vld [vmem:[%s35 + $0xb0] sm:$0xff]
    %v432 = vld [vmem:[%s35 + $0xb8] sm:$0xff]
    %v433 = vld [vmem:[%s35 + $0xc0] sm:$0xff]
    %v434 = vld [vmem:[%s35 + $0xc8] sm:$0xff]
    %v435 = vld [vmem:[%s35 + $0xd0] sm:$0xff]
    %v436 = vld [vmem:[%s35 + $0xd8] sm:$0xff]
    %v437 = vld [vmem:[%s35 + $0xe0] sm:$0xff]
    %v438 = vld [vmem:[%s35 + $0xe8] sm:$0xff]
    %v439 = vld [vmem:[%s35 + $0xf0] sm:$0xff]
    %v440 = vld [vmem:[%s35 + $0xf8] sm:$0xff]
    %v441 = vld [vmem:[%s37] sm:$0x3]
    %v442 = vld [vmem:[%s39] sm:$0xf]
    %v443 = vld [vmem:[%s39 + $0x4] sm:$0xf]
    %v444 = vld [vmem:[%s39 + $0x8] sm:$0xf]
    %v445 = vld [vmem:[%s39 + $0xc] sm:$0xf]
    %v446 = vld [vmem:[%s39 + $0x10] sm:$0xf]
    %v447 = vld [vmem:[%s39 + $0x14] sm:$0xf]
    %v448 = vld [vmem:[%s39 + $0x18] sm:$0xf]
    %v449 = vld [vmem:[%s39 + $0x1c] sm:$0xf]
    %v450 = vld [vmem:[%s39 + $0x20] sm:$0xf]
    %v451 = vld [vmem:[%s39 + $0x24] sm:$0xf]
    %v452 = vld [vmem:[%s39 + $0x28] sm:$0xf]
    %v453 = vld [vmem:[%s39 + $0x2c] sm:$0xf]
    %v454 = vld [vmem:[%s39 + $0x30] sm:$0xf]
    %v455 = vld [vmem:[%s39 + $0x34] sm:$0xf]
    %v456 = vld [vmem:[%s39 + $0x38] sm:$0xf]
    %v457 = vld [vmem:[%s39 + $0x3c] sm:$0xf]
    %v458 = vld [vmem:[%s39 + $0x40] sm:$0xf]
    %v459 = vld [vmem:[%s39 + $0x44] sm:$0xf]
    %v460 = vld [vmem:[%s39 + $0x48] sm:$0xf]
    %v461 = vld [vmem:[%s39 + $0x4c] sm:$0xf]
    %v462 = vld [vmem:[%s39 + $0x50] sm:$0xf]
    %v463 = vld [vmem:[%s39 + $0x54] sm:$0xf]
    %v464 = vld [vmem:[%s39 + $0x58] sm:$0xf]
    %v465 = vld [vmem:[%s39 + $0x5c] sm:$0xf]
    %v466 = vld [vmem:[%s39 + $0x60] sm:$0xf]
    %v467 = vld [vmem:[%s39 + $0x64] sm:$0xf]
    %v468 = vld [vmem:[%s39 + $0x68] sm:$0xf]
    %v469 = vld [vmem:[%s39 + $0x6c] sm:$0xf]
    %v470 = vld [vmem:[%s39 + $0x70] sm:$0xf]
    %v471 = vld [vmem:[%s39 + $0x74] sm:$0xf]
    %v472 = vld [vmem:[%s39 + $0x78] sm:$0xf]
    %v473 = vld [vmem:[%s39 + $0x7c] sm:$0xf]
    %v474 = vld [vmem:[%s41] sm:$0x1]
    %v475 = vld [vmem:[%s43] sm:$0xf]
    %v476 = vld [vmem:[%s43 + $0x4] sm:$0xf]
    %v477 = vld [vmem:[%s43 + $0x8] sm:$0xf]
    %v478 = vld [vmem:[%s43 + $0xc] sm:$0xf]
    %v479 = vld [vmem:[%s43 + $0x10] sm:$0xf]
    %v480 = vld [vmem:[%s43 + $0x14] sm:$0xf]
    %v481 = vld [vmem:[%s43 + $0x18] sm:$0xf]
    %v482 = vld [vmem:[%s43 + $0x1c] sm:$0xf]
    %v483 = vld [vmem:[%s43 + $0x20] sm:$0xf]
    %v484 = vld [vmem:[%s43 + $0x24] sm:$0xf]
    %v485 = vld [vmem:[%s43 + $0x28] sm:$0xf]
    %v486 = vld [vmem:[%s43 + $0x2c] sm:$0xf]
    %v487 = vld [vmem:[%s43 + $0x30] sm:$0xf]
    %v488 = vld [vmem:[%s43 + $0x34] sm:$0xf]
    %v489 = vld [vmem:[%s43 + $0x38] sm:$0xf]
    %v490 = vld [vmem:[%s43 + $0x3c] sm:$0xf]
    %v491 = vld [vmem:[%s45] sm:$0x1]
    %v492 = vld [vmem:[%s47] sm:$0xff]
    %v493 = vld [vmem:[%s47 + $0x8] sm:$0xff]
    %v494 = vld [vmem:[%s47 + $0x10] sm:$0xff]
    %v495 = vld [vmem:[%s47 + $0x18] sm:$0xff]
    %v496 = vld [vmem:[%s47 + $0x20] sm:$0xff]
    %v497 = vld [vmem:[%s47 + $0x28] sm:$0xff]
    %v498 = vld [vmem:[%s47 + $0x30] sm:$0xff]
    %v499 = vld [vmem:[%s47 + $0x38] sm:$0xff]
    %v500 = vld [vmem:[%s47 + $0x40] sm:$0xff]
    %v501 = vld [vmem:[%s47 + $0x48] sm:$0xff]
    %v502 = vld [vmem:[%s47 + $0x50] sm:$0xff]
    %v503 = vld [vmem:[%s47 + $0x58] sm:$0xff]
    %v504 = vld [vmem:[%s47 + $0x60] sm:$0xff]
    %v505 = vld [vmem:[%s47 + $0x68] sm:$0xff]
    %v506 = vld [vmem:[%s47 + $0x70] sm:$0xff]
    %v507 = vld [vmem:[%s47 + $0x78] sm:$0xff]
    %v508 = vld [vmem:[%s49] sm:$0xf]
    %v509 = vld [vmem:[%s49 + $0x4] sm:$0xf]
    %v510 = vld [vmem:[%s49 + $0x8] sm:$0xf]
    %v511 = vld [vmem:[%s49 + $0xc] sm:$0xf]
    %v512 = vld [vmem:[%s49 + $0x10] sm:$0xf]
    %v513 = vld [vmem:[%s49 + $0x14] sm:$0xf]
    %v514 = vld [vmem:[%s49 + $0x18] sm:$0xf]
    %v515 = vld [vmem:[%s49 + $0x1c] sm:$0xf]
    %v516 = vld [vmem:[%s49 + $0x20] sm:$0xf]
    %v517 = vld [vmem:[%s49 + $0x24] sm:$0xf]
    %v518 = vld [vmem:[%s49 + $0x28] sm:$0xf]
    %v519 = vld [vmem:[%s49 + $0x2c] sm:$0xf]
    %v520 = vld [vmem:[%s49 + $0x30] sm:$0xf]
    %v521 = vld [vmem:[%s49 + $0x34] sm:$0xf]
    %v522 = vld [vmem:[%s49 + $0x38] sm:$0xf]
    %v523 = vld [vmem:[%s49 + $0x3c] sm:$0xf]
    %v524 = vld [vmem:[%s51] sm:$0xf]
    %v525 = vld [vmem:[%s51 + $0x4] sm:$0xf]
    %v526 = vld [vmem:[%s51 + $0x8] sm:$0xf]
    %v527 = vld [vmem:[%s51 + $0xc] sm:$0xf]
    %v528 = vld [vmem:[%s51 + $0x10] sm:$0xf]
    %v529 = vld [vmem:[%s51 + $0x14] sm:$0xf]
    %v530 = vld [vmem:[%s51 + $0x18] sm:$0xf]
    %v531 = vld [vmem:[%s51 + $0x1c] sm:$0xf]
    %v532 = vld [vmem:[%s51 + $0x20] sm:$0xf]
    %v533 = vld [vmem:[%s51 + $0x24] sm:$0xf]
    %v534 = vld [vmem:[%s51 + $0x28] sm:$0xf]
    %v535 = vld [vmem:[%s51 + $0x2c] sm:$0xf]
    %v536 = vld [vmem:[%s51 + $0x30] sm:$0xf]
    %v537 = vld [vmem:[%s51 + $0x34] sm:$0xf]
    %v538 = vld [vmem:[%s51 + $0x38] sm:$0xf]
    %v539 = vld [vmem:[%s51 + $0x3c] sm:$0xf]
    %v540 = vld [vmem:[%s53] sm:$0x1]
    %v541 = vld [vmem:[%s55] sm:$0xf]
    %v542 = vld [vmem:[%s55 + $0x4] sm:$0xf]
    %v543 = vld [vmem:[%s55 + $0x8] sm:$0xf]
    %v544 = vld [vmem:[%s55 + $0xc] sm:$0xf]
    %v545 = vld [vmem:[%s55 + $0x10] sm:$0xf]
    %v546 = vld [vmem:[%s55 + $0x14] sm:$0xf]
    %v547 = vld [vmem:[%s55 + $0x18] sm:$0xf]
    %v548 = vld [vmem:[%s55 + $0x1c] sm:$0xf]
    %v549 = vld [vmem:[%s55 + $0x20] sm:$0xf]
    %v550 = vld [vmem:[%s55 + $0x24] sm:$0xf]
    %v551 = vld [vmem:[%s55 + $0x28] sm:$0xf]
    %v552 = vld [vmem:[%s55 + $0x2c] sm:$0xf]
    %v553 = vld [vmem:[%s55 + $0x30] sm:$0xf]
    %v554 = vld [vmem:[%s55 + $0x34] sm:$0xf]
    %v555 = vld [vmem:[%s55 + $0x38] sm:$0xf]
    %v556 = vld [vmem:[%s55 + $0x3c] sm:$0xf]
    %v557 = vld [vmem:[%s57] sm:$0x1]
    %v558 = vld [vmem:[%s59] sm:$0xf]
    %v559 = vld [vmem:[%s59 + $0x4] sm:$0xf]
    %v560 = vld [vmem:[%s59 + $0x8] sm:$0xf]
    %v561 = vld [vmem:[%s59 + $0xc] sm:$0xf]
    %v562 = vld [vmem:[%s59 + $0x10] sm:$0xf]
    %v563 = vld [vmem:[%s59 + $0x14] sm:$0xf]
    %v564 = vld [vmem:[%s59 + $0x18] sm:$0xf]
    %v565 = vld [vmem:[%s59 + $0x1c] sm:$0xf]
    %v566 = vld [vmem:[%s59 + $0x20] sm:$0xf]
    %v567 = vld [vmem:[%s59 + $0x24] sm:$0xf]
    %v568 = vld [vmem:[%s59 + $0x28] sm:$0xf]
    %v569 = vld [vmem:[%s59 + $0x2c] sm:$0xf]
    %v570 = vld [vmem:[%s59 + $0x30] sm:$0xf]
    %v571 = vld [vmem:[%s59 + $0x34] sm:$0xf]
    %v572 = vld [vmem:[%s59 + $0x38] sm:$0xf]
    %v573 = vld [vmem:[%s59 + $0x3c] sm:$0xf]
    %v574 = vld [vmem:[%s61] sm:$0xf]
    %v575 = vld [vmem:[%s61 + $0x4] sm:$0xf]
    %v576 = vld [vmem:[%s61 + $0x8] sm:$0xf]
    %v577 = vld [vmem:[%s61 + $0xc] sm:$0xf]
    %v578 = vld [vmem:[%s61 + $0x10] sm:$0xf]
    %v579 = vld [vmem:[%s61 + $0x14] sm:$0xf]
    %v580 = vld [vmem:[%s61 + $0x18] sm:$0xf]
    %v581 = vld [vmem:[%s61 + $0x1c] sm:$0xf]
    %v582 = vld [vmem:[%s61 + $0x20] sm:$0xf]
    %v583 = vld [vmem:[%s61 + $0x24] sm:$0xf]
    %v584 = vld [vmem:[%s61 + $0x28] sm:$0xf]
    %v585 = vld [vmem:[%s61 + $0x2c] sm:$0xf]
    %v586 = vld [vmem:[%s61 + $0x30] sm:$0xf]
    %v587 = vld [vmem:[%s61 + $0x34] sm:$0xf]
    %v588 = vld [vmem:[%s61 + $0x38] sm:$0xf]
    %v589 = vld [vmem:[%s61 + $0x3c] sm:$0xf]
    %v590 = vld [vmem:[#allocation2] sm:$0xf]
    %v591 = vld [vmem:[#allocation2 + $0x4] sm:$0xf]
    %v592 = vld [vmem:[#allocation2 + $0x8] sm:$0xf]
    %v593 = vld [vmem:[#allocation2 + $0xc] sm:$0xf]
    %v594 = vld [vmem:[#allocation2 + $0x10] sm:$0xf]
    %v595 = vld [vmem:[#allocation2 + $0x14] sm:$0xf]
    %v596 = vld [vmem:[#allocation2 + $0x18] sm:$0xf]
    %v597 = vld [vmem:[#allocation2 + $0x1c] sm:$0xf]
    %v598 = vld [vmem:[#allocation2 + $0x20] sm:$0xf]
    %v599 = vld [vmem:[#allocation2 + $0x24] sm:$0xf]
    %v600 = vld [vmem:[#allocation2 + $0x28] sm:$0xf]
    %v601 = vld [vmem:[#allocation2 + $0x2c] sm:$0xf]
    %v602 = vld [vmem:[#allocation2 + $0x30] sm:$0xf]
    %v603 = vld [vmem:[#allocation2 + $0x34] sm:$0xf]
    %v604 = vld [vmem:[#allocation2 + $0x38] sm:$0xf]
    %v605 = vld [vmem:[#allocation2 + $0x3c] sm:$0xf]
    %v606 = vld [vmem:[%s65] sm:$0x1]
    %v607 = vld [vmem:[#allocation5] sm:$0xf]
    %v608 = vld [vmem:[#allocation5 + $0x4] sm:$0xf]
    %v609 = vld [vmem:[#allocation5 + $0x8] sm:$0xf]
    %v610 = vld [vmem:[#allocation5 + $0xc] sm:$0xf]
    %v611 = vld [vmem:[#allocation5 + $0x10] sm:$0xf]
    %v612 = vld [vmem:[#allocation5 + $0x14] sm:$0xf]
    %v613 = vld [vmem:[#allocation5 + $0x18] sm:$0xf]
    %v614 = vld [vmem:[#allocation5 + $0x1c] sm:$0xf]
    %v615 = vld [vmem:[#allocation5 + $0x20] sm:$0xf]
    %v616 = vld [vmem:[#allocation5 + $0x24] sm:$0xf]
    %v617 = vld [vmem:[#allocation5 + $0x28] sm:$0xf]
    %v618 = vld [vmem:[#allocation5 + $0x2c] sm:$0xf]
    %v619 = vld [vmem:[#allocation5 + $0x30] sm:$0xf]
    %v620 = vld [vmem:[#allocation5 + $0x34] sm:$0xf]
    %v621 = vld [vmem:[#allocation5 + $0x38] sm:$0xf]
    %v622 = vld [vmem:[#allocation5 + $0x3c] sm:$0xf]
    %v623 = vld [vmem:[%s69] sm:$0x1]
    %v624 = vld [vmem:[%s71] sm:$0xff]
    %v625 = vld [vmem:[%s71 + $0x8] sm:$0xff]
    %v626 = vld [vmem:[%s71 + $0x10] sm:$0xff]
    %v627 = vld [vmem:[%s71 + $0x18] sm:$0xff]
    %v628 = vld [vmem:[%s71 + $0x20] sm:$0xff]
    %v629 = vld [vmem:[%s71 + $0x28] sm:$0xff]
    %v630 = vld [vmem:[%s71 + $0x30] sm:$0xff]
    %v631 = vld [vmem:[%s71 + $0x38] sm:$0xff]
    %v632 = vld [vmem:[%s71 + $0x40] sm:$0xff]
    %v633 = vld [vmem:[%s71 + $0x48] sm:$0xff]
    %v634 = vld [vmem:[%s71 + $0x50] sm:$0xff]
    %v635 = vld [vmem:[%s71 + $0x58] sm:$0xff]
    %v636 = vld [vmem:[%s71 + $0x60] sm:$0xff]
    %v637 = vld [vmem:[%s71 + $0x68] sm:$0xff]
    %v638 = vld [vmem:[%s71 + $0x70] sm:$0xff]
    %v639 = vld [vmem:[%s71 + $0x78] sm:$0xff]
    %v640 = vld [vmem:[%s73] sm:$0xf]
    %v641 = vld [vmem:[%s73 + $0x4] sm:$0xf]
    %v642 = vld [vmem:[%s73 + $0x8] sm:$0xf]
    %v643 = vld [vmem:[%s73 + $0xc] sm:$0xf]
    %v644 = vld [vmem:[%s73 + $0x10] sm:$0xf]
    %v645 = vld [vmem:[%s73 + $0x14] sm:$0xf]
    %v646 = vld [vmem:[%s73 + $0x18] sm:$0xf]
    %v647 = vld [vmem:[%s73 + $0x1c] sm:$0xf]
    %v648 = vld [vmem:[%s73 + $0x20] sm:$0xf]
    %v649 = vld [vmem:[%s73 + $0x24] sm:$0xf]
    %v650 = vld [vmem:[%s73 + $0x28] sm:$0xf]
    %v651 = vld [vmem:[%s73 + $0x2c] sm:$0xf]
    %v652 = vld [vmem:[%s73 + $0x30] sm:$0xf]
    %v653 = vld [vmem:[%s73 + $0x34] sm:$0xf]
    %v654 = vld [vmem:[%s73 + $0x38] sm:$0xf]
    %v655 = vld [vmem:[%s73 + $0x3c] sm:$0xf]
    %v656 = vld [vmem:[#allocation7] sm:$0xf]
    %v657 = vld [vmem:[#allocation7 + $0x4] sm:$0xf]
    %v658 = vld [vmem:[#allocation7 + $0x8] sm:$0xf]
    %v659 = vld [vmem:[#allocation7 + $0xc] sm:$0xf]
    %v660 = vld [vmem:[#allocation7 + $0x10] sm:$0xf]
    %v661 = vld [vmem:[#allocation7 + $0x14] sm:$0xf]
    %v662 = vld [vmem:[#allocation7 + $0x18] sm:$0xf]
    %v663 = vld [vmem:[#allocation7 + $0x1c] sm:$0xf]
    %v664 = vld [vmem:[#allocation7 + $0x20] sm:$0xf]
    %v665 = vld [vmem:[#allocation7 + $0x24] sm:$0xf]
    %v666 = vld [vmem:[#allocation7 + $0x28] sm:$0xf]
    %v667 = vld [vmem:[#allocation7 + $0x2c] sm:$0xf]
    %v668 = vld [vmem:[#allocation7 + $0x30] sm:$0xf]
    %v669 = vld [vmem:[#allocation7 + $0x34] sm:$0xf]
    %v670 = vld [vmem:[#allocation7 + $0x38] sm:$0xf]
    %v671 = vld [vmem:[#allocation7 + $0x3c] sm:$0xf]
    %v672 = vld [vmem:[%s77] sm:$0x1]
    %v673 = vld [vmem:[#allocation8] sm:$0xf]
    %v674 = vld [vmem:[#allocation8 + $0x4] sm:$0xf]
    %v675 = vld [vmem:[#allocation8 + $0x8] sm:$0xf]
    %v676 = vld [vmem:[#allocation8 + $0xc] sm:$0xf]
    %v677 = vld [vmem:[#allocation8 + $0x10] sm:$0xf]
    %v678 = vld [vmem:[#allocation8 + $0x14] sm:$0xf]
    %v679 = vld [vmem:[#allocation8 + $0x18] sm:$0xf]
    %v680 = vld [vmem:[#allocation8 + $0x1c] sm:$0xf]
    %v681 = vld [vmem:[#allocation8 + $0x20] sm:$0xf]
    %v682 = vld [vmem:[#allocation8 + $0x24] sm:$0xf]
    %v683 = vld [vmem:[#allocation8 + $0x28] sm:$0xf]
    %v684 = vld [vmem:[#allocation8 + $0x2c] sm:$0xf]
    %v685 = vld [vmem:[#allocation8 + $0x30] sm:$0xf]
    %v686 = vld [vmem:[#allocation8 + $0x34] sm:$0xf]
    %v687 = vld [vmem:[#allocation8 + $0x38] sm:$0xf]
    %v688 = vld [vmem:[#allocation8 + $0x3c] sm:$0xf]
    %v689 = vld [vmem:[%s81] sm:$0x1]
    %v690 = vld [vmem:[#allocation10] sm:$0xf]
    %v691 = vld [vmem:[#allocation10 + $0x4] sm:$0xf]
    %v692 = vld [vmem:[#allocation10 + $0x8] sm:$0xf]
    %v693 = vld [vmem:[#allocation10 + $0xc] sm:$0xf]
    %v694 = vld [vmem:[#allocation10 + $0x10] sm:$0xf]
    %v695 = vld [vmem:[#allocation10 + $0x14] sm:$0xf]
    %v696 = vld [vmem:[#allocation10 + $0x18] sm:$0xf]
    %v697 = vld [vmem:[#allocation10 + $0x1c] sm:$0xf]
    %v698 = vld [vmem:[#allocation10 + $0x20] sm:$0xf]
    %v699 = vld [vmem:[#allocation10 + $0x24] sm:$0xf]
    %v700 = vld [vmem:[#allocation10 + $0x28] sm:$0xf]
    %v701 = vld [vmem:[#allocation10 + $0x2c] sm:$0xf]
    %v702 = vld [vmem:[#allocation10 + $0x30] sm:$0xf]
    %v703 = vld [vmem:[#allocation10 + $0x34] sm:$0xf]
    %v704 = vld [vmem:[#allocation10 + $0x38] sm:$0xf]
    %v705 = vld [vmem:[#allocation10 + $0x3c] sm:$0xf]
    %v706 = vld [vmem:[#allocation11] sm:$0xf]
    %v707 = vld [vmem:[#allocation11 + $0x4] sm:$0xf]
    %v708 = vld [vmem:[#allocation11 + $0x8] sm:$0xf]
    %v709 = vld [vmem:[#allocation11 + $0xc] sm:$0xf]
    %v710 = vld [vmem:[#allocation11 + $0x10] sm:$0xf]
    %v711 = vld [vmem:[#allocation11 + $0x14] sm:$0xf]
    %v712 = vld [vmem:[#allocation11 + $0x18] sm:$0xf]
    %v713 = vld [vmem:[#allocation11 + $0x1c] sm:$0xf]
    %v714 = vld [vmem:[#allocation11 + $0x20] sm:$0xf]
    %v715 = vld [vmem:[#allocation11 + $0x24] sm:$0xf]
    %v716 = vld [vmem:[#allocation11 + $0x28] sm:$0xf]
    %v717 = vld [vmem:[#allocation11 + $0x2c] sm:$0xf]
    %v718 = vld [vmem:[#allocation11 + $0x30] sm:$0xf]
    %v719 = vld [vmem:[#allocation11 + $0x34] sm:$0xf]
    %v720 = vld [vmem:[#allocation11 + $0x38] sm:$0xf]
    %v721 = vld [vmem:[#allocation11 + $0x3c] sm:$0xf]
    %v722 = vld [vmem:[#allocation13] sm:$0xf]
    %v723 = vld [vmem:[#allocation13 + $0x4] sm:$0xf]
    %v724 = vld [vmem:[#allocation13 + $0x8] sm:$0xf]
    %v725 = vld [vmem:[#allocation13 + $0xc] sm:$0xf]
    %v726 = vld [vmem:[#allocation13 + $0x10] sm:$0xf]
    %v727 = vld [vmem:[#allocation13 + $0x14] sm:$0xf]
    %v728 = vld [vmem:[#allocation13 + $0x18] sm:$0xf]
    %v729 = vld [vmem:[#allocation13 + $0x1c] sm:$0xf]
    %v730 = vld [vmem:[#allocation13 + $0x20] sm:$0xf]
    %v731 = vld [vmem:[#allocation13 + $0x24] sm:$0xf]
    %v732 = vld [vmem:[#allocation13 + $0x28] sm:$0xf]
    %v733 = vld [vmem:[#allocation13 + $0x2c] sm:$0xf]
    %v734 = vld [vmem:[#allocation13 + $0x30] sm:$0xf]
    %v735 = vld [vmem:[#allocation13 + $0x34] sm:$0xf]
    %v736 = vld [vmem:[#allocation13 + $0x38] sm:$0xf]
    %v737 = vld [vmem:[#allocation13 + $0x3c] sm:$0xf]
    %v738 = vld [vmem:[%s89] sm:$0x1]
    %v739 = vld [vmem:[#allocation14] sm:$0xf]
    %v740 = vld [vmem:[#allocation14 + $0x4] sm:$0xf]
    %v741 = vld [vmem:[#allocation14 + $0x8] sm:$0xf]
    %v742 = vld [vmem:[#allocation14 + $0xc] sm:$0xf]
    %v743 = vld [vmem:[#allocation14 + $0x10] sm:$0xf]
    %v744 = vld [vmem:[#allocation14 + $0x14] sm:$0xf]
    %v745 = vld [vmem:[#allocation14 + $0x18] sm:$0xf]
    %v746 = vld [vmem:[#allocation14 + $0x1c] sm:$0xf]
    %v747 = vld [vmem:[#allocation14 + $0x20] sm:$0xf]
    %v748 = vld [vmem:[#allocation14 + $0x24] sm:$0xf]
    %v749 = vld [vmem:[#allocation14 + $0x28] sm:$0xf]
    %v750 = vld [vmem:[#allocation14 + $0x2c] sm:$0xf]
    %v751 = vld [vmem:[#allocation14 + $0x30] sm:$0xf]
    %v752 = vld [vmem:[#allocation14 + $0x34] sm:$0xf]
    %v753 = vld [vmem:[#allocation14 + $0x38] sm:$0xf]
    %v754 = vld [vmem:[#allocation14 + $0x3c] sm:$0xf]
    %v755 = vld [vmem:[%s93] sm:$0x1]
    %v756 = vld [vmem:[#allocation16] sm:$0xf]
    %v757 = vld [vmem:[#allocation16 + $0x4] sm:$0xf]
    %v758 = vld [vmem:[#allocation16 + $0x8] sm:$0xf]
    %v759 = vld [vmem:[#allocation16 + $0xc] sm:$0xf]
    %v760 = vld [vmem:[#allocation16 + $0x10] sm:$0xf]
    %v761 = vld [vmem:[#allocation16 + $0x14] sm:$0xf]
    %v762 = vld [vmem:[#allocation16 + $0x18] sm:$0xf]
    %v763 = vld [vmem:[#allocation16 + $0x1c] sm:$0xf]
    %v764 = vld [vmem:[#allocation16 + $0x20] sm:$0xf]
    %v765 = vld [vmem:[#allocation16 + $0x24] sm:$0xf]
    %v766 = vld [vmem:[#allocation16 + $0x28] sm:$0xf]
    %v767 = vld [vmem:[#allocation16 + $0x2c] sm:$0xf]
    %v768 = vld [vmem:[#allocation16 + $0x30] sm:$0xf]
    %v769 = vld [vmem:[#allocation16 + $0x34] sm:$0xf]
    %v770 = vld [vmem:[#allocation16 + $0x38] sm:$0xf]
    %v771 = vld [vmem:[#allocation16 + $0x3c] sm:$0xf]
    %v772 = vld [vmem:[%s97] sm:$0x1]
    %v773 = vld [vmem:[#allocation17] sm:$0xf]
    %v774 = vld [vmem:[#allocation17 + $0x4] sm:$0xf]
    %v775 = vld [vmem:[#allocation17 + $0x8] sm:$0xf]
    %v776 = vld [vmem:[#allocation17 + $0xc] sm:$0xf]
    %v777 = vld [vmem:[#allocation17 + $0x10] sm:$0xf]
    %v778 = vld [vmem:[#allocation17 + $0x14] sm:$0xf]
    %v779 = vld [vmem:[#allocation17 + $0x18] sm:$0xf]
    %v780 = vld [vmem:[#allocation17 + $0x1c] sm:$0xf]
    %v781 = vld [vmem:[#allocation17 + $0x20] sm:$0xf]
    %v782 = vld [vmem:[#allocation17 + $0x24] sm:$0xf]
    %v783 = vld [vmem:[#allocation17 + $0x28] sm:$0xf]
    %v784 = vld [vmem:[#allocation17 + $0x2c] sm:$0xf]
    %v785 = vld [vmem:[#allocation17 + $0x30] sm:$0xf]
    %v786 = vld [vmem:[#allocation17 + $0x34] sm:$0xf]
    %v787 = vld [vmem:[#allocation17 + $0x38] sm:$0xf]
    %v788 = vld [vmem:[#allocation17 + $0x3c] sm:$0xf]
    %v789 = vld [vmem:[%s101] sm:$0x1]
    %v790 = vld [vmem:[%s103] sm:$0xf]
    %v791 = vld [vmem:[%s103 + $0x4] sm:$0xf]
    %v792 = vld [vmem:[%s103 + $0x8] sm:$0xf]
    %v793 = vld [vmem:[%s103 + $0xc] sm:$0xf]
    %v794 = vld [vmem:[%s103 + $0x10] sm:$0xf]
    %v795 = vld [vmem:[%s103 + $0x14] sm:$0xf]
    %v796 = vld [vmem:[%s103 + $0x18] sm:$0xf]
    %v797 = vld [vmem:[%s103 + $0x1c] sm:$0xf]
    %v798 = vld [vmem:[%s103 + $0x20] sm:$0xf]
    %v799 = vld [vmem:[%s103 + $0x24] sm:$0xf]
    %v800 = vld [vmem:[%s103 + $0x28] sm:$0xf]
    %v801 = vld [vmem:[%s103 + $0x2c] sm:$0xf]
    %v802 = vld [vmem:[%s103 + $0x30] sm:$0xf]
    %v803 = vld [vmem:[%s103 + $0x34] sm:$0xf]
    %v804 = vld [vmem:[%s103 + $0x38] sm:$0xf]
    %v805 = vld [vmem:[%s103 + $0x3c] sm:$0xf]
    %v806 = vld [vmem:[%s103 + $0x40] sm:$0xf]
    %v807 = vld [vmem:[%s103 + $0x44] sm:$0xf]
    %v808 = vld [vmem:[%s103 + $0x48] sm:$0xf]
    %v809 = vld [vmem:[%s103 + $0x4c] sm:$0xf]
    %v810 = vld [vmem:[%s103 + $0x50] sm:$0xf]
    %v811 = vld [vmem:[%s103 + $0x54] sm:$0xf]
    %v812 = vld [vmem:[%s103 + $0x58] sm:$0xf]
    %v813 = vld [vmem:[%s103 + $0x5c] sm:$0xf]
    %v814 = vld [vmem:[%s103 + $0x60] sm:$0xf]
    %v815 = vld [vmem:[%s103 + $0x64] sm:$0xf]
    %v816 = vld [vmem:[%s103 + $0x68] sm:$0xf]
    %v817 = vld [vmem:[%s103 + $0x6c] sm:$0xf]
    %v818 = vld [vmem:[%s103 + $0x70] sm:$0xf]
    %v819 = vld [vmem:[%s103 + $0x74] sm:$0xf]
    %v820 = vld [vmem:[%s103 + $0x78] sm:$0xf]
    %v821 = vld [vmem:[%s103 + $0x7c] sm:$0xf]
    %v822 = vld [vmem:[%s105] sm:$0x1]
    %v823 = vld [vmem:[%s107] sm:$0xf]
    %v824 = vld [vmem:[%s107 + $0x4] sm:$0xf]
    %v825 = vld [vmem:[%s107 + $0x8] sm:$0xf]
    %v826 = vld [vmem:[%s107 + $0xc] sm:$0xf]
    %v827 = vld [vmem:[%s107 + $0x10] sm:$0xf]
    %v828 = vld [vmem:[%s107 + $0x14] sm:$0xf]
    %v829 = vld [vmem:[%s107 + $0x18] sm:$0xf]
    %v830 = vld [vmem:[%s107 + $0x1c] sm:$0xf]
    %v831 = vld [vmem:[%s107 + $0x20] sm:$0xf]
    %v832 = vld [vmem:[%s107 + $0x24] sm:$0xf]
    %v833 = vld [vmem:[%s107 + $0x28] sm:$0xf]
    %v834 = vld [vmem:[%s107 + $0x2c] sm:$0xf]
    %v835 = vld [vmem:[%s107 + $0x30] sm:$0xf]
    %v836 = vld [vmem:[%s107 + $0x34] sm:$0xf]
    %v837 = vld [vmem:[%s107 + $0x38] sm:$0xf]
    %v838 = vld [vmem:[%s107 + $0x3c] sm:$0xf]
    %v839 = vld [vmem:[%s109] sm:$0x1]
    %v840 = vld [vmem:[%s1] sm:$0xff]
    %v841 = vld [vmem:[%s1 + $0x8] sm:$0xff]
    %v842 = vld [vmem:[%s3] sm:$0xff]
    %v843 = vld [vmem:[%s3 + $0x8] sm:$0xff]
    %v844 = vld [vmem:[%s3 + $0x10] sm:$0xff]
    %v845 = vld [vmem:[%s3 + $0x18] sm:$0xff]
    %v846 = vld [vmem:[%s5] sm:$0x3]
    %v847 = vld [vmem:[%s7] sm:$0xff]
    %v848 = vld [vmem:[%s7 + $0x8] sm:$0xff]
    %v849 = vld [vmem:[%s7 + $0x10] sm:$0xff]
    %v850 = vld [vmem:[%s7 + $0x18] sm:$0xff]
    %v851 = vld [vmem:[%s9] sm:$0xff]
    %v852 = vld [vmem:[%s9 + $0x8] sm:$0xff]
    %v853 = vld [vmem:[%s9 + $0x10] sm:$0xff]
    %v854 = vld [vmem:[%s9 + $0x18] sm:$0xff]
    %v855 = vld [vmem:[%s11] sm:$0xff]
    %v856 = vld [vmem:[%s11 + $0x8] sm:$0xff]
    %v857 = vld [vmem:[%s11 + $0x10] sm:$0xff]
    %v858 = vld [vmem:[%s11 + $0x18] sm:$0xff]
    %v859 = vld [vmem:[%s13] sm:$0xff]
    %v860 = vld [vmem:[%s13 + $0x8] sm:$0xff]
    %v861 = vlaneseq
    %v862 = vand.u32 %v861, 127
    %863 = vset.pattern.permute.xlu0 0
    %864 = vperm.xlu0 %863, %v847
    %v865 = vpop.permute.xlu0 %864
    %866 = vset.pattern.permute.xlu0 0
    %867 = vperm.xlu0 %866, %v848
    %v868 = vpop.permute.xlu0 %867
    %869 = vset.pattern.permute.xlu0 0
    %870 = vperm.xlu0 %869, %v849
    %v871 = vpop.permute.xlu0 %870
    %872 = vset.pattern.permute.xlu0 0
    %873 = vperm.xlu0 %872, %v850
    %v874 = vpop.permute.xlu0 %873
    %vm875 = vcmp.eq.s32.totalorder %v862, %v865
    %vm876 = vcmp.eq.s32.totalorder %v862, %v868
    %vm877 = vcmp.eq.s32.totalorder %v862, %v871
    %vm878 = vcmp.eq.s32.totalorder %v862, %v874
    %v879 = vsel %vm875, 1, 0
    %v880 = vsel %vm876, 1, 0
    %v881 = vsel %vm877, 1, 0
    %v882 = vsel %vm878, 1, 0
    %v883 = vcvt.s32.f32 %v879
    %v884 = vcvt.s32.f32 %v880
    %v885 = vcvt.s32.f32 %v881
    %v886 = vcvt.s32.f32 %v882
    %v887 = vpack.c.bf16 %v884, %v883
    %v888 = vpack.c.bf16 %v886, %v885
    %889 = vset.pattern.permute.xlu0 0
    %890 = vperm.xlu0 %889, %v851
    %v891 = vpop.permute.xlu0 %890
    %892 = vset.pattern.permute.xlu0 0
    %893 = vperm.xlu0 %892, %v852
    %v894 = vpop.permute.xlu0 %893
    %895 = vset.pattern.permute.xlu0 0
    %896 = vperm.xlu0 %895, %v853
    %v897 = vpop.permute.xlu0 %896
    %898 = vset.pattern.permute.xlu0 0
    %899 = vperm.xlu0 %898, %v854
    %v900 = vpop.permute.xlu0 %899
    %vm901 = vcmp.eq.s32.totalorder %v862, %v891
    %vm902 = vcmp.eq.s32.totalorder %v862, %v894
    %vm903 = vcmp.eq.s32.totalorder %v862, %v897
    %vm904 = vcmp.eq.s32.totalorder %v862, %v900
    %v905 = vsel %vm901, 1, 0
    %v906 = vsel %vm902, 1, 0
    %v907 = vsel %vm903, 1, 0
    %v908 = vsel %vm904, 1, 0
    %v909 = vcvt.s32.f32 %v905
    %v910 = vcvt.s32.f32 %v906
    %v911 = vcvt.s32.f32 %v907
    %v912 = vcvt.s32.f32 %v908
    %v913 = vpack.c.bf16 %v910, %v909
    %v914 = vpack.c.bf16 %v912, %v911
    %915 = vset.pattern.permute.xlu0 0
    %916 = vperm.xlu0 %915, %v855
    %v917 = vpop.permute.xlu0 %916
    %918 = vset.pattern.permute.xlu0 0
    %919 = vperm.xlu0 %918, %v856
    %v920 = vpop.permute.xlu0 %919
    %921 = vset.pattern.permute.xlu0 0
    %922 = vperm.xlu0 %921, %v857
    %v923 = vpop.permute.xlu0 %922
    %924 = vset.pattern.permute.xlu0 0
    %925 = vperm.xlu0 %924, %v858
    %v926 = vpop.permute.xlu0 %925
    %vm927 = vcmp.eq.s32.totalorder %v862, %v917
    %vm928 = vcmp.eq.s32.totalorder %v862, %v920
    %vm929 = vcmp.eq.s32.totalorder %v862, %v923
    %vm930 = vcmp.eq.s32.totalorder %v862, %v926
    %v931 = vsel %vm927, 1, 0
    %v932 = vsel %vm928, 1, 0
    %v933 = vsel %vm929, 1, 0
    %v934 = vsel %vm930, 1, 0
    %v935 = vcvt.s32.f32 %v931
    %v936 = vcvt.s32.f32 %v932
    %v937 = vcvt.s32.f32 %v933
    %v938 = vcvt.s32.f32 %v934
    %v939 = vpack.c.bf16 %v936, %v935
    %v940 = vpack.c.bf16 %v938, %v937
    %941 = vset.pattern.permute.xlu0 0
    %942 = vperm.xlu0 %941, %v859
    %v943 = vpop.permute.xlu0 %942
    %944 = vset.pattern.permute.xlu0 0
    %945 = vperm.xlu0 %944, %v860
    %v946 = vpop.permute.xlu0 %945
    %vm947 = vcmp.eq.s32.totalorder %v862, %v943
    %vm948 = vcmp.eq.s32.totalorder %v862, %v946
    %v949 = vsel %vm947, 1, 0
    %v950 = vsel %vm948, 1, 0
    %v951 = vcvt.s32.f32 %v949
    %v952 = vcvt.s32.f32 %v950
    %v953 = vpack.c.bf16 %v952, %v951
    %954 = vxpose.xlu0.c.b16.start [1/8] %v887, 128
    %955 = vxpose.xlu0.c.b16.cont [2/8] %v888, 128
    %956 = vxpose.xlu0.c.b16.cont [3/8] 0, 128
    %957 = vxpose.xlu0.c.b16.cont [4/8] 0, 128
    %958 = vxpose.xlu0.c.b16.cont [5/8] 0, 128
    %959 = vxpose.xlu0.c.b16.cont [6/8] 0, 128
    %960 = vxpose.xlu0.c.b16.cont [7/8] 0, 128
    %961 = vxpose.xlu0.c.b16.end [8/8] 0, 128
    %v962 = vpop.trf.xlu0
    %v963 = vpop.trf.xlu0
    %v964 = vpop.trf.xlu0
    %v965 = vpop.trf.xlu0
    %v966 = vpop.trf.xlu0
    %v967 = vpop.trf.xlu0
    %v968 = vpop.trf.xlu0
    %v969 = vpop.trf.xlu0
    %vm970 = vcmask 261120
    %v972 = vsel %vm970, %v962, 0
    %974 = vmatprep.subr.bf16.mxu0 0
    %975 = vmatpush1.bf16.msra.mxu0 1065369472
    %976 = vmatprep.subr.bf16.mxu0 0
    %977 = vmatpush1.bf16.msra.mxu0 1065369472
    %978 = vmatprep.subr.bf16.mxu0 0
    %979 = vmatpush1.bf16.msra.mxu0 0
    %980 = vmatprep.subr.bf16.mxu0 0
    %981 = vmatpush1.bf16.msra.mxu0 0
    %982 = vmatprep.subr.bf16.mxu0 0
    %983 = vmatpush1.bf16.msra.mxu0 0
    %984 = vmatprep.subr.bf16.mxu0 0
    %985 = vmatpush1.bf16.msra.mxu0 0
    %986 = vmatprep.subr.bf16.mxu0 0
    %987 = vmatpush1.bf16.msra.mxu0 0
    %988 = vmatprep.subr.bf16.mxu0 0
    %989 = vmatpush1.bf16.msra.mxu0 0
    %990 = vmatprep.subr.bf16.mxu0 0
    %991 = vmatpush1.bf16.msra.mxu0 0
    %992 = vmatprep.subr.bf16.mxu0 0
    %993 = vmatpush1.bf16.msra.mxu0 0
    %994 = vmatprep.subr.bf16.mxu0 0
    %995 = vmatpush1.bf16.msra.mxu0 0
    %996 = vmatprep.subr.bf16.mxu0 0
    %997 = vmatpush1.bf16.msra.mxu0 0
    %998 = vmatprep.subr.bf16.mxu0 0
    %999 = vmatpush1.bf16.msra.mxu0 0
    %1000 = vmatprep.subr.bf16.mxu0 0
    %1001 = vmatpush1.bf16.msra.mxu0 0
    %1002 = vmatprep.subr.bf16.mxu0 0
    %1003 = vmatpush1.bf16.msra.mxu0 0
    %1004 = vmatprep.subr.bf16.mxu0 0
    %1005 = vmatpush1.bf16.msra.mxu0 0
    %1006 = vmatprep.mubr.bf16.mxu0 0
    %1007 = vmatmul.mubr.bf16.gmra.mrb[0].mxu0 %v972
    %v1008 = vpop.f32.mrb[0].mxu0
    %v1009 = vadd.f32 0.0, %v1008
    %v1010 = vpop.f32.mrb[0].mxu0
    %v1011 = vpop.f32.mrb[0].mxu0
    %v1012 = vadd.f32 0.0, %v1011
    %v1013 = vpop.f32.mrb[0].mxu0
    %1014 = vdwg.mxu0
    %v1015 = vmax.f32 %v1009, 1.0
    %v1016 = vmax.f32 %v1012, 1.0
    %v1017 = vrcp.pop %v1015
    %v1018 = vmul.f32 1.0, %v1017
    %v1019 = vrcp.pop %v1016
    %v1020 = vmul.f32 1.0, %v1019
    %1021 = vxpose.xlu0.c.b16.start [1/8] %v953, 128
    %1022 = vxpose.xlu0.c.b16.cont [2/8] 0, 128
    %1023 = vxpose.xlu0.c.b16.cont [3/8] 0, 128
    %1024 = vxpose.xlu0.c.b16.cont [4/8] 0, 128
    %1025 = vxpose.xlu0.c.b16.cont [5/8] 0, 128
    %1026 = vxpose.xlu0.c.b16.cont [6/8] 0, 128
    %1027 = vxpose.xlu0.c.b16.cont [7/8] 0, 128
    %1028 = vxpose.xlu0.c.b16.end [8/8] 0, 128
    %v1029 = vpop.trf.xlu0
    %v1030 = vpop.trf.xlu0
    %v1031 = vpop.trf.xlu0
    %v1032 = vpop.trf.xlu0
    %v1033 = vpop.trf.xlu0
    %v1034 = vpop.trf.xlu0
    %v1035 = vpop.trf.xlu0
    %v1036 = vpop.trf.xlu0
    %vm1037 = vcmask 130048
    %v1039 = vsel %vm1037, %v1029, 0
    %1041 = vmatprep.subr.bf16.mxu0 0
    %1042 = vmatpush1.bf16.msra.mxu0 1065369472
    %1043 = vmatprep.subr.bf16.mxu0 0
    %1044 = vmatpush1.bf16.msra.mxu0 0
    %1045 = vmatprep.subr.bf16.mxu0 0
    %1046 = vmatpush1.bf16.msra.mxu0 0
    %1047 = vmatprep.subr.bf16.mxu0 0
    %1048 = vmatpush1.bf16.msra.mxu0 0
    %1049 = vmatprep.subr.bf16.mxu0 0
    %1050 = vmatpush1.bf16.msra.mxu0 0
    %1051 = vmatprep.subr.bf16.mxu0 0
    %1052 = vmatpush1.bf16.msra.mxu0 0
    %1053 = vmatprep.subr.bf16.mxu0 0
    %1054 = vmatpush1.bf16.msra.mxu0 0
    %1055 = vmatprep.subr.bf16.mxu0 0
    %1056 = vmatpush1.bf16.msra.mxu0 0
    %1057 = vmatprep.subr.bf16.mxu0 0
    %1058 = vmatpush1.bf16.msra.mxu0 0
    %1059 = vmatprep.subr.bf16.mxu0 0
    %1060 = vmatpush1.bf16.msra.mxu0 0
    %1061 = vmatprep.subr.bf16.mxu0 0
    %1062 = vmatpush1.bf16.msra.mxu0 0
    %1063 = vmatprep.subr.bf16.mxu0 0
    %1064 = vmatpush1.bf16.msra.mxu0 0
    %1065 = vmatprep.subr.bf16.mxu0 0
    %1066 = vmatpush1.bf16.msra.mxu0 0
    %1067 = vmatprep.subr.bf16.mxu0 0
    %1068 = vmatpush1.bf16.msra.mxu0 0
    %1069 = vmatprep.subr.bf16.mxu0 0
    %1070 = vmatpush1.bf16.msra.mxu0 0
    %1071 = vmatprep.subr.bf16.mxu0 0
    %1072 = vmatpush1.bf16.msra.mxu0 0
    %1073 = vmatprep.mubr.bf16.mxu0 0
    %1074 = vmatmul.mubr.bf16.gmra.mrb[0].mxu0 %v1039
    %v1075 = vpop.f32.mrb[0].mxu0
    %v1076 = vadd.f32 0.0, %v1075
    %v1077 = vpop.f32.mrb[0].mxu0
    %v1078 = vpop.f32.mrb[0].mxu0
    %v1079 = vpop.f32.mrb[0].mxu0
    %1080 = vdwg.mxu0
    %1081 = vxpose.xlu0.c.b16.start [1/8] %v939, 128
    %1082 = vxpose.xlu0.c.b16.cont [2/8] %v940, 128
    %1083 = vxpose.xlu0.c.b16.cont [3/8] 0, 128
    %1084 = vxpose.xlu0.c.b16.cont [4/8] 0, 128
    %1085 = vxpose.xlu0.c.b16.cont [5/8] 0, 128
    %1086 = vxpose.xlu0.c.b16.cont [6/8] 0, 128
    %1087 = vxpose.xlu0.c.b16.cont [7/8] 0, 128
    %1088 = vxpose.xlu0.c.b16.end [8/8] 0, 128
    %v1089 = vpop.trf.xlu0
    %v1090 = vpop.trf.xlu0
    %v1091 = vpop.trf.xlu0
    %v1092 = vpop.trf.xlu0
    %v1093 = vpop.trf.xlu0
    %v1094 = vpop.trf.xlu0
    %v1095 = vpop.trf.xlu0
    %v1096 = vpop.trf.xlu0
    %v1098 = vsel %vm970, %v1089, 0
    %1100 = vmatprep.subr.bf16.mxu0 0
    %1101 = vmatpush1.bf16.msra.mxu0 1065369472
    %1102 = vmatprep.subr.bf16.mxu0 0
    %1103 = vmatpush1.bf16.msra.mxu0 1065369472
    %1104 = vmatprep.subr.bf16.mxu0 0
    %1105 = vmatpush1.bf16.msra.mxu0 0
    %1106 = vmatprep.subr.bf16.mxu0 0
    %1107 = vmatpush1.bf16.msra.mxu0 0
    %1108 = vmatprep.subr.bf16.mxu0 0
    %1109 = vmatpush1.bf16.msra.mxu0 0
    %1110 = vmatprep.subr.bf16.mxu0 0
    %1111 = vmatpush1.bf16.msra.mxu0 0
    %1112 = vmatprep.subr.bf16.mxu0 0
    %1113 = vmatpush1.bf16.msra.mxu0 0
    %1114 = vmatprep.subr.bf16.mxu0 0
    %1115 = vmatpush1.bf16.msra.mxu0 0
    %1116 = vmatprep.subr.bf16.mxu0 0
    %1117 = vmatpush1.bf16.msra.mxu0 0
    %1118 = vmatprep.subr.bf16.mxu0 0
    %1119 = vmatpush1.bf16.msra.mxu0 0
    %1120 = vmatprep.subr.bf16.mxu0 0
    %1121 = vmatpush1.bf16.msra.mxu0 0
    %1122 = vmatprep.subr.bf16.mxu0 0
    %1123 = vmatpush1.bf16.msra.mxu0 0
    %1124 = vmatprep.subr.bf16.mxu0 0
    %1125 = vmatpush1.bf16.msra.mxu0 0
    %1126 = vmatprep.subr.bf16.mxu0 0
    %1127 = vmatpush1.bf16.msra.mxu0 0
    %1128 = vmatprep.subr.bf16.mxu0 0
    %1129 = vmatpush1.bf16.msra.mxu0 0
    %1130 = vmatprep.subr.bf16.mxu0 0
    %1131 = vmatpush1.bf16.msra.mxu0 0
    %1132 = vmatprep.mubr.bf16.mxu0 0
    %1133 = vmatmul.mubr.bf16.gmra.mrb[0].mxu0 %v1098
    %v1134 = vpop.f32.mrb[0].mxu0
    %v1135 = vadd.f32 0.0, %v1134
    %v1136 = vpop.f32.mrb[0].mxu0
    %v1137 = vpop.f32.mrb[0].mxu0
    %v1138 = vpop.f32.mrb[0].mxu0
    %1139 = vdwg.mxu0
    %v1140 = vmax.f32 %v1076, 1.0
    %v1141 = vrcp.pop %v1140
    %v1142 = vmul.f32 1.0, %v1141
    %v1143 = vmax.f32 %v1135, 1.0
    %v1144 = vrcp.pop %v1143
    %v1145 = vmul.f32 1.0, %v1144
    %v1146 = vpack.c.bf16 %v841, %v840
    %v1148 = vlaneseq
    %v1149 = vshrl.u32 %v1148, 7
    %v1150 = vsub.s32 0, %v1149
    %v1151 = vrot.slane %v370, %v1150
    %vm1153 = vcmask 48128
    %v1155 = vsel %vm1153, %v1146, 0
    %vm1157 = vcmask 1042432
    %v1159 = vsel %vm1157, %v369, 0
    %1161 = vmatprep.subr.bf16.mxu0 0
    %1162 = vmatpush1.bf16.msra.mxu0 %v1159
    %1163 = vmatprep.subr.bf16.mxu0 0
    %1164 = vmatpush1.bf16.msra.mxu0 0
    %1165 = vmatprep.subr.bf16.mxu0 0
    %1166 = vmatpush1.bf16.msra.mxu0 0
    %1167 = vmatprep.subr.bf16.mxu0 0
    %1168 = vmatpush1.bf16.msra.mxu0 0
    %1169 = vmatprep.subr.bf16.mxu0 0
    %1170 = vmatpush1.bf16.msra.mxu0 0
    %1171 = vmatprep.subr.bf16.mxu0 0
    %1172 = vmatpush1.bf16.msra.mxu0 0
    %1173 = vmatprep.subr.bf16.mxu0 0
    %1174 = vmatpush1.bf16.msra.mxu0 0
    %1175 = vmatprep.subr.bf16.mxu0 0
    %1176 = vmatpush1.bf16.msra.mxu0 0
    %1177 = vmatprep.subr.bf16.mxu0 0
    %1178 = vmatpush1.bf16.msra.mxu0 0
    %1179 = vmatprep.subr.bf16.mxu0 0
    %1180 = vmatpush1.bf16.msra.mxu0 0
    %1181 = vmatprep.subr.bf16.mxu0 0
    %1182 = vmatpush1.bf16.msra.mxu0 0
    %1183 = vmatprep.subr.bf16.mxu0 0
    %1184 = vmatpush1.bf16.msra.mxu0 0
    %1185 = vmatprep.subr.bf16.mxu0 0
    %1186 = vmatpush1.bf16.msra.mxu0 0
    %1187 = vmatprep.subr.bf16.mxu0 0
    %1188 = vmatpush1.bf16.msra.mxu0 0
    %1189 = vmatprep.subr.bf16.mxu0 0
    %1190 = vmatpush1.bf16.msra.mxu0 0
    %1191 = vmatprep.subr.bf16.mxu0 0
    %1192 = vmatpush1.bf16.msra.mxu0 0
    %1193 = vmatprep.mubr.bf16.mxu0 0
    %1194 = vmatmul.mubr.bf16.gmra.mrb[0].mxu0 %v1155
    %v1195 = vpop.f32.mrb[0].mxu0
    %v1196 = vadd.f32 %v1151, %v1195
    %v1197 = vpop.f32.mrb[0].mxu0
    %v1198 = vpop.f32.mrb[0].mxu0
    %v1199 = vadd.f32 %v1151, %v1198
    %v1200 = vpop.f32.mrb[0].mxu0
    %1201 = vdwg.mxu0
    %v1202 = vmax.f32 %v1196, 0.0
    %v1203 = vmax.f32 %v1199, 0.0
    %v1204 = vpack.c.bf16 %v1203, %v1202
    %v1206 = vlaneseq
    %v1207 = vshrl.u32 %v1206, 7
    %v1208 = vsub.s32 0, %v1207
    %v1209 = vrot.slane %v387, %v1208
    %v1227 = vunpack.c.l.b16 %v371
    %v1228 = vunpack.c.l.b16 %v372
    %v1229 = vunpack.c.l.b16 %v373
    %v1230 = vunpack.c.l.b16 %v374
    %v1231 = vunpack.c.l.b16 %v375
    %v1232 = vunpack.c.l.b16 %v376
    %v1233 = vunpack.c.l.b16 %v377
    %v1234 = vunpack.c.l.b16 %v378
    %v1235 = vunpack.c.l.b16 %v379
    %v1236 = vunpack.c.l.b16 %v380
    %v1237 = vunpack.c.l.b16 %v381
    %v1238 = vunpack.c.l.b16 %v382
    %v1239 = vunpack.c.l.b16 %v383
    %v1240 = vunpack.c.l.b16 %v384
    %v1241 = vunpack.c.l.b16 %v385
    %v1242 = vunpack.c.l.b16 %v386
    %v1243 = vpack.c.b16 %v1228, %v1227
    %v1244 = vpack.c.b16 %v1230, %v1229
    %v1245 = vpack.c.b16 %v1232, %v1231
    %v1246 = vpack.c.b16 %v1234, %v1233
    %v1247 = vpack.c.b16 %v1236, %v1235
    %v1248 = vpack.c.b16 %v1238, %v1237
    %v1249 = vpack.c.b16 %v1240, %v1239
    %v1250 = vpack.c.b16 %v1242, %v1241
    %1259 = vmatprep.subr.bf16.mxu0 0
    %1260 = vmatpush1.bf16.msra.mxu0 %v1243
    %1261 = vmatprep.subr.bf16.mxu0 0
    %1262 = vmatpush1.bf16.msra.mxu0 %v1244
    %1263 = vmatprep.subr.bf16.mxu0 0
    %1264 = vmatpush1.bf16.msra.mxu0 %v1245
    %1265 = vmatprep.subr.bf16.mxu0 0
    %1266 = vmatpush1.bf16.msra.mxu0 %v1246
    %1267 = vmatprep.subr.bf16.mxu0 0
    %1268 = vmatpush1.bf16.msra.mxu0 %v1247
    %1269 = vmatprep.subr.bf16.mxu0 0
    %1270 = vmatpush1.bf16.msra.mxu0 %v1248
    %1271 = vmatprep.subr.bf16.mxu0 0
    %1272 = vmatpush1.bf16.msra.mxu0 %v1249
    %1273 = vmatprep.subr.bf16.mxu0 0
    %1274 = vmatpush1.bf16.msra.mxu0 %v1250
    %1275 = vmatprep.subr.bf16.mxu0 0
    %1276 = vmatpush1.bf16.msra.mxu0 0
    %1277 = vmatprep.subr.bf16.mxu0 0
    %1278 = vmatpush1.bf16.msra.mxu0 0
    %1279 = vmatprep.subr.bf16.mxu0 0
    %1280 = vmatpush1.bf16.msra.mxu0 0
    %1281 = vmatprep.subr.bf16.mxu0 0
    %1282 = vmatpush1.bf16.msra.mxu0 0
    %1283 = vmatprep.subr.bf16.mxu0 0
    %1284 = vmatpush1.bf16.msra.mxu0 0
    %1285 = vmatprep.subr.bf16.mxu0 0
    %1286 = vmatpush1.bf16.msra.mxu0 0
    %1287 = vmatprep.subr.bf16.mxu0 0
    %1288 = vmatpush1.bf16.msra.mxu0 0
    %1289 = vmatprep.subr.bf16.mxu0 0
    %1290 = vmatpush1.bf16.msra.mxu0 0
    %1291 = vmatprep.mubr.bf16.mxu0 0
    %1292 = vmatmul.mubr.bf16.gmra.mrb[0].mxu0 %v1204
    %v1293 = vpop.f32.mrb[0].mxu0
    %v1294 = vadd.f32 %v1209, %v1293
    %v1295 = vpop.f32.mrb[0].mxu0
    %v1296 = vpop.f32.mrb[0].mxu0
    %v1297 = vadd.f32 %v1209, %v1296
    %v1298 = vpop.f32.mrb[0].mxu0
    %1299 = vdwg.mxu0
    %v1300 = vpack.c.bf16 %v843, %v842
    %v1301 = vpack.c.bf16 %v845, %v844
    %v1303 = vlaneseq
    %v1304 = vshrl.u32 %v1303, 7
    %v1305 = vsub.s32 0, %v1304
    %v1306 = vrot.slane %v389, %v1305
    %vm1308 = vcmask 31744
    %v1310 = vsel %vm1308, %v1300, 0
    %v1313 = vsel %vm1308, %v1301, 0
    %vm1315 = vcmask 1041408
    %v1317 = vsel %vm1315, %v388, 0
    %1319 = vmatprep.subr.bf16.mxu0 0
    %1320 = vmatpush1.bf16.msra.mxu0 %v1317
    %1321 = vmatprep.subr.bf16.mxu0 0
    %1322 = vmatpush1.bf16.msra.mxu0 0
    %1323 = vmatprep.subr.bf16.mxu0 0
    %1324 = vmatpush1.bf16.msra.mxu0 0
    %1325 = vmatprep.subr.bf16.mxu0 0
    %1326 = vmatpush1.bf16.msra.mxu0 0
    %1327 = vmatprep.subr.bf16.mxu0 0
    %1328 = vmatpush1.bf16.msra.mxu0 0
    %1329 = vmatprep.subr.bf16.mxu0 0
    %1330 = vmatpush1.bf16.msra.mxu0 0
    %1331 = vmatprep.subr.bf16.mxu0 0
    %1332 = vmatpush1.bf16.msra.mxu0 0
    %1333 = vmatprep.subr.bf16.mxu0 0
    %1334 = vmatpush1.bf16.msra.mxu0 0
    %1335 = vmatprep.subr.bf16.mxu0 0
    %1336 = vmatpush1.bf16.msra.mxu0 0
    %1337 = vmatprep.subr.bf16.mxu0 0
    %1338 = vmatpush1.bf16.msra.mxu0 0
    %1339 = vmatprep.subr.bf16.mxu0 0
    %1340 = vmatpush1.bf16.msra.mxu0 0
    %1341 = vmatprep.subr.bf16.mxu0 0
    %1342 = vmatpush1.bf16.msra.mxu0 0
    %1343 = vmatprep.subr.bf16.mxu0 0
    %1344 = vmatpush1.bf16.msra.mxu0 0
    %1345 = vmatprep.subr.bf16.mxu0 0
    %1346 = vmatpush1.bf16.msra.mxu0 0
    %1347 = vmatprep.subr.bf16.mxu0 0
    %1348 = vmatpush1.bf16.msra.mxu0 0
    %1349 = vmatprep.subr.bf16.mxu0 0
    %1350 = vmatpush1.bf16.msra.mxu0 0
    %1351 = vmatprep.mubr.bf16.mxu0 0
    %1352 = vmatmul.mubr.bf16.gmra.mrb[0].mxu0 %v1310
    %v1353 = vpop.f32.mrb[0].mxu0
    %v1354 = vadd.f32 %v1306, %v1353
    %v1355 = vpop.f32.mrb[0].mxu0
    %v1356 = vpop.f32.mrb[0].mxu0
    %v1357 = vadd.f32 %v1306, %v1356
    %v1358 = vpop.f32.mrb[0].mxu0
    %1359 = vmatprep.mubr.bf16.mxu0 0
    %1360 = vmatmul.mubr.bf16.gmra.mrb[0].mxu0 %v1313
    %v1361 = vpop.f32.mrb[0].mxu0
    %v1362 = vadd.f32 %v1306, %v1361
    %v1363 = vpop.f32.mrb[0].mxu0
    %v1364 = vpop.f32.mrb[0].mxu0
    %v1365 = vadd.f32 %v1306, %v1364
    %v1366 = vpop.f32.mrb[0].mxu0
    %1367 = vdwg.mxu0
    %v1368 = vmax.f32 %v1354, 0.0
    %v1369 = vmax.f32 %v1357, 0.0
    %v1370 = vmax.f32 %v1362, 0.0
    %v1371 = vmax.f32 %v1365, 0.0
    %v1372 = vpack.c.bf16 %v1369, %v1368
    %v1373 = vpack.c.bf16 %v1371, %v1370
    %v1375 = vlaneseq
    %v1376 = vshrl.u32 %v1375, 7
    %v1377 = vsub.s32 0, %v1376
    %v1378 = vrot.slane %v406, %v1377
    %v1396 = vunpack.c.l.b16 %v390
    %v1397 = vunpack.c.l.b16 %v391
    %v1398 = vunpack.c.l.b16 %v392
    %v1399 = vunpack.c.l.b16 %v393
    %v1400 = vunpack.c.l.b16 %v394
    %v1401 = vunpack.c.l.b16 %v395
    %v1402 = vunpack.c.l.b16 %v396
    %v1403 = vunpack.c.l.b16 %v397
    %v1404 = vunpack.c.l.b16 %v398
    %v1405 = vunpack.c.l.b16 %v399
    %v1406 = vunpack.c.l.b16 %v400
    %v1407 = vunpack.c.l.b16 %v401
    %v1408 = vunpack.c.l.b16 %v402
    %v1409 = vunpack.c.l.b16 %v403
    %v1410 = vunpack.c.l.b16 %v404
    %v1411 = vunpack.c.l.b16 %v405
    %v1412 = vpack.c.b16 %v1397, %v1396
    %v1413 = vpack.c.b16 %v1399, %v1398
    %v1414 = vpack.c.b16 %v1401, %v1400
    %v1415 = vpack.c.b16 %v1403, %v1402
    %v1416 = vpack.c.b16 %v1405, %v1404
    %v1417 = vpack.c.b16 %v1407, %v1406
    %v1418 = vpack.c.b16 %v1409, %v1408
    %v1419 = vpack.c.b16 %v1411, %v1410
    %1428 = vmatprep.subr.bf16.mxu0 0
    %1429 = vmatpush1.bf16.msra.mxu0 %v1412
    %1430 = vmatprep.subr.bf16.mxu0 0
    %1431 = vmatpush1.bf16.msra.mxu0 %v1413
    %1432 = vmatprep.subr.bf16.mxu0 0
    %1433 = vmatpush1.bf16.msra.mxu0 %v1414
    %1434 = vmatprep.subr.bf16.mxu0 0
    %1435 = vmatpush1.bf16.msra.mxu0 %v1415
    %1436 = vmatprep.subr.bf16.mxu0 0
    %1437 = vmatpush1.bf16.msra.mxu0 %v1416
    %1438 = vmatprep.subr.bf16.mxu0 0
    %1439 = vmatpush1.bf16.msra.mxu0 %v1417
    %1440 = vmatprep.subr.bf16.mxu0 0
    %1441 = vmatpush1.bf16.msra.mxu0 %v1418
    %1442 = vmatprep.subr.bf16.mxu0 0
    %1443 = vmatpush1.bf16.msra.mxu0 %v1419
    %1444 = vmatprep.subr.bf16.mxu0 0
    %1445 = vmatpush1.bf16.msra.mxu0 0
    %1446 = vmatprep.subr.bf16.mxu0 0
    %1447 = vmatpush1.bf16.msra.mxu0 0
    %1448 = vmatprep.subr.bf16.mxu0 0
    %1449 = vmatpush1.bf16.msra.mxu0 0
    %1450 = vmatprep.subr.bf16.mxu0 0
    %1451 = vmatpush1.bf16.msra.mxu0 0
    %1452 = vmatprep.subr.bf16.mxu0 0
    %1453 = vmatpush1.bf16.msra.mxu0 0
    %1454 = vmatprep.subr.bf16.mxu0 0
    %1455 = vmatpush1.bf16.msra.mxu0 0
    %1456 = vmatprep.subr.bf16.mxu0 0
    %1457 = vmatpush1.bf16.msra.mxu0 0
    %1458 = vmatprep.subr.bf16.mxu0 0
    %1459 = vmatpush1.bf16.msra.mxu0 0
    %1460 = vmatprep.mubr.bf16.mxu0 0
    %1461 = vmatmul.mubr.bf16.gmra.mrb[0].mxu0 %v1372
    %v1462 = vpop.f32.mrb[0].mxu0
    %v1463 = vadd.f32 %v1378, %v1462
    %v1464 = vpop.f32.mrb[0].mxu0
    %v1465 = vpop.f32.mrb[0].mxu0
    %v1466 = vadd.f32 %v1378, %v1465
    %v1467 = vpop.f32.mrb[0].mxu0
    %1468 = vmatprep.mubr.bf16.mxu0 0
    %1469 = vmatmul.mubr.bf16.gmra.mrb[0].mxu0 %v1373
    %v1470 = vpop.f32.mrb[0].mxu0
    %v1471 = vadd.f32 %v1378, %v1470
    %v1472 = vpop.f32.mrb[0].mxu0
    %v1473 = vpop.f32.mrb[0].mxu0
    %v1474 = vadd.f32 %v1378, %v1473
    %v1475 = vpop.f32.mrb[0].mxu0
    %1476 = vdwg.mxu0
    %v1477 = vpack.c.bf16 %v846, %v846
    %v1479 = vlaneseq
    %v1480 = vshrl.u32 %v1479, 7
    %v1481 = vsub.s32 0, %v1480
    %v1482 = vrot.slane %v408, %v1481
    %v1483 = vlaneseq
    %v1484 = vshrl.u32 %v1483, 7
    %v1485 = vsub.s32 1, %v1484
    %v1486 = vrot.slane %v408, %v1485
    %v1490 = vunpack.c.l.b16 %v407
    %v1491 = vunpack.c.h.b16 %v407
    %v1492 = vpack.c.b16 %v1490, %v1490
    %v1493 = vpack.c.b16 %v1491, %v1491
    %vm1494 = vcmask 39936
    %v1496 = vsel %vm1494, %v1477, 0
    %v1498 = vsel %vm1315, 4294967295, 65535
    %v1499 = vsel %vm1157, %v1498, 0
    %v1501 = vand.u32 %v1492, %v1499
    %v1504 = vand.u32 %v1493, %v1499
    %1506 = vmatprep.subr.bf16.mxu0 %v1504
    %1507 = vmatpush1.bf16.msra.mxu0 %v1501
    %1508 = vmatprep.subr.bf16.mxu0 0
    %1509 = vmatpush1.bf16.msra.mxu0 0
    %1510 = vmatprep.subr.bf16.mxu0 0
    %1511 = vmatpush1.bf16.msra.mxu0 0
    %1512 = vmatprep.subr.bf16.mxu0 0
    %1513 = vmatpush1.bf16.msra.mxu0 0
    %1514 = vmatprep.subr.bf16.mxu0 0
    %1515 = vmatpush1.bf16.msra.mxu0 0
    %1516 = vmatprep.subr.bf16.mxu0 0
    %1517 = vmatpush1.bf16.msra.mxu0 0
    %1518 = vmatprep.subr.bf16.mxu0 0
    %1519 = vmatpush1.bf16.msra.mxu0 0
    %1520 = vmatprep.subr.bf16.mxu0 0
    %1521 = vmatpush1.bf16.msra.mxu0 0
    %1522 = vmatprep.subr.bf16.mxu0 0
    %1523 = vmatpush1.bf16.msra.mxu0 0
    %1524 = vmatprep.subr.bf16.mxu0 0
    %1525 = vmatpush1.bf16.msra.mxu0 0
    %1526 = vmatprep.subr.bf16.mxu0 0
    %1527 = vmatpush1.bf16.msra.mxu0 0
    %1528 = vmatprep.subr.bf16.mxu0 0
    %1529 = vmatpush1.bf16.msra.mxu0 0
    %1530 = vmatprep.subr.bf16.mxu0 0
    %1531 = vmatpush1.bf16.msra.mxu0 0
    %1532 = vmatprep.subr.bf16.mxu0 0
    %1533 = vmatpush1.bf16.msra.mxu0 0
    %1534 = vmatprep.subr.bf16.mxu0 0
    %1535 = vmatpush1.bf16.msra.mxu0 0
    %1536 = vmatprep.subr.bf16.mxu0 0
    %1537 = vmatpush1.bf16.msra.mxu0 0
    %1538 = vmatprep.mubr.bf16.mxu0 0
    %1539 = vmatmul.mubr.bf16.gmra.mrb[0].mxu0 %v1496
    %v1540 = vpop.f32.mrb[0].mxu0
    %v1541 = vadd.f32 %v1482, %v1540
    %v1542 = vpop.f32.mrb[0].mxu0
    %v1543 = vadd.f32 %v1486, %v1542
    %v1544 = vpop.f32.mrb[0].mxu0
    %v1545 = vpop.f32.mrb[0].mxu0
    %1546 = vdwg.mxu0
    %v1547 = vmax.f32 %v1541, 0.0
    %v1548 = vmax.f32 %v1543, 0.0
    %v1549 = vpack.c.bf16 %v1547, %v1547
    %v1550 = vpack.c.bf16 %v1548, %v1548
    %v1552 = vlaneseq
    %v1553 = vshrl.u32 %v1552, 7
    %v1554 = vsub.s32 0, %v1553
    %v1555 = vrot.slane %v441, %v1554
    %v1556 = vlaneseq
    %v1557 = vshrl.u32 %v1556, 7
    %v1558 = vsub.s32 1, %v1557
    %v1559 = vrot.slane %v441, %v1558
    %v1594 = vunpack.c.l.b16 %v409
    %v1595 = vunpack.c.h.b16 %v409
    %v1596 = vunpack.c.l.b16 %v410
    %v1597 = vunpack.c.h.b16 %v410
    %v1598 = vunpack.c.l.b16 %v411
    %v1599 = vunpack.c.h.b16 %v411
    %v1600 = vunpack.c.l.b16 %v412
    %v1601 = vunpack.c.h.b16 %v412
    %v1602 = vunpack.c.l.b16 %v413
    %v1603 = vunpack.c.h.b16 %v413
    %v1604 = vunpack.c.l.b16 %v414
    %v1605 = vunpack.c.h.b16 %v414
    %v1606 = vunpack.c.l.b16 %v415
    %v1607 = vunpack.c.h.b16 %v415
    %v1608 = vunpack.c.l.b16 %v416
    %v1609 = vunpack.c.h.b16 %v416
    %v1610 = vunpack.c.l.b16 %v417
    %v1611 = vunpack.c.h.b16 %v417
    %v1612 = vunpack.c.l.b16 %v418
    %v1613 = vunpack.c.h.b16 %v418
    %v1614 = vunpack.c.l.b16 %v419
    %v1615 = vunpack.c.h.b16 %v419
    %v1616 = vunpack.c.l.b16 %v420
    %v1617 = vunpack.c.h.b16 %v420
    %v1618 = vunpack.c.l.b16 %v421
    %v1619 = vunpack.c.h.b16 %v421
    %v1620 = vunpack.c.l.b16 %v422
    %v1621 = vunpack.c.h.b16 %v422
    %v1622 = vunpack.c.l.b16 %v423
    %v1623 = vunpack.c.h.b16 %v423
    %v1624 = vunpack.c.l.b16 %v424
    %v1625 = vunpack.c.h.b16 %v424
    %v1626 = vunpack.c.l.b16 %v425
    %v1627 = vunpack.c.h.b16 %v425
    %v1628 = vunpack.c.l.b16 %v426
    %v1629 = vunpack.c.h.b16 %v426
    %v1630 = vunpack.c.l.b16 %v427
    %v1631 = vunpack.c.h.b16 %v427
    %v1632 = vunpack.c.l.b16 %v428
    %v1633 = vunpack.c.h.b16 %v428
    %v1634 = vunpack.c.l.b16 %v429
    %v1635 = vunpack.c.h.b16 %v429
    %v1636 = vunpack.c.l.b16 %v430
    %v1637 = vunpack.c.h.b16 %v430
    %v1638 = vunpack.c.l.b16 %v431
    %v1639 = vunpack.c.h.b16 %v431
    %v1640 = vunpack.c.l.b16 %v432
    %v1641 = vunpack.c.h.b16 %v432
    %v1642 = vunpack.c.l.b16 %v433
    %v1643 = vunpack.c.h.b16 %v433
    %v1644 = vunpack.c.l.b16 %v434
    %v1645 = vunpack.c.h.b16 %v434
    %v1646 = vunpack.c.l.b16 %v435
    %v1647 = vunpack.c.h.b16 %v435
    %v1648 = vunpack.c.l.b16 %v436
    %v1649 = vunpack.c.h.b16 %v436
    %v1650 = vunpack.c.l.b16 %v437
    %v1651 = vunpack.c.h.b16 %v437
    %v1652 = vunpack.c.l.b16 %v438
    %v1653 = vunpack.c.h.b16 %v438
    %v1654 = vunpack.c.l.b16 %v439
    %v1655 = vunpack.c.h.b16 %v439
    %v1656 = vunpack.c.l.b16 %v440
    %v1657 = vunpack.c.h.b16 %v440
    %v1658 = vpack.c.b16 %v1596, %v1594
    %v1659 = vpack.c.b16 %v1597, %v1595
    %v1660 = vpack.c.b16 %v1600, %v1598
    %v1661 = vpack.c.b16 %v1601, %v1599
    %v1662 = vpack.c.b16 %v1604, %v1602
    %v1663 = vpack.c.b16 %v1605, %v1603
    %v1664 = vpack.c.b16 %v1608, %v1606
    %v1665 = vpack.c.b16 %v1609, %v1607
    %v1666 = vpack.c.b16 %v1612, %v1610
    %v1667 = vpack.c.b16 %v1613, %v1611
    %v1668 = vpack.c.b16 %v1616, %v1614
    %v1669 = vpack.c.b16 %v1617, %v1615
    %v1670 = vpack.c.b16 %v1620, %v1618
    %v1671 = vpack.c.b16 %v1621, %v1619
    %v1672 = vpack.c.b16 %v1624, %v1622
    %v1673 = vpack.c.b16 %v1625, %v1623
    %v1674 = vpack.c.b16 %v1628, %v1626
    %v1675 = vpack.c.b16 %v1629, %v1627
    %v1676 = vpack.c.b16 %v1632, %v1630
    %v1677 = vpack.c.b16 %v1633, %v1631
    %v1678 = vpack.c.b16 %v1636, %v1634
    %v1679 = vpack.c.b16 %v1637, %v1635
    %v1680 = vpack.c.b16 %v1640, %v1638
    %v1681 = vpack.c.b16 %v1641, %v1639
    %v1682 = vpack.c.b16 %v1644, %v1642
    %v1683 = vpack.c.b16 %v1645, %v1643
    %v1684 = vpack.c.b16 %v1648, %v1646
    %v1685 = vpack.c.b16 %v1649, %v1647
    %v1686 = vpack.c.b16 %v1652, %v1650
    %v1687 = vpack.c.b16 %v1653, %v1651
    %v1688 = vpack.c.b16 %v1656, %v1654
    %v1689 = vpack.c.b16 %v1657, %v1655
    %1722 = vmatprep.subr.bf16.mxu0 %v1659
    %1723 = vmatpush1.bf16.msra.mxu0 %v1658
    %1724 = vmatprep.subr.bf16.mxu0 %v1661
    %1725 = vmatpush1.bf16.msra.mxu0 %v1660
    %1726 = vmatprep.subr.bf16.mxu0 %v1663
    %1727 = vmatpush1.bf16.msra.mxu0 %v1662
    %1728 = vmatprep.subr.bf16.mxu0 %v1665
    %1729 = vmatpush1.bf16.msra.mxu0 %v1664
    %1730 = vmatprep.subr.bf16.mxu0 %v1667
    %1731 = vmatpush1.bf16.msra.mxu0 %v1666
    %1732 = vmatprep.subr.bf16.mxu0 %v1669
    %1733 = vmatpush1.bf16.msra.mxu0 %v1668
    %1734 = vmatprep.subr.bf16.mxu0 %v1671
    %1735 = vmatpush1.bf16.msra.mxu0 %v1670
    %1736 = vmatprep.subr.bf16.mxu0 %v1673
    %1737 = vmatpush1.bf16.msra.mxu0 %v1672
    %1738 = vmatprep.subr.bf16.mxu0 %v1675
    %1739 = vmatpush1.bf16.msra.mxu0 %v1674
    %1740 = vmatprep.subr.bf16.mxu0 %v1677
    %1741 = vmatpush1.bf16.msra.mxu0 %v1676
    %1742 = vmatprep.subr.bf16.mxu0 %v1679
    %1743 = vmatpush1.bf16.msra.mxu0 %v1678
    %1744 = vmatprep.subr.bf16.mxu0 %v1681
    %1745 = vmatpush1.bf16.msra.mxu0 %v1680
    %1746 = vmatprep.subr.bf16.mxu0 %v1683
    %1747 = vmatpush1.bf16.msra.mxu0 %v1682
    %1748 = vmatprep.subr.bf16.mxu0 %v1685
    %1749 = vmatpush1.bf16.msra.mxu0 %v1684
    %1750 = vmatprep.subr.bf16.mxu0 %v1687
    %1751 = vmatpush1.bf16.msra.mxu0 %v1686
    %1752 = vmatprep.subr.bf16.mxu0 %v1689
    %1753 = vmatpush1.bf16.msra.mxu0 %v1688
    %1754 = vmatprep.mubr.bf16.mxu0 %v1550
    %1755 = vmatmul.mubr.bf16.gmra.mrb[0].mxu0 %v1549
    %v1756 = vpop.f32.mrb[0].mxu0
    %v1757 = vadd.f32 %v1555, %v1756
    %v1758 = vpop.f32.mrb[0].mxu0
    %v1759 = vadd.f32 %v1559, %v1758
    %v1760 = vpop.f32.mrb[0].mxu0
    %v1761 = vpop.f32.mrb[0].mxu0
    %1762 = vdwg.mxu0
    %v1763 = vpack.c.bf16 %v1757, %v1757
    %v1764 = vpack.c.bf16 %v1759, %v1759
    %v1766 = vlaneseq
    %v1767 = vshrl.u32 %v1766, 7
    %v1768 = vsub.s32 0, %v1767
    %v1769 = vrot.slane %v474, %v1768
    %v1803 = vunpack.c.l.b16 %v442
    %v1804 = vunpack.c.l.b16 %v443
    %v1805 = vunpack.c.l.b16 %v444
    %v1806 = vunpack.c.l.b16 %v445
    %v1807 = vunpack.c.l.b16 %v446
    %v1808 = vunpack.c.l.b16 %v447
    %v1809 = vunpack.c.l.b16 %v448
    %v1810 = vunpack.c.l.b16 %v449
    %v1811 = vunpack.c.l.b16 %v450
    %v1812 = vunpack.c.l.b16 %v451
    %v1813 = vunpack.c.l.b16 %v452
    %v1814 = vunpack.c.l.b16 %v453
    %v1815 = vunpack.c.l.b16 %v454
    %v1816 = vunpack.c.l.b16 %v455
    %v1817 = vunpack.c.l.b16 %v456
    %v1818 = vunpack.c.l.b16 %v457
    %v1819 = vunpack.c.l.b16 %v458
    %v1820 = vunpack.c.l.b16 %v459
    %v1821 = vunpack.c.l.b16 %v460
    %v1822 = vunpack.c.l.b16 %v461
    %v1823 = vunpack.c.l.b16 %v462
    %v1824 = vunpack.c.l.b16 %v463
    %v1825 = vunpack.c.l.b16 %v464
    %v1826 = vunpack.c.l.b16 %v465
    %v1827 = vunpack.c.l.b16 %v466
    %v1828 = vunpack.c.l.b16 %v467
    %v1829 = vunpack.c.l.b16 %v468
    %v1830 = vunpack.c.l.b16 %v469
    %v1831 = vunpack.c.l.b16 %v470
    %v1832 = vunpack.c.l.b16 %v471
    %v1833 = vunpack.c.l.b16 %v472
    %v1834 = vunpack.c.l.b16 %v473
    %v1835 = vpack.c.b16 %v1804, %v1803
    %v1836 = vpack.c.b16 %v1806, %v1805
    %v1837 = vpack.c.b16 %v1808, %v1807
    %v1838 = vpack.c.b16 %v1810, %v1809
    %v1839 = vpack.c.b16 %v1812, %v1811
    %v1840 = vpack.c.b16 %v1814, %v1813
    %v1841 = vpack.c.b16 %v1816, %v1815
    %v1842 = vpack.c.b16 %v1818, %v1817
    %v1843 = vpack.c.b16 %v1820, %v1819
    %v1844 = vpack.c.b16 %v1822, %v1821
    %v1845 = vpack.c.b16 %v1824, %v1823
    %v1846 = vpack.c.b16 %v1826, %v1825
    %v1847 = vpack.c.b16 %v1828, %v1827
    %v1848 = vpack.c.b16 %v1830, %v1829
    %v1849 = vpack.c.b16 %v1832, %v1831
    %v1850 = vpack.c.b16 %v1834, %v1833
    %1867 = vmatprep.subr.bf16.mxu0 0
    %1868 = vmatpush1.bf16.msra.mxu0 %v1835
    %1869 = vmatprep.subr.bf16.mxu0 0
    %1870 = vmatpush1.bf16.msra.mxu0 %v1836
    %1871 = vmatprep.subr.bf16.mxu0 0
    %1872 = vmatpush1.bf16.msra.mxu0 %v1837
    %1873 = vmatprep.subr.bf16.mxu0 0
    %1874 = vmatpush1.bf16.msra.mxu0 %v1838
    %1875 = vmatprep.subr.bf16.mxu0 0
    %1876 = vmatpush1.bf16.msra.mxu0 %v1839
    %1877 = vmatprep.subr.bf16.mxu0 0
    %1878 = vmatpush1.bf16.msra.mxu0 %v1840
    %1879 = vmatprep.subr.bf16.mxu0 0
    %1880 = vmatpush1.bf16.msra.mxu0 %v1841
    %1881 = vmatprep.subr.bf16.mxu0 0
    %1882 = vmatpush1.bf16.msra.mxu0 %v1842
    %1883 = vmatprep.subr.bf16.mxu0 0
    %1884 = vmatpush1.bf16.msra.mxu0 %v1843
    %1885 = vmatprep.subr.bf16.mxu0 0
    %1886 = vmatpush1.bf16.msra.mxu0 %v1844
    %1887 = vmatprep.subr.bf16.mxu0 0
    %1888 = vmatpush1.bf16.msra.mxu0 %v1845
    %1889 = vmatprep.subr.bf16.mxu0 0
    %1890 = vmatpush1.bf16.msra.mxu0 %v1846
    %1891 = vmatprep.subr.bf16.mxu0 0
    %1892 = vmatpush1.bf16.msra.mxu0 %v1847
    %1893 = vmatprep.subr.bf16.mxu0 0
    %1894 = vmatpush1.bf16.msra.mxu0 %v1848
    %1895 = vmatprep.subr.bf16.mxu0 0
    %1896 = vmatpush1.bf16.msra.mxu0 %v1849
    %1897 = vmatprep.subr.bf16.mxu0 0
    %1898 = vmatpush1.bf16.msra.mxu0 %v1850
    %1899 = vmatprep.mubr.bf16.mxu0 %v1764
    %1900 = vmatmul.mubr.bf16.gmra.mrb[0].mxu0 %v1763
    %v1901 = vpop.f32.mrb[0].mxu0
    %v1902 = vadd.f32 %v1769, %v1901
    %v1903 = vpop.f32.mrb[0].mxu0
    %v1904 = vpop.f32.mrb[0].mxu0
    %v1905 = vpop.f32.mrb[0].mxu0
    %1906 = vdwg.mxu0
    %v1907 = vmax.f32 %v1902, 0.0
    %v1908 = vpack.c.bf16 %v1907, %v1907
    %v1910 = vlaneseq
    %v1911 = vshrl.u32 %v1910, 7
    %v1912 = vsub.s32 0, %v1911
    %v1913 = vrot.slane %v491, %v1912
    %v1931 = vunpack.c.l.b16 %v475
    %v1932 = vunpack.c.l.b16 %v476
    %v1933 = vunpack.c.l.b16 %v477
    %v1934 = vunpack.c.l.b16 %v478
    %v1935 = vunpack.c.l.b16 %v479
    %v1936 = vunpack.c.l.b16 %v480
    %v1937 = vunpack.c.l.b16 %v481
    %v1938 = vunpack.c.l.b16 %v482
    %v1939 = vunpack.c.l.b16 %v483
    %v1940 = vunpack.c.l.b16 %v484
    %v1941 = vunpack.c.l.b16 %v485
    %v1942 = vunpack.c.l.b16 %v486
    %v1943 = vunpack.c.l.b16 %v487
    %v1944 = vunpack.c.l.b16 %v488
    %v1945 = vunpack.c.l.b16 %v489
    %v1946 = vunpack.c.l.b16 %v490
    %v1947 = vpack.c.b16 %v1932, %v1931
    %v1948 = vpack.c.b16 %v1934, %v1933
    %v1949 = vpack.c.b16 %v1936, %v1935
    %v1950 = vpack.c.b16 %v1938, %v1937
    %v1951 = vpack.c.b16 %v1940, %v1939
    %v1952 = vpack.c.b16 %v1942, %v1941
    %v1953 = vpack.c.b16 %v1944, %v1943
    %v1954 = vpack.c.b16 %v1946, %v1945
    %1963 = vmatprep.subr.bf16.mxu0 0
    %1964 = vmatpush1.bf16.msra.mxu0 %v1947
    %1965 = vmatprep.subr.bf16.mxu0 0
    %1966 = vmatpush1.bf16.msra.mxu0 %v1948
    %1967 = vmatprep.subr.bf16.mxu0 0
    %1968 = vmatpush1.bf16.msra.mxu0 %v1949
    %1969 = vmatprep.subr.bf16.mxu0 0
    %1970 = vmatpush1.bf16.msra.mxu0 %v1950
    %1971 = vmatprep.subr.bf16.mxu0 0
    %1972 = vmatpush1.bf16.msra.mxu0 %v1951
    %1973 = vmatprep.subr.bf16.mxu0 0
    %1974 = vmatpush1.bf16.msra.mxu0 %v1952
    %1975 = vmatprep.subr.bf16.mxu0 0
    %1976 = vmatpush1.bf16.msra.mxu0 %v1953
    %1977 = vmatprep.subr.bf16.mxu0 0
    %1978 = vmatpush1.bf16.msra.mxu0 %v1954
    %1979 = vmatprep.subr.bf16.mxu0 0
    %1980 = vmatpush1.bf16.msra.mxu0 0
    %1981 = vmatprep.subr.bf16.mxu0 0
    %1982 = vmatpush1.bf16.msra.mxu0 0
    %1983 = vmatprep.subr.bf16.mxu0 0
    %1984 = vmatpush1.bf16.msra.mxu0 0
    %1985 = vmatprep.subr.bf16.mxu0 0
    %1986 = vmatpush1.bf16.msra.mxu0 0
    %1987 = vmatprep.subr.bf16.mxu0 0
    %1988 = vmatpush1.bf16.msra.mxu0 0
    %1989 = vmatprep.subr.bf16.mxu0 0
    %1990 = vmatpush1.bf16.msra.mxu0 0
    %1991 = vmatprep.subr.bf16.mxu0 0
    %1992 = vmatpush1.bf16.msra.mxu0 0
    %1993 = vmatprep.subr.bf16.mxu0 0
    %1994 = vmatpush1.bf16.msra.mxu0 0
    %1995 = vmatprep.mubr.bf16.mxu0 0
    %1996 = vmatmul.mubr.bf16.gmra.mrb[0].mxu0 %v1908
    %v1997 = vpop.f32.mrb[0].mxu0
    %v1998 = vadd.f32 %v1913, %v1997
    %v1999 = vpop.f32.mrb[0].mxu0
    %v2000 = vpop.f32.mrb[0].mxu0
    %v2001 = vpop.f32.mrb[0].mxu0
    %2002 = vdwg.mxu0
    %v2003 = vpack.c.bf16 %v1998, %v1998
    %v2004 = vpack.c.bf16 %v1297, %v1294
    %v2005 = vpack.c.bf16 %v1466, %v1463
    %v2006 = vpack.c.bf16 %v1474, %v1471
    %v2023 = vunpack.c.l.b16 %v492
    %v2024 = vunpack.c.h.b16 %v492
    %v2025 = vunpack.c.l.b16 %v493
    %v2026 = vunpack.c.h.b16 %v493
    %v2027 = vunpack.c.l.b16 %v494
    %v2028 = vunpack.c.h.b16 %v494
    %v2029 = vunpack.c.l.b16 %v495
    %v2030 = vunpack.c.h.b16 %v495
    %v2031 = vunpack.c.l.b16 %v496
    %v2032 = vunpack.c.h.b16 %v496
    %v2033 = vunpack.c.l.b16 %v497
    %v2034 = vunpack.c.h.b16 %v497
    %v2035 = vunpack.c.l.b16 %v498
    %v2036 = vunpack.c.h.b16 %v498
    %v2037 = vunpack.c.l.b16 %v499
    %v2038 = vunpack.c.h.b16 %v499
    %v2039 = vunpack.c.l.b16 %v500
    %v2040 = vunpack.c.h.b16 %v500
    %v2041 = vunpack.c.l.b16 %v501
    %v2042 = vunpack.c.h.b16 %v501
    %v2043 = vunpack.c.l.b16 %v502
    %v2044 = vunpack.c.h.b16 %v502
    %v2045 = vunpack.c.l.b16 %v503
    %v2046 = vunpack.c.h.b16 %v503
    %v2047 = vunpack.c.l.b16 %v504
    %v2048 = vunpack.c.h.b16 %v504
    %v2049 = vunpack.c.l.b16 %v505
    %v2050 = vunpack.c.h.b16 %v505
    %v2051 = vunpack.c.l.b16 %v506
    %v2052 = vunpack.c.h.b16 %v506
    %v2053 = vunpack.c.l.b16 %v507
    %v2054 = vunpack.c.h.b16 %v507
    %v2055 = vpack.c.b16 %v2025, %v2023
    %v2056 = vpack.c.b16 %v2026, %v2024
    %v2057 = vpack.c.b16 %v2029, %v2027
    %v2058 = vpack.c.b16 %v2030, %v2028
    %v2059 = vpack.c.b16 %v2033, %v2031
    %v2060 = vpack.c.b16 %v2034, %v2032
    %v2061 = vpack.c.b16 %v2037, %v2035
    %v2062 = vpack.c.b16 %v2038, %v2036
    %v2063 = vpack.c.b16 %v2041, %v2039
    %v2064 = vpack.c.b16 %v2042, %v2040
    %v2065 = vpack.c.b16 %v2045, %v2043
    %v2066 = vpack.c.b16 %v2046, %v2044
    %v2067 = vpack.c.b16 %v2049, %v2047
    %v2068 = vpack.c.b16 %v2050, %v2048
    %v2069 = vpack.c.b16 %v2053, %v2051
    %v2070 = vpack.c.b16 %v2054, %v2052
    %2087 = vmatprep.subr.bf16.mxu0 %v2056
    %2088 = vmatpush1.bf16.msra.mxu0 %v2055
    %2089 = vmatprep.subr.bf16.mxu0 %v2058
    %2090 = vmatpush1.bf16.msra.mxu0 %v2057
    %2091 = vmatprep.subr.bf16.mxu0 %v2060
    %2092 = vmatpush1.bf16.msra.mxu0 %v2059
    %2093 = vmatprep.subr.bf16.mxu0 %v2062
    %2094 = vmatpush1.bf16.msra.mxu0 %v2061
    %2095 = vmatprep.subr.bf16.mxu0 %v2064
    %2096 = vmatpush1.bf16.msra.mxu0 %v2063
    %2097 = vmatprep.subr.bf16.mxu0 %v2066
    %2098 = vmatpush1.bf16.msra.mxu0 %v2065
    %2099 = vmatprep.subr.bf16.mxu0 %v2068
    %2100 = vmatpush1.bf16.msra.mxu0 %v2067
    %2101 = vmatprep.subr.bf16.mxu0 %v2070
    %2102 = vmatpush1.bf16.msra.mxu0 %v2069
    %2103 = vmatprep.subr.bf16.mxu0 0
    %2104 = vmatpush1.bf16.msra.mxu0 0
    %2105 = vmatprep.subr.bf16.mxu0 0
    %2106 = vmatpush1.bf16.msra.mxu0 0
    %2107 = vmatprep.subr.bf16.mxu0 0
    %2108 = vmatpush1.bf16.msra.mxu0 0
    %2109 = vmatprep.subr.bf16.mxu0 0
    %2110 = vmatpush1.bf16.msra.mxu0 0
    %2111 = vmatprep.subr.bf16.mxu0 0
    %2112 = vmatpush1.bf16.msra.mxu0 0
    %2113 = vmatprep.subr.bf16.mxu0 0
    %2114 = vmatpush1.bf16.msra.mxu0 0
    %2115 = vmatprep.subr.bf16.mxu0 0
    %2116 = vmatpush1.bf16.msra.mxu0 0
    %2117 = vmatprep.subr.bf16.mxu0 0
    %2118 = vmatpush1.bf16.msra.mxu0 0
    %2119 = vmatprep.mubr.bf16.mxu0 0
    %2120 = vmatmul.mubr.bf16.gmra.mrb[0].mxu0 %v2004
    %v2121 = vpop.f32.mrb[0].mxu0
    %v2122 = vadd.f32 0.0, %v2121
    %v2123 = vpop.f32.mrb[0].mxu0
    %v2124 = vadd.f32 0.0, %v2123
    %v2125 = vpop.f32.mrb[0].mxu0
    %v2126 = vadd.f32 0.0, %v2125
    %v2127 = vpop.f32.mrb[0].mxu0
    %v2128 = vadd.f32 0.0, %v2127
    %2129 = vdwg.mxu0
    %v2130 = vpack.c.bf16 %v2126, %v2122
    %v2131 = vpack.c.bf16 %v2128, %v2124
    %v2133 = vsel %vm1037, %v913, 0
    %v2136 = vsel %vm1037, %v914, 0
    %2138 = vmatprep.subr.bf16.mxu0 0
    %2139 = vmatpush1.bf16.msra.mxu0 %v2131
    %2140 = vmatprep.subr.bf16.mxu0 0
    %2141 = vmatpush1.bf16.msra.mxu0 0
    %2142 = vmatprep.subr.bf16.mxu0 0
    %2143 = vmatpush1.bf16.msra.mxu0 0
    %2144 = vmatprep.subr.bf16.mxu0 0
    %2145 = vmatpush1.bf16.msra.mxu0 0
    %2146 = vmatprep.subr.bf16.mxu0 0
    %2147 = vmatpush1.bf16.msra.mxu0 0
    %2148 = vmatprep.subr.bf16.mxu0 0
    %2149 = vmatpush1.bf16.msra.mxu0 0
    %2150 = vmatprep.subr.bf16.mxu0 0
    %2151 = vmatpush1.bf16.msra.mxu0 0
    %2152 = vmatprep.subr.bf16.mxu0 0
    %2153 = vmatpush1.bf16.msra.mxu0 0
    %2154 = vmatprep.subr.bf16.mxu0 0
    %2155 = vmatpush1.bf16.msra.mxu0 0
    %2156 = vmatprep.subr.bf16.mxu0 0
    %2157 = vmatpush1.bf16.msra.mxu0 0
    %2158 = vmatprep.subr.bf16.mxu0 0
    %2159 = vmatpush1.bf16.msra.mxu0 0
    %2160 = vmatprep.subr.bf16.mxu0 0
    %2161 = vmatpush1.bf16.msra.mxu0 0
    %2162 = vmatprep.subr.bf16.mxu0 0
    %2163 = vmatpush1.bf16.msra.mxu0 0
    %2164 = vmatprep.subr.bf16.mxu0 0
    %2165 = vmatpush1.bf16.msra.mxu0 0
    %2166 = vmatprep.subr.bf16.mxu0 0
    %2167 = vmatpush1.bf16.msra.mxu0 0
    %2168 = vmatprep.subr.bf16.mxu0 0
    %2169 = vmatpush1.bf16.msra.mxu0 0
    %2170 = vmatprep.mubr.bf16.mxu0 0
    %2171 = vmatmul.mubr.bf16.gmra.mrb[0].mxu0 %v2133
    %v2172 = vpop.f32.mrb[0].mxu0
    %v2173 = vadd.f32 0.0, %v2172
    %v2174 = vpop.f32.mrb[0].mxu0
    %v2175 = vpop.f32.mrb[0].mxu0
    %v2176 = vadd.f32 0.0, %v2175
    %v2177 = vpop.f32.mrb[0].mxu0
    %2178 = vmatprep.mubr.bf16.mxu0 0
    %2179 = vmatmul.mubr.bf16.gmra.mrb[0].mxu0 %v2136
    %v2180 = vpop.f32.mrb[0].mxu0
    %v2181 = vadd.f32 0.0, %v2180
    %v2182 = vpop.f32.mrb[0].mxu0
    %v2183 = vpop.f32.mrb[0].mxu0
    %v2184 = vadd.f32 0.0, %v2183
    %v2185 = vpop.f32.mrb[0].mxu0
    %2186 = vdwg.mxu0
    %v2188 = vsel %vm1037, %v887, 0
    %v2191 = vsel %vm1037, %v888, 0
    %2193 = vmatprep.subr.bf16.mxu0 0
    %2194 = vmatpush1.bf16.msra.mxu0 %v2130
    %2195 = vmatprep.subr.bf16.mxu0 0
    %2196 = vmatpush1.bf16.msra.mxu0 0
    %2197 = vmatprep.subr.bf16.mxu0 0
    %2198 = vmatpush1.bf16.msra.mxu0 0
    %2199 = vmatprep.subr.bf16.mxu0 0
    %2200 = vmatpush1.bf16.msra.mxu0 0
    %2201 = vmatprep.subr.bf16.mxu0 0
    %2202 = vmatpush1.bf16.msra.mxu0 0
    %2203 = vmatprep.subr.bf16.mxu0 0
    %2204 = vmatpush1.bf16.msra.mxu0 0
    %2205 = vmatprep.subr.bf16.mxu0 0
    %2206 = vmatpush1.bf16.msra.mxu0 0
    %2207 = vmatprep.subr.bf16.mxu0 0
    %2208 = vmatpush1.bf16.msra.mxu0 0
    %2209 = vmatprep.subr.bf16.mxu0 0
    %2210 = vmatpush1.bf16.msra.mxu0 0
    %2211 = vmatprep.subr.bf16.mxu0 0
    %2212 = vmatpush1.bf16.msra.mxu0 0
    %2213 = vmatprep.subr.bf16.mxu0 0
    %2214 = vmatpush1.bf16.msra.mxu0 0
    %2215 = vmatprep.subr.bf16.mxu0 0
    %2216 = vmatpush1.bf16.msra.mxu0 0
    %2217 = vmatprep.subr.bf16.mxu0 0
    %2218 = vmatpush1.bf16.msra.mxu0 0
    %2219 = vmatprep.subr.bf16.mxu0 0
    %2220 = vmatpush1.bf16.msra.mxu0 0
    %2221 = vmatprep.subr.bf16.mxu0 0
    %2222 = vmatpush1.bf16.msra.mxu0 0
    %2223 = vmatprep.subr.bf16.mxu0 0
    %2224 = vmatpush1.bf16.msra.mxu0 0
    %2225 = vmatprep.mubr.bf16.mxu0 0
    %2226 = vmatmul.mubr.bf16.gmra.mrb[0].mxu0 %v2188
    %v2227 = vpop.f32.mrb[0].mxu0
    %v2228 = vadd.f32 %v2173, %v2227
    %v2229 = vpop.f32.mrb[0].mxu0
    %v2230 = vpop.f32.mrb[0].mxu0
    %v2231 = vadd.f32 %v2176, %v2230
    %v2232 = vpop.f32.mrb[0].mxu0
    %2233 = vmatprep.mubr.bf16.mxu0 0
    %2234 = vmatmul.mubr.bf16.gmra.mrb[0].mxu0 %v2191
    %v2235 = vpop.f32.mrb[0].mxu0
    %v2236 = vadd.f32 %v2181, %v2235
    %v2237 = vpop.f32.mrb[0].mxu0
    %v2238 = vpop.f32.mrb[0].mxu0
    %v2239 = vadd.f32 %v2184, %v2238
    %v2240 = vpop.f32.mrb[0].mxu0
    %2241 = vdwg.mxu0
    %v2258 = vunpack.c.l.b16 %v508
    %v2259 = vunpack.c.l.b16 %v509
    %v2260 = vunpack.c.l.b16 %v510
    %v2261 = vunpack.c.l.b16 %v511
    %v2262 = vunpack.c.l.b16 %v512
    %v2263 = vunpack.c.l.b16 %v513
    %v2264 = vunpack.c.l.b16 %v514
    %v2265 = vunpack.c.l.b16 %v515
    %v2266 = vunpack.c.l.b16 %v516
    %v2267 = vunpack.c.l.b16 %v517
    %v2268 = vunpack.c.l.b16 %v518
    %v2269 = vunpack.c.l.b16 %v519
    %v2270 = vunpack.c.l.b16 %v520
    %v2271 = vunpack.c.l.b16 %v521
    %v2272 = vunpack.c.l.b16 %v522
    %v2273 = vunpack.c.l.b16 %v523
    %v2274 = vpack.c.b16 %v2259, %v2258
    %v2275 = vpack.c.b16 %v2261, %v2260
    %v2276 = vpack.c.b16 %v2263, %v2262
    %v2277 = vpack.c.b16 %v2265, %v2264
    %v2278 = vpack.c.b16 %v2267, %v2266
    %v2279 = vpack.c.b16 %v2269, %v2268
    %v2280 = vpack.c.b16 %v2271, %v2270
    %v2281 = vpack.c.b16 %v2273, %v2272
    %2290 = vmatprep.subr.bf16.mxu0 0
    %2291 = vmatpush1.bf16.msra.mxu0 %v2274
    %2292 = vmatprep.subr.bf16.mxu0 0
    %2293 = vmatpush1.bf16.msra.mxu0 %v2275
    %2294 = vmatprep.subr.bf16.mxu0 0
    %2295 = vmatpush1.bf16.msra.mxu0 %v2276
    %2296 = vmatprep.subr.bf16.mxu0 0
    %2297 = vmatpush1.bf16.msra.mxu0 %v2277
    %2298 = vmatprep.subr.bf16.mxu0 0
    %2299 = vmatpush1.bf16.msra.mxu0 %v2278
    %2300 = vmatprep.subr.bf16.mxu0 0
    %2301 = vmatpush1.bf16.msra.mxu0 %v2279
    %2302 = vmatprep.subr.bf16.mxu0 0
    %2303 = vmatpush1.bf16.msra.mxu0 %v2280
    %2304 = vmatprep.subr.bf16.mxu0 0
    %2305 = vmatpush1.bf16.msra.mxu0 %v2281
    %2306 = vmatprep.subr.bf16.mxu0 0
    %2307 = vmatpush1.bf16.msra.mxu0 0
    %2308 = vmatprep.subr.bf16.mxu0 0
    %2309 = vmatpush1.bf16.msra.mxu0 0
    %2310 = vmatprep.subr.bf16.mxu0 0
    %2311 = vmatpush1.bf16.msra.mxu0 0
    %2312 = vmatprep.subr.bf16.mxu0 0
    %2313 = vmatpush1.bf16.msra.mxu0 0
    %2314 = vmatprep.subr.bf16.mxu0 0
    %2315 = vmatpush1.bf16.msra.mxu0 0
    %2316 = vmatprep.subr.bf16.mxu0 0
    %2317 = vmatpush1.bf16.msra.mxu0 0
    %2318 = vmatprep.subr.bf16.mxu0 0
    %2319 = vmatpush1.bf16.msra.mxu0 0
    %2320 = vmatprep.subr.bf16.mxu0 0
    %2321 = vmatpush1.bf16.msra.mxu0 0
    %2322 = vmatprep.mubr.bf16.mxu0 0
    %2323 = vmatmul.mubr.bf16.gmra.mrb[0].mxu0 %v2005
    %v2324 = vpop.f32.mrb[0].mxu0
    %v2325 = vadd.f32 0.0, %v2324
    %v2326 = vpop.f32.mrb[0].mxu0
    %v2327 = vpop.f32.mrb[0].mxu0
    %v2328 = vadd.f32 0.0, %v2327
    %v2329 = vpop.f32.mrb[0].mxu0
    %2330 = vmatprep.mubr.bf16.mxu0 0
    %2331 = vmatmul.mubr.bf16.gmra.mrb[0].mxu0 %v2006
    %v2332 = vpop.f32.mrb[0].mxu0
    %v2333 = vadd.f32 0.0, %v2332
    %v2334 = vpop.f32.mrb[0].mxu0
    %v2335 = vpop.f32.mrb[0].mxu0
    %v2336 = vadd.f32 0.0, %v2335
    %v2337 = vpop.f32.mrb[0].mxu0
    %2338 = vdwg.mxu0
    %v2339 = vadd.f32 %v2228, %v2325
    %v2340 = vadd.f32 %v2231, %v2328
    %v2341 = vadd.f32 %v2236, %v2333
    %v2342 = vadd.f32 %v2239, %v2336
    %v2359 = vunpack.c.l.b16 %v524
    %v2360 = vunpack.c.l.b16 %v525
    %v2361 = vunpack.c.l.b16 %v526
    %v2362 = vunpack.c.l.b16 %v527
    %v2363 = vunpack.c.l.b16 %v528
    %v2364 = vunpack.c.l.b16 %v529
    %v2365 = vunpack.c.l.b16 %v530
    %v2366 = vunpack.c.l.b16 %v531
    %v2367 = vunpack.c.l.b16 %v532
    %v2368 = vunpack.c.l.b16 %v533
    %v2369 = vunpack.c.l.b16 %v534
    %v2370 = vunpack.c.l.b16 %v535
    %v2371 = vunpack.c.l.b16 %v536
    %v2372 = vunpack.c.l.b16 %v537
    %v2373 = vunpack.c.l.b16 %v538
    %v2374 = vunpack.c.l.b16 %v539
    %v2375 = vpack.c.b16 %v2360, %v2359
    %v2376 = vpack.c.b16 %v2362, %v2361
    %v2377 = vpack.c.b16 %v2364, %v2363
    %v2378 = vpack.c.b16 %v2366, %v2365
    %v2379 = vpack.c.b16 %v2368, %v2367
    %v2380 = vpack.c.b16 %v2370, %v2369
    %v2381 = vpack.c.b16 %v2372, %v2371
    %v2382 = vpack.c.b16 %v2374, %v2373
    %2391 = vmatprep.subr.bf16.mxu0 0
    %2392 = vmatpush1.bf16.msra.mxu0 %v2375
    %2393 = vmatprep.subr.bf16.mxu0 0
    %2394 = vmatpush1.bf16.msra.mxu0 %v2376
    %2395 = vmatprep.subr.bf16.mxu0 0
    %2396 = vmatpush1.bf16.msra.mxu0 %v2377
    %2397 = vmatprep.subr.bf16.mxu0 0
    %2398 = vmatpush1.bf16.msra.mxu0 %v2378
    %2399 = vmatprep.subr.bf16.mxu0 0
    %2400 = vmatpush1.bf16.msra.mxu0 %v2379
    %2401 = vmatprep.subr.bf16.mxu0 0
    %2402 = vmatpush1.bf16.msra.mxu0 %v2380
    %2403 = vmatprep.subr.bf16.mxu0 0
    %2404 = vmatpush1.bf16.msra.mxu0 %v2381
    %2405 = vmatprep.subr.bf16.mxu0 0
    %2406 = vmatpush1.bf16.msra.mxu0 %v2382
    %2407 = vmatprep.subr.bf16.mxu0 0
    %2408 = vmatpush1.bf16.msra.mxu0 0
    %2409 = vmatprep.subr.bf16.mxu0 0
    %2410 = vmatpush1.bf16.msra.mxu0 0
    %2411 = vmatprep.subr.bf16.mxu0 0
    %2412 = vmatpush1.bf16.msra.mxu0 0
    %2413 = vmatprep.subr.bf16.mxu0 0
    %2414 = vmatpush1.bf16.msra.mxu0 0
    %2415 = vmatprep.subr.bf16.mxu0 0
    %2416 = vmatpush1.bf16.msra.mxu0 0
    %2417 = vmatprep.subr.bf16.mxu0 0
    %2418 = vmatpush1.bf16.msra.mxu0 0
    %2419 = vmatprep.subr.bf16.mxu0 0
    %2420 = vmatpush1.bf16.msra.mxu0 0
    %2421 = vmatprep.subr.bf16.mxu0 0
    %2422 = vmatpush1.bf16.msra.mxu0 0
    %2423 = vmatprep.mubr.bf16.mxu0 0
    %2424 = vmatmul.mubr.bf16.gmra.mrb[0].mxu0 %v2003
    %v2425 = vpop.f32.mrb[0].mxu0
    %v2426 = vadd.f32 0.0, %v2425
    %v2427 = vpop.f32.mrb[0].mxu0
    %v2428 = vpop.f32.mrb[0].mxu0
    %v2429 = vpop.f32.mrb[0].mxu0
    %2430 = vdwg.mxu0
    %v2431 = vpack.c.bf16 %v2426, %v2426
    %vm2432 = vcmask 15360
    %v2434 = vsel %vm2432, %v939, 0
    %v2437 = vsel %vm2432, %v940, 0
    %vm2439 = vcmask 1040384
    %v2441 = vsel %vm2439, %v2431, 0
    %2443 = vmatprep.subr.bf16.mxu0 0
    %2444 = vmatpush1.bf16.msra.mxu0 %v2441
    %2445 = vmatprep.subr.bf16.mxu0 0
    %2446 = vmatpush1.bf16.msra.mxu0 0
    %2447 = vmatprep.subr.bf16.mxu0 0
    %2448 = vmatpush1.bf16.msra.mxu0 0
    %2449 = vmatprep.subr.bf16.mxu0 0
    %2450 = vmatpush1.bf16.msra.mxu0 0
    %2451 = vmatprep.subr.bf16.mxu0 0
    %2452 = vmatpush1.bf16.msra.mxu0 0
    %2453 = vmatprep.subr.bf16.mxu0 0
    %2454 = vmatpush1.bf16.msra.mxu0 0
    %2455 = vmatprep.subr.bf16.mxu0 0
    %2456 = vmatpush1.bf16.msra.mxu0 0
    %2457 = vmatprep.subr.bf16.mxu0 0
    %2458 = vmatpush1.bf16.msra.mxu0 0
    %2459 = vmatprep.subr.bf16.mxu0 0
    %2460 = vmatpush1.bf16.msra.mxu0 0
    %2461 = vmatprep.subr.bf16.mxu0 0
    %2462 = vmatpush1.bf16.msra.mxu0 0
    %2463 = vmatprep.subr.bf16.mxu0 0
    %2464 = vmatpush1.bf16.msra.mxu0 0
    %2465 = vmatprep.subr.bf16.mxu0 0
    %2466 = vmatpush1.bf16.msra.mxu0 0
    %2467 = vmatprep.subr.bf16.mxu0 0
    %2468 = vmatpush1.bf16.msra.mxu0 0
    %2469 = vmatprep.subr.bf16.mxu0 0
    %2470 = vmatpush1.bf16.msra.mxu0 0
    %2471 = vmatprep.subr.bf16.mxu0 0
    %2472 = vmatpush1.bf16.msra.mxu0 0
    %2473 = vmatprep.subr.bf16.mxu0 0
    %2474 = vmatpush1.bf16.msra.mxu0 0
    %2475 = vmatprep.mubr.bf16.mxu0 0
    %2476 = vmatmul.mubr.bf16.gmra.mrb[0].mxu0 %v2434
    %v2477 = vpop.f32.mrb[0].mxu0
    %v2478 = vadd.f32 0.0, %v2477
    %v2479 = vpop.f32.mrb[0].mxu0
    %v2480 = vpop.f32.mrb[0].mxu0
    %v2481 = vadd.f32 0.0, %v2480
    %v2482 = vpop.f32.mrb[0].mxu0
    %2483 = vmatprep.mubr.bf16.mxu0 0
    %2484 = vmatmul.mubr.bf16.gmra.mrb[0].mxu0 %v2437
    %v2485 = vpop.f32.mrb[0].mxu0
    %v2486 = vadd.f32 0.0, %v2485
    %v2487 = vpop.f32.mrb[0].mxu0
    %v2488 = vpop.f32.mrb[0].mxu0
    %v2489 = vadd.f32 0.0, %v2488
    %v2490 = vpop.f32.mrb[0].mxu0
    %2491 = vdwg.mxu0
    %v2492 = vadd.f32 %v2339, %v2478
    %v2493 = vadd.f32 %v2340, %v2481
    %v2494 = vadd.f32 %v2341, %v2486
    %v2495 = vadd.f32 %v2342, %v2489
    %v2497 = vlaneseq
    %v2498 = vshrl.u32 %v2497, 7
    %v2499 = vsub.s32 0, %v2498
    %v2500 = vrot.slane %v540, %v2499
    %v2502 = vadd.f32 %v2492, %v2500
    %v2503 = vadd.f32 %v2493, %v2500
    %v2504 = vadd.f32 %v2494, %v2500
    %v2505 = vadd.f32 %v2495, %v2500
    %v2506 = vmax.f32 %v2502, 0.0
    %v2507 = vmax.f32 %v2503, 0.0
    %v2508 = vmax.f32 %v2504, 0.0
    %v2509 = vmax.f32 %v2505, 0.0
    %v2510 = vpack.c.bf16 %v2507, %v2506
    %v2511 = vpack.c.bf16 %v2509, %v2508
    %v2513 = vlaneseq
    %v2514 = vshrl.u32 %v2513, 7
    %v2515 = vsub.s32 0, %v2514
    %v2516 = vrot.slane %v557, %v2515
    %v2534 = vunpack.c.l.b16 %v541
    %v2535 = vunpack.c.l.b16 %v542
    %v2536 = vunpack.c.l.b16 %v543
    %v2537 = vunpack.c.l.b16 %v544
    %v2538 = vunpack.c.l.b16 %v545
    %v2539 = vunpack.c.l.b16 %v546
    %v2540 = vunpack.c.l.b16 %v547
    %v2541 = vunpack.c.l.b16 %v548
    %v2542 = vunpack.c.l.b16 %v549
    %v2543 = vunpack.c.l.b16 %v550
    %v2544 = vunpack.c.l.b16 %v551
    %v2545 = vunpack.c.l.b16 %v552
    %v2546 = vunpack.c.l.b16 %v553
    %v2547 = vunpack.c.l.b16 %v554
    %v2548 = vunpack.c.l.b16 %v555
    %v2549 = vunpack.c.l.b16 %v556
    %v2550 = vpack.c.b16 %v2535, %v2534
    %v2551 = vpack.c.b16 %v2537, %v2536
    %v2552 = vpack.c.b16 %v2539, %v2538
    %v2553 = vpack.c.b16 %v2541, %v2540
    %v2554 = vpack.c.b16 %v2543, %v2542
    %v2555 = vpack.c.b16 %v2545, %v2544
    %v2556 = vpack.c.b16 %v2547, %v2546
    %v2557 = vpack.c.b16 %v2549, %v2548
    %2566 = vmatprep.subr.bf16.mxu0 0
    %2567 = vmatpush1.bf16.msra.mxu0 %v2550
    %2568 = vmatprep.subr.bf16.mxu0 0
    %2569 = vmatpush1.bf16.msra.mxu0 %v2551
    %2570 = vmatprep.subr.bf16.mxu0 0
    %2571 = vmatpush1.bf16.msra.mxu0 %v2552
    %2572 = vmatprep.subr.bf16.mxu0 0
    %2573 = vmatpush1.bf16.msra.mxu0 %v2553
    %2574 = vmatprep.subr.bf16.mxu0 0
    %2575 = vmatpush1.bf16.msra.mxu0 %v2554
    %2576 = vmatprep.subr.bf16.mxu0 0
    %2577 = vmatpush1.bf16.msra.mxu0 %v2555
    %2578 = vmatprep.subr.bf16.mxu0 0
    %2579 = vmatpush1.bf16.msra.mxu0 %v2556
    %2580 = vmatprep.subr.bf16.mxu0 0
    %2581 = vmatpush1.bf16.msra.mxu0 %v2557
    %2582 = vmatprep.subr.bf16.mxu0 0
    %2583 = vmatpush1.bf16.msra.mxu0 0
    %2584 = vmatprep.subr.bf16.mxu0 0
    %2585 = vmatpush1.bf16.msra.mxu0 0
    %2586 = vmatprep.subr.bf16.mxu0 0
    %2587 = vmatpush1.bf16.msra.mxu0 0
    %2588 = vmatprep.subr.bf16.mxu0 0
    %2589 = vmatpush1.bf16.msra.mxu0 0
    %2590 = vmatprep.subr.bf16.mxu0 0
    %2591 = vmatpush1.bf16.msra.mxu0 0
    %2592 = vmatprep.subr.bf16.mxu0 0
    %2593 = vmatpush1.bf16.msra.mxu0 0
    %2594 = vmatprep.subr.bf16.mxu0 0
    %2595 = vmatpush1.bf16.msra.mxu0 0
    %2596 = vmatprep.subr.bf16.mxu0 0
    %2597 = vmatpush1.bf16.msra.mxu0 0
    %2598 = vmatprep.mubr.bf16.mxu0 0
    %2599 = vmatmul.mubr.bf16.gmra.mrb[0].mxu0 %v2510
    %v2600 = vpop.f32.mrb[0].mxu0
    %v2601 = vadd.f32 %v2516, %v2600
    %v2602 = vpop.f32.mrb[0].mxu0
    %v2603 = vpop.f32.mrb[0].mxu0
    %v2604 = vadd.f32 %v2516, %v2603
    %v2605 = vpop.f32.mrb[0].mxu0
    %2606 = vmatprep.mubr.bf16.mxu0 0
    %2607 = vmatmul.mubr.bf16.gmra.mrb[0].mxu0 %v2511
    %v2608 = vpop.f32.mrb[0].mxu0
    %v2609 = vadd.f32 %v2516, %v2608
    %v2610 = vpop.f32.mrb[0].mxu0
    %v2611 = vpop.f32.mrb[0].mxu0
    %v2612 = vadd.f32 %v2516, %v2611
    %v2613 = vpop.f32.mrb[0].mxu0
    %2614 = vdwg.mxu0
    %v2615 = vpack.c.bf16 %v2604, %v2601
    %v2616 = vpack.c.bf16 %v2612, %v2609
    %2617 = vmatprep.subr.bf16.mxu0 0
    %2618 = vmatpush1.bf16.msra.mxu0 %v2615
    %2619 = vmatprep.subr.bf16.mxu0 0
    %2620 = vmatpush1.bf16.msra.mxu0 %v2616
    %2621 = vmatprep.subr.bf16.mxu0 0
    %2622 = vmatpush1.bf16.msra.mxu0 0
    %2623 = vmatprep.subr.bf16.mxu0 0
    %2624 = vmatpush1.bf16.msra.mxu0 0
    %2625 = vmatprep.subr.bf16.mxu0 0
    %2626 = vmatpush1.bf16.msra.mxu0 0
    %2627 = vmatprep.subr.bf16.mxu0 0
    %2628 = vmatpush1.bf16.msra.mxu0 0
    %2629 = vmatprep.subr.bf16.mxu0 0
    %2630 = vmatpush1.bf16.msra.mxu0 0
    %2631 = vmatprep.subr.bf16.mxu0 0
    %2632 = vmatpush1.bf16.msra.mxu0 0
    %2633 = vmatprep.subr.bf16.mxu0 0
    %2634 = vmatpush1.bf16.msra.mxu0 0
    %2635 = vmatprep.subr.bf16.mxu0 0
    %2636 = vmatpush1.bf16.msra.mxu0 0
    %2637 = vmatprep.subr.bf16.mxu0 0
    %2638 = vmatpush1.bf16.msra.mxu0 0
    %2639 = vmatprep.subr.bf16.mxu0 0
    %2640 = vmatpush1.bf16.msra.mxu0 0
    %2641 = vmatprep.subr.bf16.mxu0 0
    %2642 = vmatpush1.bf16.msra.mxu0 0
    %2643 = vmatprep.subr.bf16.mxu0 0
    %2644 = vmatpush1.bf16.msra.mxu0 0
    %2645 = vmatprep.subr.bf16.mxu0 0
    %2646 = vmatpush1.bf16.msra.mxu0 0
    %2647 = vmatprep.subr.bf16.mxu0 0
    %2648 = vmatpush1.bf16.msra.mxu0 0
    %2649 = vmatprep.mubr.bf16.mxu0 0
    %2650 = vmatmul.mubr.bf16.gmra.mrb[0].mxu0 %v972
    %v2651 = vpop.f32.mrb[0].mxu0
    %v2652 = vadd.f32 0.0, %v2651
    %v2653 = vpop.f32.mrb[0].mxu0
    %v2654 = vpop.f32.mrb[0].mxu0
    %v2655 = vadd.f32 0.0, %v2654
    %v2656 = vpop.f32.mrb[0].mxu0
    %2657 = vdwg.mxu0
    %2659 = vset.pattern.permute.xlu0 0
    %2660 = vperm.xlu0 %2659, %v1018
    %v2661 = vpop.permute.xlu0 %2660
    %2664 = vset.pattern.permute.xlu0 0
    %2665 = vperm.xlu0 %2664, %v1020
    %v2666 = vpop.permute.xlu0 %2665
    %v2668 = vmul.f32 %v2652, %v2661
    %v2669 = vmul.f32 %v2655, %v2666
    %v2670 = vpack.c.bf16 %v2669, %v2668
    %v2687 = vunpack.c.l.b16 %v574
    %v2688 = vunpack.c.l.b16 %v575
    %v2689 = vunpack.c.l.b16 %v576
    %v2690 = vunpack.c.l.b16 %v577
    %v2691 = vunpack.c.l.b16 %v578
    %v2692 = vunpack.c.l.b16 %v579
    %v2693 = vunpack.c.l.b16 %v580
    %v2694 = vunpack.c.l.b16 %v581
    %v2695 = vunpack.c.l.b16 %v582
    %v2696 = vunpack.c.l.b16 %v583
    %v2697 = vunpack.c.l.b16 %v584
    %v2698 = vunpack.c.l.b16 %v585
    %v2699 = vunpack.c.l.b16 %v586
    %v2700 = vunpack.c.l.b16 %v587
    %v2701 = vunpack.c.l.b16 %v588
    %v2702 = vunpack.c.l.b16 %v589
    %v2703 = vpack.c.b16 %v2688, %v2687
    %v2704 = vpack.c.b16 %v2690, %v2689
    %v2705 = vpack.c.b16 %v2692, %v2691
    %v2706 = vpack.c.b16 %v2694, %v2693
    %v2707 = vpack.c.b16 %v2696, %v2695
    %v2708 = vpack.c.b16 %v2698, %v2697
    %v2709 = vpack.c.b16 %v2700, %v2699
    %v2710 = vpack.c.b16 %v2702, %v2701
    %2719 = vmatprep.subr.bf16.mxu0 0
    %2720 = vmatpush1.bf16.msra.mxu0 %v2703
    %2721 = vmatprep.subr.bf16.mxu0 0
    %2722 = vmatpush1.bf16.msra.mxu0 %v2704
    %2723 = vmatprep.subr.bf16.mxu0 0
    %2724 = vmatpush1.bf16.msra.mxu0 %v2705
    %2725 = vmatprep.subr.bf16.mxu0 0
    %2726 = vmatpush1.bf16.msra.mxu0 %v2706
    %2727 = vmatprep.subr.bf16.mxu0 0
    %2728 = vmatpush1.bf16.msra.mxu0 %v2707
    %2729 = vmatprep.subr.bf16.mxu0 0
    %2730 = vmatpush1.bf16.msra.mxu0 %v2708
    %2731 = vmatprep.subr.bf16.mxu0 0
    %2732 = vmatpush1.bf16.msra.mxu0 %v2709
    %2733 = vmatprep.subr.bf16.mxu0 0
    %2734 = vmatpush1.bf16.msra.mxu0 %v2710
    %2735 = vmatprep.subr.bf16.mxu0 0
    %2736 = vmatpush1.bf16.msra.mxu0 0
    %2737 = vmatprep.subr.bf16.mxu0 0
    %2738 = vmatpush1.bf16.msra.mxu0 0
    %2739 = vmatprep.subr.bf16.mxu0 0
    %2740 = vmatpush1.bf16.msra.mxu0 0
    %2741 = vmatprep.subr.bf16.mxu0 0
    %2742 = vmatpush1.bf16.msra.mxu0 0
    %2743 = vmatprep.subr.bf16.mxu0 0
    %2744 = vmatpush1.bf16.msra.mxu0 0
    %2745 = vmatprep.subr.bf16.mxu0 0
    %2746 = vmatpush1.bf16.msra.mxu0 0
    %2747 = vmatprep.subr.bf16.mxu0 0
    %2748 = vmatpush1.bf16.msra.mxu0 0
    %2749 = vmatprep.subr.bf16.mxu0 0
    %2750 = vmatpush1.bf16.msra.mxu0 0
    %2751 = vmatprep.mubr.bf16.mxu0 0
    %2752 = vmatmul.mubr.bf16.gmra.mrb[0].mxu0 %v2670
    %v2753 = vpop.f32.mrb[0].mxu0
    %v2754 = vadd.f32 0.0, %v2753
    %v2755 = vpop.f32.mrb[0].mxu0
    %v2756 = vpop.f32.mrb[0].mxu0
    %v2757 = vadd.f32 0.0, %v2756
    %v2758 = vpop.f32.mrb[0].mxu0
    %2759 = vdwg.mxu0
    %v2776 = vunpack.c.l.b16 %v558
    %v2777 = vunpack.c.l.b16 %v559
    %v2778 = vunpack.c.l.b16 %v560
    %v2779 = vunpack.c.l.b16 %v561
    %v2780 = vunpack.c.l.b16 %v562
    %v2781 = vunpack.c.l.b16 %v563
    %v2782 = vunpack.c.l.b16 %v564
    %v2783 = vunpack.c.l.b16 %v565
    %v2784 = vunpack.c.l.b16 %v566
    %v2785 = vunpack.c.l.b16 %v567
    %v2786 = vunpack.c.l.b16 %v568
    %v2787 = vunpack.c.l.b16 %v569
    %v2788 = vunpack.c.l.b16 %v570
    %v2789 = vunpack.c.l.b16 %v571
    %v2790 = vunpack.c.l.b16 %v572
    %v2791 = vunpack.c.l.b16 %v573
    %v2792 = vpack.c.b16 %v2777, %v2776
    %v2793 = vpack.c.b16 %v2779, %v2778
    %v2794 = vpack.c.b16 %v2781, %v2780
    %v2795 = vpack.c.b16 %v2783, %v2782
    %v2796 = vpack.c.b16 %v2785, %v2784
    %v2797 = vpack.c.b16 %v2787, %v2786
    %v2798 = vpack.c.b16 %v2789, %v2788
    %v2799 = vpack.c.b16 %v2791, %v2790
    %2808 = vmatprep.subr.bf16.mxu0 0
    %2809 = vmatpush1.bf16.msra.mxu0 %v2792
    %2810 = vmatprep.subr.bf16.mxu0 0
    %2811 = vmatpush1.bf16.msra.mxu0 %v2793
    %2812 = vmatprep.subr.bf16.mxu0 0
    %2813 = vmatpush1.bf16.msra.mxu0 %v2794
    %2814 = vmatprep.subr.bf16.mxu0 0
    %2815 = vmatpush1.bf16.msra.mxu0 %v2795
    %2816 = vmatprep.subr.bf16.mxu0 0
    %2817 = vmatpush1.bf16.msra.mxu0 %v2796
    %2818 = vmatprep.subr.bf16.mxu0 0
    %2819 = vmatpush1.bf16.msra.mxu0 %v2797
    %2820 = vmatprep.subr.bf16.mxu0 0
    %2821 = vmatpush1.bf16.msra.mxu0 %v2798
    %2822 = vmatprep.subr.bf16.mxu0 0
    %2823 = vmatpush1.bf16.msra.mxu0 %v2799
    %2824 = vmatprep.subr.bf16.mxu0 0
    %2825 = vmatpush1.bf16.msra.mxu0 0
    %2826 = vmatprep.subr.bf16.mxu0 0
    %2827 = vmatpush1.bf16.msra.mxu0 0
    %2828 = vmatprep.subr.bf16.mxu0 0
    %2829 = vmatpush1.bf16.msra.mxu0 0
    %2830 = vmatprep.subr.bf16.mxu0 0
    %2831 = vmatpush1.bf16.msra.mxu0 0
    %2832 = vmatprep.subr.bf16.mxu0 0
    %2833 = vmatpush1.bf16.msra.mxu0 0
    %2834 = vmatprep.subr.bf16.mxu0 0
    %2835 = vmatpush1.bf16.msra.mxu0 0
    %2836 = vmatprep.subr.bf16.mxu0 0
    %2837 = vmatpush1.bf16.msra.mxu0 0
    %2838 = vmatprep.subr.bf16.mxu0 0
    %2839 = vmatpush1.bf16.msra.mxu0 0
    %2840 = vmatprep.mubr.bf16.mxu0 0
    %2841 = vmatmul.mubr.bf16.gmra.mrb[0].mxu0 %v2004
    %v2842 = vpop.f32.mrb[0].mxu0
    %v2843 = vadd.f32 %v2754, %v2842
    %v2844 = vpop.f32.mrb[0].mxu0
    %v2845 = vpop.f32.mrb[0].mxu0
    %v2846 = vadd.f32 %v2757, %v2845
    %v2847 = vpop.f32.mrb[0].mxu0
    %2848 = vdwg.mxu0
    %v2865 = vunpack.c.l.b16 %v590
    %v2866 = vunpack.c.l.b16 %v591
    %v2867 = vunpack.c.l.b16 %v592
    %v2868 = vunpack.c.l.b16 %v593
    %v2869 = vunpack.c.l.b16 %v594
    %v2870 = vunpack.c.l.b16 %v595
    %v2871 = vunpack.c.l.b16 %v596
    %v2872 = vunpack.c.l.b16 %v597
    %v2873 = vunpack.c.l.b16 %v598
    %v2874 = vunpack.c.l.b16 %v599
    %v2875 = vunpack.c.l.b16 %v600
    %v2876 = vunpack.c.l.b16 %v601
    %v2877 = vunpack.c.l.b16 %v602
    %v2878 = vunpack.c.l.b16 %v603
    %v2879 = vunpack.c.l.b16 %v604
    %v2880 = vunpack.c.l.b16 %v605
    %v2881 = vpack.c.b16 %v2866, %v2865
    %v2882 = vpack.c.b16 %v2868, %v2867
    %v2883 = vpack.c.b16 %v2870, %v2869
    %v2884 = vpack.c.b16 %v2872, %v2871
    %v2885 = vpack.c.b16 %v2874, %v2873
    %v2886 = vpack.c.b16 %v2876, %v2875
    %v2887 = vpack.c.b16 %v2878, %v2877
    %v2888 = vpack.c.b16 %v2880, %v2879
    %2897 = vmatprep.subr.bf16.mxu0 0
    %2898 = vmatpush1.bf16.msra.mxu0 %v2881
    %2899 = vmatprep.subr.bf16.mxu0 0
    %2900 = vmatpush1.bf16.msra.mxu0 %v2882
    %2901 = vmatprep.subr.bf16.mxu0 0
    %2902 = vmatpush1.bf16.msra.mxu0 %v2883
    %2903 = vmatprep.subr.bf16.mxu0 0
    %2904 = vmatpush1.bf16.msra.mxu0 %v2884
    %2905 = vmatprep.subr.bf16.mxu0 0
    %2906 = vmatpush1.bf16.msra.mxu0 %v2885
    %2907 = vmatprep.subr.bf16.mxu0 0
    %2908 = vmatpush1.bf16.msra.mxu0 %v2886
    %2909 = vmatprep.subr.bf16.mxu0 0
    %2910 = vmatpush1.bf16.msra.mxu0 %v2887
    %2911 = vmatprep.subr.bf16.mxu0 0
    %2912 = vmatpush1.bf16.msra.mxu0 %v2888
    %2913 = vmatprep.subr.bf16.mxu0 0
    %2914 = vmatpush1.bf16.msra.mxu0 0
    %2915 = vmatprep.subr.bf16.mxu0 0
    %2916 = vmatpush1.bf16.msra.mxu0 0
    %2917 = vmatprep.subr.bf16.mxu0 0
    %2918 = vmatpush1.bf16.msra.mxu0 0
    %2919 = vmatprep.subr.bf16.mxu0 0
    %2920 = vmatpush1.bf16.msra.mxu0 0
    %2921 = vmatprep.subr.bf16.mxu0 0
    %2922 = vmatpush1.bf16.msra.mxu0 0
    %2923 = vmatprep.subr.bf16.mxu0 0
    %2924 = vmatpush1.bf16.msra.mxu0 0
    %2925 = vmatprep.subr.bf16.mxu0 0
    %2926 = vmatpush1.bf16.msra.mxu0 0
    %2927 = vmatprep.subr.bf16.mxu0 0
    %2928 = vmatpush1.bf16.msra.mxu0 0
    %2929 = vmatprep.mubr.bf16.mxu0 0
    %2930 = vmatmul.mubr.bf16.gmra.mrb[0].mxu0 %v2003
    %v2931 = vpop.f32.mrb[0].mxu0
    %v2932 = vadd.f32 0.0, %v2931
    %v2933 = vpop.f32.mrb[0].mxu0
    %v2934 = vpop.f32.mrb[0].mxu0
    %v2935 = vpop.f32.mrb[0].mxu0
    %2936 = vdwg.mxu0
    %v2937 = vpack.c.bf16 %v2932, %v2932
    %v2939 = vsel %vm2432, %v953, 0
    %v2942 = vsel %vm2439, %v2937, 0
    %2944 = vmatprep.subr.bf16.mxu0 0
    %2945 = vmatpush1.bf16.msra.mxu0 %v2942
    %2946 = vmatprep.subr.bf16.mxu0 0
    %2947 = vmatpush1.bf16.msra.mxu0 0
    %2948 = vmatprep.subr.bf16.mxu0 0
    %2949 = vmatpush1.bf16.msra.mxu0 0
    %2950 = vmatprep.subr.bf16.mxu0 0
    %2951 = vmatpush1.bf16.msra.mxu0 0
    %2952 = vmatprep.subr.bf16.mxu0 0
    %2953 = vmatpush1.bf16.msra.mxu0 0
    %2954 = vmatprep.subr.bf16.mxu0 0
    %2955 = vmatpush1.bf16.msra.mxu0 0
    %2956 = vmatprep.subr.bf16.mxu0 0
    %2957 = vmatpush1.bf16.msra.mxu0 0
    %2958 = vmatprep.subr.bf16.mxu0 0
    %2959 = vmatpush1.bf16.msra.mxu0 0
    %2960 = vmatprep.subr.bf16.mxu0 0
    %2961 = vmatpush1.bf16.msra.mxu0 0
    %2962 = vmatprep.subr.bf16.mxu0 0
    %2963 = vmatpush1.bf16.msra.mxu0 0
    %2964 = vmatprep.subr.bf16.mxu0 0
    %2965 = vmatpush1.bf16.msra.mxu0 0
    %2966 = vmatprep.subr.bf16.mxu0 0
    %2967 = vmatpush1.bf16.msra.mxu0 0
    %2968 = vmatprep.subr.bf16.mxu0 0
    %2969 = vmatpush1.bf16.msra.mxu0 0
    %2970 = vmatprep.subr.bf16.mxu0 0
    %2971 = vmatpush1.bf16.msra.mxu0 0
    %2972 = vmatprep.subr.bf16.mxu0 0
    %2973 = vmatpush1.bf16.msra.mxu0 0
    %2974 = vmatprep.subr.bf16.mxu0 0
    %2975 = vmatpush1.bf16.msra.mxu0 0
    %2976 = vmatprep.mubr.bf16.mxu0 0
    %2977 = vmatmul.mubr.bf16.gmra.mrb[0].mxu0 %v2939
    %v2978 = vpop.f32.mrb[0].mxu0
    %v2979 = vadd.f32 0.0, %v2978
    %v2980 = vpop.f32.mrb[0].mxu0
    %v2981 = vpop.f32.mrb[0].mxu0
    %v2982 = vadd.f32 0.0, %v2981
    %v2983 = vpop.f32.mrb[0].mxu0
    %2984 = vdwg.mxu0
    %v2985 = vadd.f32 %v2843, %v2979
    %v2986 = vadd.f32 %v2846, %v2982
    %v2988 = vlaneseq
    %v2989 = vshrl.u32 %v2988, 7
    %v2990 = vsub.s32 0, %v2989
    %v2991 = vrot.slane %v606, %v2990
    %v2993 = vadd.f32 %v2985, %v2991
    %v2994 = vadd.f32 %v2986, %v2991
    %v2995 = vmax.f32 %v2993, 0.0
    %v2996 = vmax.f32 %v2994, 0.0
    %v2997 = vpack.c.bf16 %v2996, %v2995
    %v2999 = vlaneseq
    %v3000 = vshrl.u32 %v2999, 7
    %v3001 = vsub.s32 0, %v3000
    %v3002 = vrot.slane %v623, %v3001
    %v3020 = vunpack.c.l.b16 %v607
    %v3021 = vunpack.c.l.b16 %v608
    %v3022 = vunpack.c.l.b16 %v609
    %v3023 = vunpack.c.l.b16 %v610
    %v3024 = vunpack.c.l.b16 %v611
    %v3025 = vunpack.c.l.b16 %v612
    %v3026 = vunpack.c.l.b16 %v613
    %v3027 = vunpack.c.l.b16 %v614
    %v3028 = vunpack.c.l.b16 %v615
    %v3029 = vunpack.c.l.b16 %v616
    %v3030 = vunpack.c.l.b16 %v617
    %v3031 = vunpack.c.l.b16 %v618
    %v3032 = vunpack.c.l.b16 %v619
    %v3033 = vunpack.c.l.b16 %v620
    %v3034 = vunpack.c.l.b16 %v621
    %v3035 = vunpack.c.l.b16 %v622
    %v3036 = vpack.c.b16 %v3021, %v3020
    %v3037 = vpack.c.b16 %v3023, %v3022
    %v3038 = vpack.c.b16 %v3025, %v3024
    %v3039 = vpack.c.b16 %v3027, %v3026
    %v3040 = vpack.c.b16 %v3029, %v3028
    %v3041 = vpack.c.b16 %v3031, %v3030
    %v3042 = vpack.c.b16 %v3033, %v3032
    %v3043 = vpack.c.b16 %v3035, %v3034
    %3052 = vmatprep.subr.bf16.mxu0 0
    %3053 = vmatpush1.bf16.msra.mxu0 %v3036
    %3054 = vmatprep.subr.bf16.mxu0 0
    %3055 = vmatpush1.bf16.msra.mxu0 %v3037
    %3056 = vmatprep.subr.bf16.mxu0 0
    %3057 = vmatpush1.bf16.msra.mxu0 %v3038
    %3058 = vmatprep.subr.bf16.mxu0 0
    %3059 = vmatpush1.bf16.msra.mxu0 %v3039
    %3060 = vmatprep.subr.bf16.mxu0 0
    %3061 = vmatpush1.bf16.msra.mxu0 %v3040
    %3062 = vmatprep.subr.bf16.mxu0 0
    %3063 = vmatpush1.bf16.msra.mxu0 %v3041
    %3064 = vmatprep.subr.bf16.mxu0 0
    %3065 = vmatpush1.bf16.msra.mxu0 %v3042
    %3066 = vmatprep.subr.bf16.mxu0 0
    %3067 = vmatpush1.bf16.msra.mxu0 %v3043
    %3068 = vmatprep.subr.bf16.mxu0 0
    %3069 = vmatpush1.bf16.msra.mxu0 0
    %3070 = vmatprep.subr.bf16.mxu0 0
    %3071 = vmatpush1.bf16.msra.mxu0 0
    %3072 = vmatprep.subr.bf16.mxu0 0
    %3073 = vmatpush1.bf16.msra.mxu0 0
    %3074 = vmatprep.subr.bf16.mxu0 0
    %3075 = vmatpush1.bf16.msra.mxu0 0
    %3076 = vmatprep.subr.bf16.mxu0 0
    %3077 = vmatpush1.bf16.msra.mxu0 0
    %3078 = vmatprep.subr.bf16.mxu0 0
    %3079 = vmatpush1.bf16.msra.mxu0 0
    %3080 = vmatprep.subr.bf16.mxu0 0
    %3081 = vmatpush1.bf16.msra.mxu0 0
    %3082 = vmatprep.subr.bf16.mxu0 0
    %3083 = vmatpush1.bf16.msra.mxu0 0
    %3084 = vmatprep.mubr.bf16.mxu0 0
    %3085 = vmatmul.mubr.bf16.gmra.mrb[0].mxu0 %v2997
    %v3086 = vpop.f32.mrb[0].mxu0
    %v3087 = vadd.f32 %v3002, %v3086
    %v3088 = vpop.f32.mrb[0].mxu0
    %v3089 = vpop.f32.mrb[0].mxu0
    %v3090 = vadd.f32 %v3002, %v3089
    %v3091 = vpop.f32.mrb[0].mxu0
    %3092 = vdwg.mxu0
    %v3093 = vadd.f32 %v3087, %v1294
    %v3094 = vadd.f32 %v3090, %v1297
    %v3095 = vpack.c.bf16 %v3094, %v3093
    %v3112 = vunpack.c.l.b16 %v624
    %v3113 = vunpack.c.h.b16 %v624
    %v3114 = vunpack.c.l.b16 %v625
    %v3115 = vunpack.c.h.b16 %v625
    %v3116 = vunpack.c.l.b16 %v626
    %v3117 = vunpack.c.h.b16 %v626
    %v3118 = vunpack.c.l.b16 %v627
    %v3119 = vunpack.c.h.b16 %v627
    %v3120 = vunpack.c.l.b16 %v628
    %v3121 = vunpack.c.h.b16 %v628
    %v3122 = vunpack.c.l.b16 %v629
    %v3123 = vunpack.c.h.b16 %v629
    %v3124 = vunpack.c.l.b16 %v630
    %v3125 = vunpack.c.h.b16 %v630
    %v3126 = vunpack.c.l.b16 %v631
    %v3127 = vunpack.c.h.b16 %v631
    %v3128 = vunpack.c.l.b16 %v632
    %v3129 = vunpack.c.h.b16 %v632
    %v3130 = vunpack.c.l.b16 %v633
    %v3131 = vunpack.c.h.b16 %v633
    %v3132 = vunpack.c.l.b16 %v634
    %v3133 = vunpack.c.h.b16 %v634
    %v3134 = vunpack.c.l.b16 %v635
    %v3135 = vunpack.c.h.b16 %v635
    %v3136 = vunpack.c.l.b16 %v636
    %v3137 = vunpack.c.h.b16 %v636
    %v3138 = vunpack.c.l.b16 %v637
    %v3139 = vunpack.c.h.b16 %v637
    %v3140 = vunpack.c.l.b16 %v638
    %v3141 = vunpack.c.h.b16 %v638
    %v3142 = vunpack.c.l.b16 %v639
    %v3143 = vunpack.c.h.b16 %v639
    %v3144 = vpack.c.b16 %v3114, %v3112
    %v3145 = vpack.c.b16 %v3115, %v3113
    %v3146 = vpack.c.b16 %v3118, %v3116
    %v3147 = vpack.c.b16 %v3119, %v3117
    %v3148 = vpack.c.b16 %v3122, %v3120
    %v3149 = vpack.c.b16 %v3123, %v3121
    %v3150 = vpack.c.b16 %v3126, %v3124
    %v3151 = vpack.c.b16 %v3127, %v3125
    %v3152 = vpack.c.b16 %v3130, %v3128
    %v3153 = vpack.c.b16 %v3131, %v3129
    %v3154 = vpack.c.b16 %v3134, %v3132
    %v3155 = vpack.c.b16 %v3135, %v3133
    %v3156 = vpack.c.b16 %v3138, %v3136
    %v3157 = vpack.c.b16 %v3139, %v3137
    %v3158 = vpack.c.b16 %v3142, %v3140
    %v3159 = vpack.c.b16 %v3143, %v3141
    %3176 = vmatprep.subr.bf16.mxu0 %v3145
    %3177 = vmatpush1.bf16.msra.mxu0 %v3144
    %3178 = vmatprep.subr.bf16.mxu0 %v3147
    %3179 = vmatpush1.bf16.msra.mxu0 %v3146
    %3180 = vmatprep.subr.bf16.mxu0 %v3149
    %3181 = vmatpush1.bf16.msra.mxu0 %v3148
    %3182 = vmatprep.subr.bf16.mxu0 %v3151
    %3183 = vmatpush1.bf16.msra.mxu0 %v3150
    %3184 = vmatprep.subr.bf16.mxu0 %v3153
    %3185 = vmatpush1.bf16.msra.mxu0 %v3152
    %3186 = vmatprep.subr.bf16.mxu0 %v3155
    %3187 = vmatpush1.bf16.msra.mxu0 %v3154
    %3188 = vmatprep.subr.bf16.mxu0 %v3157
    %3189 = vmatpush1.bf16.msra.mxu0 %v3156
    %3190 = vmatprep.subr.bf16.mxu0 %v3159
    %3191 = vmatpush1.bf16.msra.mxu0 %v3158
    %3192 = vmatprep.subr.bf16.mxu0 0
    %3193 = vmatpush1.bf16.msra.mxu0 0
    %3194 = vmatprep.subr.bf16.mxu0 0
    %3195 = vmatpush1.bf16.msra.mxu0 0
    %3196 = vmatprep.subr.bf16.mxu0 0
    %3197 = vmatpush1.bf16.msra.mxu0 0
    %3198 = vmatprep.subr.bf16.mxu0 0
    %3199 = vmatpush1.bf16.msra.mxu0 0
    %3200 = vmatprep.subr.bf16.mxu0 0
    %3201 = vmatpush1.bf16.msra.mxu0 0
    %3202 = vmatprep.subr.bf16.mxu0 0
    %3203 = vmatpush1.bf16.msra.mxu0 0
    %3204 = vmatprep.subr.bf16.mxu0 0
    %3205 = vmatpush1.bf16.msra.mxu0 0
    %3206 = vmatprep.subr.bf16.mxu0 0
    %3207 = vmatpush1.bf16.msra.mxu0 0
    %3208 = vmatprep.mubr.bf16.mxu0 0
    %3209 = vmatmul.mubr.bf16.gmra.mrb[0].mxu0 %v3095
    %v3210 = vpop.f32.mrb[0].mxu0
    %v3211 = vadd.f32 0.0, %v3210
    %v3212 = vpop.f32.mrb[0].mxu0
    %v3213 = vadd.f32 0.0, %v3212
    %v3214 = vpop.f32.mrb[0].mxu0
    %v3215 = vadd.f32 0.0, %v3214
    %v3216 = vpop.f32.mrb[0].mxu0
    %v3217 = vadd.f32 0.0, %v3216
    %3218 = vdwg.mxu0
    %v3219 = vpack.c.bf16 %v3215, %v3211
    %v3220 = vpack.c.bf16 %v3217, %v3213
    %3221 = vmatprep.subr.bf16.mxu0 0
    %3222 = vmatpush1.bf16.msra.mxu0 %v3220
    %3223 = vmatprep.subr.bf16.mxu0 0
    %3224 = vmatpush1.bf16.msra.mxu0 0
    %3225 = vmatprep.subr.bf16.mxu0 0
    %3226 = vmatpush1.bf16.msra.mxu0 0
    %3227 = vmatprep.subr.bf16.mxu0 0
    %3228 = vmatpush1.bf16.msra.mxu0 0
    %3229 = vmatprep.subr.bf16.mxu0 0
    %3230 = vmatpush1.bf16.msra.mxu0 0
    %3231 = vmatprep.subr.bf16.mxu0 0
    %3232 = vmatpush1.bf16.msra.mxu0 0
    %3233 = vmatprep.subr.bf16.mxu0 0
    %3234 = vmatpush1.bf16.msra.mxu0 0
    %3235 = vmatprep.subr.bf16.mxu0 0
    %3236 = vmatpush1.bf16.msra.mxu0 0
    %3237 = vmatprep.subr.bf16.mxu0 0
    %3238 = vmatpush1.bf16.msra.mxu0 0
    %3239 = vmatprep.subr.bf16.mxu0 0
    %3240 = vmatpush1.bf16.msra.mxu0 0
    %3241 = vmatprep.subr.bf16.mxu0 0
    %3242 = vmatpush1.bf16.msra.mxu0 0
    %3243 = vmatprep.subr.bf16.mxu0 0
    %3244 = vmatpush1.bf16.msra.mxu0 0
    %3245 = vmatprep.subr.bf16.mxu0 0
    %3246 = vmatpush1.bf16.msra.mxu0 0
    %3247 = vmatprep.subr.bf16.mxu0 0
    %3248 = vmatpush1.bf16.msra.mxu0 0
    %3249 = vmatprep.subr.bf16.mxu0 0
    %3250 = vmatpush1.bf16.msra.mxu0 0
    %3251 = vmatprep.subr.bf16.mxu0 0
    %3252 = vmatpush1.bf16.msra.mxu0 0
    %3253 = vmatprep.mubr.bf16.mxu0 0
    %3254 = vmatmul.mubr.bf16.gmra.mrb[0].mxu0 %v2133
    %v3255 = vpop.f32.mrb[0].mxu0
    %v3256 = vadd.f32 0.0, %v3255
    %v3257 = vpop.f32.mrb[0].mxu0
    %v3258 = vpop.f32.mrb[0].mxu0
    %v3259 = vadd.f32 0.0, %v3258
    %v3260 = vpop.f32.mrb[0].mxu0
    %3261 = vmatprep.mubr.bf16.mxu0 0
    %3262 = vmatmul.mubr.bf16.gmra.mrb[0].mxu0 %v2136
    %v3263 = vpop.f32.mrb[0].mxu0
    %v3264 = vadd.f32 0.0, %v3263
    %v3265 = vpop.f32.mrb[0].mxu0
    %v3266 = vpop.f32.mrb[0].mxu0
    %v3267 = vadd.f32 0.0, %v3266
    %v3268 = vpop.f32.mrb[0].mxu0
    %3269 = vdwg.mxu0
    %3270 = vmatprep.subr.bf16.mxu0 0
    %3271 = vmatpush1.bf16.msra.mxu0 %v3219
    %3272 = vmatprep.subr.bf16.mxu0 0
    %3273 = vmatpush1.bf16.msra.mxu0 0
    %3274 = vmatprep.subr.bf16.mxu0 0
    %3275 = vmatpush1.bf16.msra.mxu0 0
    %3276 = vmatprep.subr.bf16.mxu0 0
    %3277 = vmatpush1.bf16.msra.mxu0 0
    %3278 = vmatprep.subr.bf16.mxu0 0
    %3279 = vmatpush1.bf16.msra.mxu0 0
    %3280 = vmatprep.subr.bf16.mxu0 0
    %3281 = vmatpush1.bf16.msra.mxu0 0
    %3282 = vmatprep.subr.bf16.mxu0 0
    %3283 = vmatpush1.bf16.msra.mxu0 0
    %3284 = vmatprep.subr.bf16.mxu0 0
    %3285 = vmatpush1.bf16.msra.mxu0 0
    %3286 = vmatprep.subr.bf16.mxu0 0
    %3287 = vmatpush1.bf16.msra.mxu0 0
    %3288 = vmatprep.subr.bf16.mxu0 0
    %3289 = vmatpush1.bf16.msra.mxu0 0
    %3290 = vmatprep.subr.bf16.mxu0 0
    %3291 = vmatpush1.bf16.msra.mxu0 0
    %3292 = vmatprep.subr.bf16.mxu0 0
    %3293 = vmatpush1.bf16.msra.mxu0 0
    %3294 = vmatprep.subr.bf16.mxu0 0
    %3295 = vmatpush1.bf16.msra.mxu0 0
    %3296 = vmatprep.subr.bf16.mxu0 0
    %3297 = vmatpush1.bf16.msra.mxu0 0
    %3298 = vmatprep.subr.bf16.mxu0 0
    %3299 = vmatpush1.bf16.msra.mxu0 0
    %3300 = vmatprep.subr.bf16.mxu0 0
    %3301 = vmatpush1.bf16.msra.mxu0 0
    %3302 = vmatprep.mubr.bf16.mxu0 0
    %3303 = vmatmul.mubr.bf16.gmra.mrb[0].mxu0 %v2188
    %v3304 = vpop.f32.mrb[0].mxu0
    %v3305 = vadd.f32 %v3256, %v3304
    %v3306 = vpop.f32.mrb[0].mxu0
    %v3307 = vpop.f32.mrb[0].mxu0
    %v3308 = vadd.f32 %v3259, %v3307
    %v3309 = vpop.f32.mrb[0].mxu0
    %3310 = vmatprep.mubr.bf16.mxu0 0
    %3311 = vmatmul.mubr.bf16.gmra.mrb[0].mxu0 %v2191
    %v3312 = vpop.f32.mrb[0].mxu0
    %v3313 = vadd.f32 %v3264, %v3312
    %v3314 = vpop.f32.mrb[0].mxu0
    %v3315 = vpop.f32.mrb[0].mxu0
    %v3316 = vadd.f32 %v3267, %v3315
    %v3317 = vpop.f32.mrb[0].mxu0
    %3318 = vdwg.mxu0
    %v3335 = vunpack.c.l.b16 %v640
    %v3336 = vunpack.c.l.b16 %v641
    %v3337 = vunpack.c.l.b16 %v642
    %v3338 = vunpack.c.l.b16 %v643
    %v3339 = vunpack.c.l.b16 %v644
    %v3340 = vunpack.c.l.b16 %v645
    %v3341 = vunpack.c.l.b16 %v646
    %v3342 = vunpack.c.l.b16 %v647
    %v3343 = vunpack.c.l.b16 %v648
    %v3344 = vunpack.c.l.b16 %v649
    %v3345 = vunpack.c.l.b16 %v650
    %v3346 = vunpack.c.l.b16 %v651
    %v3347 = vunpack.c.l.b16 %v652
    %v3348 = vunpack.c.l.b16 %v653
    %v3349 = vunpack.c.l.b16 %v654
    %v3350 = vunpack.c.l.b16 %v655
    %v3351 = vpack.c.b16 %v3336, %v3335
    %v3352 = vpack.c.b16 %v3338, %v3337
    %v3353 = vpack.c.b16 %v3340, %v3339
    %v3354 = vpack.c.b16 %v3342, %v3341
    %v3355 = vpack.c.b16 %v3344, %v3343
    %v3356 = vpack.c.b16 %v3346, %v3345
    %v3357 = vpack.c.b16 %v3348, %v3347
    %v3358 = vpack.c.b16 %v3350, %v3349
    %3367 = vmatprep.subr.bf16.mxu0 0
    %3368 = vmatpush1.bf16.msra.mxu0 %v3351
    %3369 = vmatprep.subr.bf16.mxu0 0
    %3370 = vmatpush1.bf16.msra.mxu0 %v3352
    %3371 = vmatprep.subr.bf16.mxu0 0
    %3372 = vmatpush1.bf16.msra.mxu0 %v3353
    %3373 = vmatprep.subr.bf16.mxu0 0
    %3374 = vmatpush1.bf16.msra.mxu0 %v3354
    %3375 = vmatprep.subr.bf16.mxu0 0
    %3376 = vmatpush1.bf16.msra.mxu0 %v3355
    %3377 = vmatprep.subr.bf16.mxu0 0
    %3378 = vmatpush1.bf16.msra.mxu0 %v3356
    %3379 = vmatprep.subr.bf16.mxu0 0
    %3380 = vmatpush1.bf16.msra.mxu0 %v3357
    %3381 = vmatprep.subr.bf16.mxu0 0
    %3382 = vmatpush1.bf16.msra.mxu0 %v3358
    %3383 = vmatprep.subr.bf16.mxu0 0
    %3384 = vmatpush1.bf16.msra.mxu0 0
    %3385 = vmatprep.subr.bf16.mxu0 0
    %3386 = vmatpush1.bf16.msra.mxu0 0
    %3387 = vmatprep.subr.bf16.mxu0 0
    %3388 = vmatpush1.bf16.msra.mxu0 0
    %3389 = vmatprep.subr.bf16.mxu0 0
    %3390 = vmatpush1.bf16.msra.mxu0 0
    %3391 = vmatprep.subr.bf16.mxu0 0
    %3392 = vmatpush1.bf16.msra.mxu0 0
    %3393 = vmatprep.subr.bf16.mxu0 0
    %3394 = vmatpush1.bf16.msra.mxu0 0
    %3395 = vmatprep.subr.bf16.mxu0 0
    %3396 = vmatpush1.bf16.msra.mxu0 0
    %3397 = vmatprep.subr.bf16.mxu0 0
    %3398 = vmatpush1.bf16.msra.mxu0 0
    %3399 = vmatprep.mubr.bf16.mxu0 0
    %3400 = vmatmul.mubr.bf16.gmra.mrb[0].mxu0 %v2615
    %v3401 = vpop.f32.mrb[0].mxu0
    %v3402 = vadd.f32 0.0, %v3401
    %v3403 = vpop.f32.mrb[0].mxu0
    %v3404 = vpop.f32.mrb[0].mxu0
    %v3405 = vadd.f32 0.0, %v3404
    %v3406 = vpop.f32.mrb[0].mxu0
    %3407 = vmatprep.mubr.bf16.mxu0 0
    %3408 = vmatmul.mubr.bf16.gmra.mrb[0].mxu0 %v2616
    %v3409 = vpop.f32.mrb[0].mxu0
    %v3410 = vadd.f32 0.0, %v3409
    %v3411 = vpop.f32.mrb[0].mxu0
    %v3412 = vpop.f32.mrb[0].mxu0
    %v3413 = vadd.f32 0.0, %v3412
    %v3414 = vpop.f32.mrb[0].mxu0
    %3415 = vdwg.mxu0
    %v3416 = vadd.f32 %v3305, %v3402
    %v3417 = vadd.f32 %v3308, %v3405
    %v3418 = vadd.f32 %v3313, %v3410
    %v3419 = vadd.f32 %v3316, %v3413
    %v3436 = vunpack.c.l.b16 %v656
    %v3437 = vunpack.c.l.b16 %v657
    %v3438 = vunpack.c.l.b16 %v658
    %v3439 = vunpack.c.l.b16 %v659
    %v3440 = vunpack.c.l.b16 %v660
    %v3441 = vunpack.c.l.b16 %v661
    %v3442 = vunpack.c.l.b16 %v662
    %v3443 = vunpack.c.l.b16 %v663
    %v3444 = vunpack.c.l.b16 %v664
    %v3445 = vunpack.c.l.b16 %v665
    %v3446 = vunpack.c.l.b16 %v666
    %v3447 = vunpack.c.l.b16 %v667
    %v3448 = vunpack.c.l.b16 %v668
    %v3449 = vunpack.c.l.b16 %v669
    %v3450 = vunpack.c.l.b16 %v670
    %v3451 = vunpack.c.l.b16 %v671
    %v3452 = vpack.c.b16 %v3437, %v3436
    %v3453 = vpack.c.b16 %v3439, %v3438
    %v3454 = vpack.c.b16 %v3441, %v3440
    %v3455 = vpack.c.b16 %v3443, %v3442
    %v3456 = vpack.c.b16 %v3445, %v3444
    %v3457 = vpack.c.b16 %v3447, %v3446
    %v3458 = vpack.c.b16 %v3449, %v3448
    %v3459 = vpack.c.b16 %v3451, %v3450
    %3468 = vmatprep.subr.bf16.mxu0 0
    %3469 = vmatpush1.bf16.msra.mxu0 %v3452
    %3470 = vmatprep.subr.bf16.mxu0 0
    %3471 = vmatpush1.bf16.msra.mxu0 %v3453
    %3472 = vmatprep.subr.bf16.mxu0 0
    %3473 = vmatpush1.bf16.msra.mxu0 %v3454
    %3474 = vmatprep.subr.bf16.mxu0 0
    %3475 = vmatpush1.bf16.msra.mxu0 %v3455
    %3476 = vmatprep.subr.bf16.mxu0 0
    %3477 = vmatpush1.bf16.msra.mxu0 %v3456
    %3478 = vmatprep.subr.bf16.mxu0 0
    %3479 = vmatpush1.bf16.msra.mxu0 %v3457
    %3480 = vmatprep.subr.bf16.mxu0 0
    %3481 = vmatpush1.bf16.msra.mxu0 %v3458
    %3482 = vmatprep.subr.bf16.mxu0 0
    %3483 = vmatpush1.bf16.msra.mxu0 %v3459
    %3484 = vmatprep.subr.bf16.mxu0 0
    %3485 = vmatpush1.bf16.msra.mxu0 0
    %3486 = vmatprep.subr.bf16.mxu0 0
    %3487 = vmatpush1.bf16.msra.mxu0 0
    %3488 = vmatprep.subr.bf16.mxu0 0
    %3489 = vmatpush1.bf16.msra.mxu0 0
    %3490 = vmatprep.subr.bf16.mxu0 0
    %3491 = vmatpush1.bf16.msra.mxu0 0
    %3492 = vmatprep.subr.bf16.mxu0 0
    %3493 = vmatpush1.bf16.msra.mxu0 0
    %3494 = vmatprep.subr.bf16.mxu0 0
    %3495 = vmatpush1.bf16.msra.mxu0 0
    %3496 = vmatprep.subr.bf16.mxu0 0
    %3497 = vmatpush1.bf16.msra.mxu0 0
    %3498 = vmatprep.subr.bf16.mxu0 0
    %3499 = vmatpush1.bf16.msra.mxu0 0
    %3500 = vmatprep.mubr.bf16.mxu0 0
    %3501 = vmatmul.mubr.bf16.gmra.mrb[0].mxu0 %v2003
    %v3502 = vpop.f32.mrb[0].mxu0
    %v3503 = vadd.f32 0.0, %v3502
    %v3504 = vpop.f32.mrb[0].mxu0
    %v3505 = vpop.f32.mrb[0].mxu0
    %v3506 = vpop.f32.mrb[0].mxu0
    %3507 = vdwg.mxu0
    %v3508 = vpack.c.bf16 %v3503, %v3503
    %v3510 = vsel %vm2439, %v3508, 0
    %3512 = vmatprep.subr.bf16.mxu0 0
    %3513 = vmatpush1.bf16.msra.mxu0 %v3510
    %3514 = vmatprep.subr.bf16.mxu0 0
    %3515 = vmatpush1.bf16.msra.mxu0 0
    %3516 = vmatprep.subr.bf16.mxu0 0
    %3517 = vmatpush1.bf16.msra.mxu0 0
    %3518 = vmatprep.subr.bf16.mxu0 0
    %3519 = vmatpush1.bf16.msra.mxu0 0
    %3520 = vmatprep.subr.bf16.mxu0 0
    %3521 = vmatpush1.bf16.msra.mxu0 0
    %3522 = vmatprep.subr.bf16.mxu0 0
    %3523 = vmatpush1.bf16.msra.mxu0 0
    %3524 = vmatprep.subr.bf16.mxu0 0
    %3525 = vmatpush1.bf16.msra.mxu0 0
    %3526 = vmatprep.subr.bf16.mxu0 0
    %3527 = vmatpush1.bf16.msra.mxu0 0
    %3528 = vmatprep.subr.bf16.mxu0 0
    %3529 = vmatpush1.bf16.msra.mxu0 0
    %3530 = vmatprep.subr.bf16.mxu0 0
    %3531 = vmatpush1.bf16.msra.mxu0 0
    %3532 = vmatprep.subr.bf16.mxu0 0
    %3533 = vmatpush1.bf16.msra.mxu0 0
    %3534 = vmatprep.subr.bf16.mxu0 0
    %3535 = vmatpush1.bf16.msra.mxu0 0
    %3536 = vmatprep.subr.bf16.mxu0 0
    %3537 = vmatpush1.bf16.msra.mxu0 0
    %3538 = vmatprep.subr.bf16.mxu0 0
    %3539 = vmatpush1.bf16.msra.mxu0 0
    %3540 = vmatprep.subr.bf16.mxu0 0
    %3541 = vmatpush1.bf16.msra.mxu0 0
    %3542 = vmatprep.subr.bf16.mxu0 0
    %3543 = vmatpush1.bf16.msra.mxu0 0
    %3544 = vmatprep.mubr.bf16.mxu0 0
    %3545 = vmatmul.mubr.bf16.gmra.mrb[0].mxu0 %v2434
    %v3546 = vpop.f32.mrb[0].mxu0
    %v3547 = vadd.f32 0.0, %v3546
    %v3548 = vpop.f32.mrb[0].mxu0
    %v3549 = vpop.f32.mrb[0].mxu0
    %v3550 = vadd.f32 0.0, %v3549
    %v3551 = vpop.f32.mrb[0].mxu0
    %3552 = vmatprep.mubr.bf16.mxu0 0
    %3553 = vmatmul.mubr.bf16.gmra.mrb[0].mxu0 %v2437
    %v3554 = vpop.f32.mrb[0].mxu0
    %v3555 = vadd.f32 0.0, %v3554
    %v3556 = vpop.f32.mrb[0].mxu0
    %v3557 = vpop.f32.mrb[0].mxu0
    %v3558 = vadd.f32 0.0, %v3557
    %v3559 = vpop.f32.mrb[0].mxu0
    %3560 = vdwg.mxu0
    %v3561 = vadd.f32 %v3416, %v3547
    %v3562 = vadd.f32 %v3417, %v3550
    %v3563 = vadd.f32 %v3418, %v3555
    %v3564 = vadd.f32 %v3419, %v3558
    %v3566 = vlaneseq
    %v3567 = vshrl.u32 %v3566, 7
    %v3568 = vsub.s32 0, %v3567
    %v3569 = vrot.slane %v672, %v3568
    %v3571 = vadd.f32 %v3561, %v3569
    %v3572 = vadd.f32 %v3562, %v3569
    %v3573 = vadd.f32 %v3563, %v3569
    %v3574 = vadd.f32 %v3564, %v3569
    %v3575 = vmax.f32 %v3571, 0.0
    %v3576 = vmax.f32 %v3572, 0.0
    %v3577 = vmax.f32 %v3573, 0.0
    %v3578 = vmax.f32 %v3574, 0.0
    %v3579 = vpack.c.bf16 %v3576, %v3575
    %v3580 = vpack.c.bf16 %v3578, %v3577
    %v3582 = vlaneseq
    %v3583 = vshrl.u32 %v3582, 7
    %v3584 = vsub.s32 0, %v3583
    %v3585 = vrot.slane %v689, %v3584
    %v3603 = vunpack.c.l.b16 %v673
    %v3604 = vunpack.c.l.b16 %v674
    %v3605 = vunpack.c.l.b16 %v675
    %v3606 = vunpack.c.l.b16 %v676
    %v3607 = vunpack.c.l.b16 %v677
    %v3608 = vunpack.c.l.b16 %v678
    %v3609 = vunpack.c.l.b16 %v679
    %v3610 = vunpack.c.l.b16 %v680
    %v3611 = vunpack.c.l.b16 %v681
    %v3612 = vunpack.c.l.b16 %v682
    %v3613 = vunpack.c.l.b16 %v683
    %v3614 = vunpack.c.l.b16 %v684
    %v3615 = vunpack.c.l.b16 %v685
    %v3616 = vunpack.c.l.b16 %v686
    %v3617 = vunpack.c.l.b16 %v687
    %v3618 = vunpack.c.l.b16 %v688
    %v3619 = vpack.c.b16 %v3604, %v3603
    %v3620 = vpack.c.b16 %v3606, %v3605
    %v3621 = vpack.c.b16 %v3608, %v3607
    %v3622 = vpack.c.b16 %v3610, %v3609
    %v3623 = vpack.c.b16 %v3612, %v3611
    %v3624 = vpack.c.b16 %v3614, %v3613
    %v3625 = vpack.c.b16 %v3616, %v3615
    %v3626 = vpack.c.b16 %v3618, %v3617
    %3635 = vmatprep.subr.bf16.mxu0 0
    %3636 = vmatpush1.bf16.msra.mxu0 %v3619
    %3637 = vmatprep.subr.bf16.mxu0 0
    %3638 = vmatpush1.bf16.msra.mxu0 %v3620
    %3639 = vmatprep.subr.bf16.mxu0 0
    %3640 = vmatpush1.bf16.msra.mxu0 %v3621
    %3641 = vmatprep.subr.bf16.mxu0 0
    %3642 = vmatpush1.bf16.msra.mxu0 %v3622
    %3643 = vmatprep.subr.bf16.mxu0 0
    %3644 = vmatpush1.bf16.msra.mxu0 %v3623
    %3645 = vmatprep.subr.bf16.mxu0 0
    %3646 = vmatpush1.bf16.msra.mxu0 %v3624
    %3647 = vmatprep.subr.bf16.mxu0 0
    %3648 = vmatpush1.bf16.msra.mxu0 %v3625
    %3649 = vmatprep.subr.bf16.mxu0 0
    %3650 = vmatpush1.bf16.msra.mxu0 %v3626
    %3651 = vmatprep.subr.bf16.mxu0 0
    %3652 = vmatpush1.bf16.msra.mxu0 0
    %3653 = vmatprep.subr.bf16.mxu0 0
    %3654 = vmatpush1.bf16.msra.mxu0 0
    %3655 = vmatprep.subr.bf16.mxu0 0
    %3656 = vmatpush1.bf16.msra.mxu0 0
    %3657 = vmatprep.subr.bf16.mxu0 0
    %3658 = vmatpush1.bf16.msra.mxu0 0
    %3659 = vmatprep.subr.bf16.mxu0 0
    %3660 = vmatpush1.bf16.msra.mxu0 0
    %3661 = vmatprep.subr.bf16.mxu0 0
    %3662 = vmatpush1.bf16.msra.mxu0 0
    %3663 = vmatprep.subr.bf16.mxu0 0
    %3664 = vmatpush1.bf16.msra.mxu0 0
    %3665 = vmatprep.subr.bf16.mxu0 0
    %3666 = vmatpush1.bf16.msra.mxu0 0
    %3667 = vmatprep.mubr.bf16.mxu0 0
    %3668 = vmatmul.mubr.bf16.gmra.mrb[0].mxu0 %v3579
    %v3669 = vpop.f32.mrb[0].mxu0
    %v3670 = vadd.f32 %v3585, %v3669
    %v3671 = vpop.f32.mrb[0].mxu0
    %v3672 = vpop.f32.mrb[0].mxu0
    %v3673 = vadd.f32 %v3585, %v3672
    %v3674 = vpop.f32.mrb[0].mxu0
    %3675 = vmatprep.mubr.bf16.mxu0 0
    %3676 = vmatmul.mubr.bf16.gmra.mrb[0].mxu0 %v3580
    %v3677 = vpop.f32.mrb[0].mxu0
    %v3678 = vadd.f32 %v3585, %v3677
    %v3679 = vpop.f32.mrb[0].mxu0
    %v3680 = vpop.f32.mrb[0].mxu0
    %v3681 = vadd.f32 %v3585, %v3680
    %v3682 = vpop.f32.mrb[0].mxu0
    %3683 = vdwg.mxu0
    %v3684 = vpack.c.bf16 %v3673, %v3670
    %v3685 = vpack.c.bf16 %v3681, %v3678
    %3686 = vmatprep.subr.bf16.mxu0 0
    %3687 = vmatpush1.bf16.msra.mxu0 %v3684
    %3688 = vmatprep.subr.bf16.mxu0 0
    %3689 = vmatpush1.bf16.msra.mxu0 %v3685
    %3690 = vmatprep.subr.bf16.mxu0 0
    %3691 = vmatpush1.bf16.msra.mxu0 0
    %3692 = vmatprep.subr.bf16.mxu0 0
    %3693 = vmatpush1.bf16.msra.mxu0 0
    %3694 = vmatprep.subr.bf16.mxu0 0
    %3695 = vmatpush1.bf16.msra.mxu0 0
    %3696 = vmatprep.subr.bf16.mxu0 0
    %3697 = vmatpush1.bf16.msra.mxu0 0
    %3698 = vmatprep.subr.bf16.mxu0 0
    %3699 = vmatpush1.bf16.msra.mxu0 0
    %3700 = vmatprep.subr.bf16.mxu0 0
    %3701 = vmatpush1.bf16.msra.mxu0 0
    %3702 = vmatprep.subr.bf16.mxu0 0
    %3703 = vmatpush1.bf16.msra.mxu0 0
    %3704 = vmatprep.subr.bf16.mxu0 0
    %3705 = vmatpush1.bf16.msra.mxu0 0
    %3706 = vmatprep.subr.bf16.mxu0 0
    %3707 = vmatpush1.bf16.msra.mxu0 0
    %3708 = vmatprep.subr.bf16.mxu0 0
    %3709 = vmatpush1.bf16.msra.mxu0 0
    %3710 = vmatprep.subr.bf16.mxu0 0
    %3711 = vmatpush1.bf16.msra.mxu0 0
    %3712 = vmatprep.subr.bf16.mxu0 0
    %3713 = vmatpush1.bf16.msra.mxu0 0
    %3714 = vmatprep.subr.bf16.mxu0 0
    %3715 = vmatpush1.bf16.msra.mxu0 0
    %3716 = vmatprep.subr.bf16.mxu0 0
    %3717 = vmatpush1.bf16.msra.mxu0 0
    %3718 = vmatprep.mubr.bf16.mxu0 0
    %3719 = vmatmul.mubr.bf16.gmra.mrb[0].mxu0 %v972
    %v3720 = vpop.f32.mrb[0].mxu0
    %v3721 = vadd.f32 0.0, %v3720
    %v3722 = vpop.f32.mrb[0].mxu0
    %v3723 = vpop.f32.mrb[0].mxu0
    %v3724 = vadd.f32 0.0, %v3723
    %v3725 = vpop.f32.mrb[0].mxu0
    %3726 = vdwg.mxu0
    %v3727 = vmul.f32 %v3721, %v2661
    %v3728 = vmul.f32 %v3724, %v2666
    %v3729 = vpack.c.bf16 %v3728, %v3727
    %v3746 = vunpack.c.l.b16 %v706
    %v3747 = vunpack.c.l.b16 %v707
    %v3748 = vunpack.c.l.b16 %v708
    %v3749 = vunpack.c.l.b16 %v709
    %v3750 = vunpack.c.l.b16 %v710
    %v3751 = vunpack.c.l.b16 %v711
    %v3752 = vunpack.c.l.b16 %v712
    %v3753 = vunpack.c.l.b16 %v713
    %v3754 = vunpack.c.l.b16 %v714
    %v3755 = vunpack.c.l.b16 %v715
    %v3756 = vunpack.c.l.b16 %v716
    %v3757 = vunpack.c.l.b16 %v717
    %v3758 = vunpack.c.l.b16 %v718
    %v3759 = vunpack.c.l.b16 %v719
    %v3760 = vunpack.c.l.b16 %v720
    %v3761 = vunpack.c.l.b16 %v721
    %v3762 = vpack.c.b16 %v3747, %v3746
    %v3763 = vpack.c.b16 %v3749, %v3748
    %v3764 = vpack.c.b16 %v3751, %v3750
    %v3765 = vpack.c.b16 %v3753, %v3752
    %v3766 = vpack.c.b16 %v3755, %v3754
    %v3767 = vpack.c.b16 %v3757, %v3756
    %v3768 = vpack.c.b16 %v3759, %v3758
    %v3769 = vpack.c.b16 %v3761, %v3760
    %3778 = vmatprep.subr.bf16.mxu0 0
    %3779 = vmatpush1.bf16.msra.mxu0 %v3762
    %3780 = vmatprep.subr.bf16.mxu0 0
    %3781 = vmatpush1.bf16.msra.mxu0 %v3763
    %3782 = vmatprep.subr.bf16.mxu0 0
    %3783 = vmatpush1.bf16.msra.mxu0 %v3764
    %3784 = vmatprep.subr.bf16.mxu0 0
    %3785 = vmatpush1.bf16.msra.mxu0 %v3765
    %3786 = vmatprep.subr.bf16.mxu0 0
    %3787 = vmatpush1.bf16.msra.mxu0 %v3766
    %3788 = vmatprep.subr.bf16.mxu0 0
    %3789 = vmatpush1.bf16.msra.mxu0 %v3767
    %3790 = vmatprep.subr.bf16.mxu0 0
    %3791 = vmatpush1.bf16.msra.mxu0 %v3768
    %3792 = vmatprep.subr.bf16.mxu0 0
    %3793 = vmatpush1.bf16.msra.mxu0 %v3769
    %3794 = vmatprep.subr.bf16.mxu0 0
    %3795 = vmatpush1.bf16.msra.mxu0 0
    %3796 = vmatprep.subr.bf16.mxu0 0
    %3797 = vmatpush1.bf16.msra.mxu0 0
    %3798 = vmatprep.subr.bf16.mxu0 0
    %3799 = vmatpush1.bf16.msra.mxu0 0
    %3800 = vmatprep.subr.bf16.mxu0 0
    %3801 = vmatpush1.bf16.msra.mxu0 0
    %3802 = vmatprep.subr.bf16.mxu0 0
    %3803 = vmatpush1.bf16.msra.mxu0 0
    %3804 = vmatprep.subr.bf16.mxu0 0
    %3805 = vmatpush1.bf16.msra.mxu0 0
    %3806 = vmatprep.subr.bf16.mxu0 0
    %3807 = vmatpush1.bf16.msra.mxu0 0
    %3808 = vmatprep.subr.bf16.mxu0 0
    %3809 = vmatpush1.bf16.msra.mxu0 0
    %3810 = vmatprep.mubr.bf16.mxu0 0
    %3811 = vmatmul.mubr.bf16.gmra.mrb[0].mxu0 %v3729
    %v3812 = vpop.f32.mrb[0].mxu0
    %v3813 = vadd.f32 0.0, %v3812
    %v3814 = vpop.f32.mrb[0].mxu0
    %v3815 = vpop.f32.mrb[0].mxu0
    %v3816 = vadd.f32 0.0, %v3815
    %v3817 = vpop.f32.mrb[0].mxu0
    %3818 = vdwg.mxu0
    %v3835 = vunpack.c.l.b16 %v690
    %v3836 = vunpack.c.l.b16 %v691
    %v3837 = vunpack.c.l.b16 %v692
    %v3838 = vunpack.c.l.b16 %v693
    %v3839 = vunpack.c.l.b16 %v694
    %v3840 = vunpack.c.l.b16 %v695
    %v3841 = vunpack.c.l.b16 %v696
    %v3842 = vunpack.c.l.b16 %v697
    %v3843 = vunpack.c.l.b16 %v698
    %v3844 = vunpack.c.l.b16 %v699
    %v3845 = vunpack.c.l.b16 %v700
    %v3846 = vunpack.c.l.b16 %v701
    %v3847 = vunpack.c.l.b16 %v702
    %v3848 = vunpack.c.l.b16 %v703
    %v3849 = vunpack.c.l.b16 %v704
    %v3850 = vunpack.c.l.b16 %v705
    %v3851 = vpack.c.b16 %v3836, %v3835
    %v3852 = vpack.c.b16 %v3838, %v3837
    %v3853 = vpack.c.b16 %v3840, %v3839
    %v3854 = vpack.c.b16 %v3842, %v3841
    %v3855 = vpack.c.b16 %v3844, %v3843
    %v3856 = vpack.c.b16 %v3846, %v3845
    %v3857 = vpack.c.b16 %v3848, %v3847
    %v3858 = vpack.c.b16 %v3850, %v3849
    %3867 = vmatprep.subr.bf16.mxu0 0
    %3868 = vmatpush1.bf16.msra.mxu0 %v3851
    %3869 = vmatprep.subr.bf16.mxu0 0
    %3870 = vmatpush1.bf16.msra.mxu0 %v3852
    %3871 = vmatprep.subr.bf16.mxu0 0
    %3872 = vmatpush1.bf16.msra.mxu0 %v3853
    %3873 = vmatprep.subr.bf16.mxu0 0
    %3874 = vmatpush1.bf16.msra.mxu0 %v3854
    %3875 = vmatprep.subr.bf16.mxu0 0
    %3876 = vmatpush1.bf16.msra.mxu0 %v3855
    %3877 = vmatprep.subr.bf16.mxu0 0
    %3878 = vmatpush1.bf16.msra.mxu0 %v3856
    %3879 = vmatprep.subr.bf16.mxu0 0
    %3880 = vmatpush1.bf16.msra.mxu0 %v3857
    %3881 = vmatprep.subr.bf16.mxu0 0
    %3882 = vmatpush1.bf16.msra.mxu0 %v3858
    %3883 = vmatprep.subr.bf16.mxu0 0
    %3884 = vmatpush1.bf16.msra.mxu0 0
    %3885 = vmatprep.subr.bf16.mxu0 0
    %3886 = vmatpush1.bf16.msra.mxu0 0
    %3887 = vmatprep.subr.bf16.mxu0 0
    %3888 = vmatpush1.bf16.msra.mxu0 0
    %3889 = vmatprep.subr.bf16.mxu0 0
    %3890 = vmatpush1.bf16.msra.mxu0 0
    %3891 = vmatprep.subr.bf16.mxu0 0
    %3892 = vmatpush1.bf16.msra.mxu0 0
    %3893 = vmatprep.subr.bf16.mxu0 0
    %3894 = vmatpush1.bf16.msra.mxu0 0
    %3895 = vmatprep.subr.bf16.mxu0 0
    %3896 = vmatpush1.bf16.msra.mxu0 0
    %3897 = vmatprep.subr.bf16.mxu0 0
    %3898 = vmatpush1.bf16.msra.mxu0 0
    %3899 = vmatprep.mubr.bf16.mxu0 0
    %3900 = vmatmul.mubr.bf16.gmra.mrb[0].mxu0 %v3095
    %v3901 = vpop.f32.mrb[0].mxu0
    %v3902 = vadd.f32 %v3813, %v3901
    %v3903 = vpop.f32.mrb[0].mxu0
    %v3904 = vpop.f32.mrb[0].mxu0
    %v3905 = vadd.f32 %v3816, %v3904
    %v3906 = vpop.f32.mrb[0].mxu0
    %3907 = vdwg.mxu0
    %v3924 = vunpack.c.l.b16 %v722
    %v3925 = vunpack.c.l.b16 %v723
    %v3926 = vunpack.c.l.b16 %v724
    %v3927 = vunpack.c.l.b16 %v725
    %v3928 = vunpack.c.l.b16 %v726
    %v3929 = vunpack.c.l.b16 %v727
    %v3930 = vunpack.c.l.b16 %v728
    %v3931 = vunpack.c.l.b16 %v729
    %v3932 = vunpack.c.l.b16 %v730
    %v3933 = vunpack.c.l.b16 %v731
    %v3934 = vunpack.c.l.b16 %v732
    %v3935 = vunpack.c.l.b16 %v733
    %v3936 = vunpack.c.l.b16 %v734
    %v3937 = vunpack.c.l.b16 %v735
    %v3938 = vunpack.c.l.b16 %v736
    %v3939 = vunpack.c.l.b16 %v737
    %v3940 = vpack.c.b16 %v3925, %v3924
    %v3941 = vpack.c.b16 %v3927, %v3926
    %v3942 = vpack.c.b16 %v3929, %v3928
    %v3943 = vpack.c.b16 %v3931, %v3930
    %v3944 = vpack.c.b16 %v3933, %v3932
    %v3945 = vpack.c.b16 %v3935, %v3934
    %v3946 = vpack.c.b16 %v3937, %v3936
    %v3947 = vpack.c.b16 %v3939, %v3938
    %3956 = vmatprep.subr.bf16.mxu0 0
    %3957 = vmatpush1.bf16.msra.mxu0 %v3940
    %3958 = vmatprep.subr.bf16.mxu0 0
    %3959 = vmatpush1.bf16.msra.mxu0 %v3941
    %3960 = vmatprep.subr.bf16.mxu0 0
    %3961 = vmatpush1.bf16.msra.mxu0 %v3942
    %3962 = vmatprep.subr.bf16.mxu0 0
    %3963 = vmatpush1.bf16.msra.mxu0 %v3943
    %3964 = vmatprep.subr.bf16.mxu0 0
    %3965 = vmatpush1.bf16.msra.mxu0 %v3944
    %3966 = vmatprep.subr.bf16.mxu0 0
    %3967 = vmatpush1.bf16.msra.mxu0 %v3945
    %3968 = vmatprep.subr.bf16.mxu0 0
    %3969 = vmatpush1.bf16.msra.mxu0 %v3946
    %3970 = vmatprep.subr.bf16.mxu0 0
    %3971 = vmatpush1.bf16.msra.mxu0 %v3947
    %3972 = vmatprep.subr.bf16.mxu0 0
    %3973 = vmatpush1.bf16.msra.mxu0 0
    %3974 = vmatprep.subr.bf16.mxu0 0
    %3975 = vmatpush1.bf16.msra.mxu0 0
    %3976 = vmatprep.subr.bf16.mxu0 0
    %3977 = vmatpush1.bf16.msra.mxu0 0
    %3978 = vmatprep.subr.bf16.mxu0 0
    %3979 = vmatpush1.bf16.msra.mxu0 0
    %3980 = vmatprep.subr.bf16.mxu0 0
    %3981 = vmatpush1.bf16.msra.mxu0 0
    %3982 = vmatprep.subr.bf16.mxu0 0
    %3983 = vmatpush1.bf16.msra.mxu0 0
    %3984 = vmatprep.subr.bf16.mxu0 0
    %3985 = vmatpush1.bf16.msra.mxu0 0
    %3986 = vmatprep.subr.bf16.mxu0 0
    %3987 = vmatpush1.bf16.msra.mxu0 0
    %3988 = vmatprep.mubr.bf16.mxu0 0
    %3989 = vmatmul.mubr.bf16.gmra.mrb[0].mxu0 %v2003
    %v3990 = vpop.f32.mrb[0].mxu0
    %v3991 = vadd.f32 0.0, %v3990
    %v3992 = vpop.f32.mrb[0].mxu0
    %v3993 = vpop.f32.mrb[0].mxu0
    %v3994 = vpop.f32.mrb[0].mxu0
    %3995 = vdwg.mxu0
    %v3996 = vpack.c.bf16 %v3991, %v3991
    %v3998 = vsel %vm2439, %v3996, 0
    %4000 = vmatprep.subr.bf16.mxu0 0
    %4001 = vmatpush1.bf16.msra.mxu0 %v3998
    %4002 = vmatprep.subr.bf16.mxu0 0
    %4003 = vmatpush1.bf16.msra.mxu0 0
    %4004 = vmatprep.subr.bf16.mxu0 0
    %4005 = vmatpush1.bf16.msra.mxu0 0
    %4006 = vmatprep.subr.bf16.mxu0 0
    %4007 = vmatpush1.bf16.msra.mxu0 0
    %4008 = vmatprep.subr.bf16.mxu0 0
    %4009 = vmatpush1.bf16.msra.mxu0 0
    %4010 = vmatprep.subr.bf16.mxu0 0
    %4011 = vmatpush1.bf16.msra.mxu0 0
    %4012 = vmatprep.subr.bf16.mxu0 0
    %4013 = vmatpush1.bf16.msra.mxu0 0
    %4014 = vmatprep.subr.bf16.mxu0 0
    %4015 = vmatpush1.bf16.msra.mxu0 0
    %4016 = vmatprep.subr.bf16.mxu0 0
    %4017 = vmatpush1.bf16.msra.mxu0 0
    %4018 = vmatprep.subr.bf16.mxu0 0
    %4019 = vmatpush1.bf16.msra.mxu0 0
    %4020 = vmatprep.subr.bf16.mxu0 0
    %4021 = vmatpush1.bf16.msra.mxu0 0
    %4022 = vmatprep.subr.bf16.mxu0 0
    %4023 = vmatpush1.bf16.msra.mxu0 0
    %4024 = vmatprep.subr.bf16.mxu0 0
    %4025 = vmatpush1.bf16.msra.mxu0 0
    %4026 = vmatprep.subr.bf16.mxu0 0
    %4027 = vmatpush1.bf16.msra.mxu0 0
    %4028 = vmatprep.subr.bf16.mxu0 0
    %4029 = vmatpush1.bf16.msra.mxu0 0
    %4030 = vmatprep.subr.bf16.mxu0 0
    %4031 = vmatpush1.bf16.msra.mxu0 0
    %4032 = vmatprep.mubr.bf16.mxu0 0
    %4033 = vmatmul.mubr.bf16.gmra.mrb[0].mxu0 %v2939
    %v4034 = vpop.f32.mrb[0].mxu0
    %v4035 = vadd.f32 0.0, %v4034
    %v4036 = vpop.f32.mrb[0].mxu0
    %v4037 = vpop.f32.mrb[0].mxu0
    %v4038 = vadd.f32 0.0, %v4037
    %v4039 = vpop.f32.mrb[0].mxu0
    %4040 = vdwg.mxu0
    %v4041 = vadd.f32 %v3902, %v4035
    %v4042 = vadd.f32 %v3905, %v4038
    %v4044 = vlaneseq
    %v4045 = vshrl.u32 %v4044, 7
    %v4046 = vsub.s32 0, %v4045
    %v4047 = vrot.slane %v738, %v4046
    %v4049 = vadd.f32 %v4041, %v4047
    %v4050 = vadd.f32 %v4042, %v4047
    %v4051 = vmax.f32 %v4049, 0.0
    %v4052 = vmax.f32 %v4050, 0.0
    %v4053 = vpack.c.bf16 %v4052, %v4051
    %v4055 = vlaneseq
    %v4056 = vshrl.u32 %v4055, 7
    %v4057 = vsub.s32 0, %v4056
    %v4058 = vrot.slane %v755, %v4057
    %v4076 = vunpack.c.l.b16 %v739
    %v4077 = vunpack.c.l.b16 %v740
    %v4078 = vunpack.c.l.b16 %v741
    %v4079 = vunpack.c.l.b16 %v742
    %v4080 = vunpack.c.l.b16 %v743
    %v4081 = vunpack.c.l.b16 %v744
    %v4082 = vunpack.c.l.b16 %v745
    %v4083 = vunpack.c.l.b16 %v746
    %v4084 = vunpack.c.l.b16 %v747
    %v4085 = vunpack.c.l.b16 %v748
    %v4086 = vunpack.c.l.b16 %v749
    %v4087 = vunpack.c.l.b16 %v750
    %v4088 = vunpack.c.l.b16 %v751
    %v4089 = vunpack.c.l.b16 %v752
    %v4090 = vunpack.c.l.b16 %v753
    %v4091 = vunpack.c.l.b16 %v754
    %v4092 = vpack.c.b16 %v4077, %v4076
    %v4093 = vpack.c.b16 %v4079, %v4078
    %v4094 = vpack.c.b16 %v4081, %v4080
    %v4095 = vpack.c.b16 %v4083, %v4082
    %v4096 = vpack.c.b16 %v4085, %v4084
    %v4097 = vpack.c.b16 %v4087, %v4086
    %v4098 = vpack.c.b16 %v4089, %v4088
    %v4099 = vpack.c.b16 %v4091, %v4090
    %4108 = vmatprep.subr.bf16.mxu0 0
    %4109 = vmatpush1.bf16.msra.mxu0 %v4092
    %4110 = vmatprep.subr.bf16.mxu0 0
    %4111 = vmatpush1.bf16.msra.mxu0 %v4093
    %4112 = vmatprep.subr.bf16.mxu0 0
    %4113 = vmatpush1.bf16.msra.mxu0 %v4094
    %4114 = vmatprep.subr.bf16.mxu0 0
    %4115 = vmatpush1.bf16.msra.mxu0 %v4095
    %4116 = vmatprep.subr.bf16.mxu0 0
    %4117 = vmatpush1.bf16.msra.mxu0 %v4096
    %4118 = vmatprep.subr.bf16.mxu0 0
    %4119 = vmatpush1.bf16.msra.mxu0 %v4097
    %4120 = vmatprep.subr.bf16.mxu0 0
    %4121 = vmatpush1.bf16.msra.mxu0 %v4098
    %4122 = vmatprep.subr.bf16.mxu0 0
    %4123 = vmatpush1.bf16.msra.mxu0 %v4099
    %4124 = vmatprep.subr.bf16.mxu0 0
    %4125 = vmatpush1.bf16.msra.mxu0 0
    %4126 = vmatprep.subr.bf16.mxu0 0
    %4127 = vmatpush1.bf16.msra.mxu0 0
    %4128 = vmatprep.subr.bf16.mxu0 0
    %4129 = vmatpush1.bf16.msra.mxu0 0
    %4130 = vmatprep.subr.bf16.mxu0 0
    %4131 = vmatpush1.bf16.msra.mxu0 0
    %4132 = vmatprep.subr.bf16.mxu0 0
    %4133 = vmatpush1.bf16.msra.mxu0 0
    %4134 = vmatprep.subr.bf16.mxu0 0
    %4135 = vmatpush1.bf16.msra.mxu0 0
    %4136 = vmatprep.subr.bf16.mxu0 0
    %4137 = vmatpush1.bf16.msra.mxu0 0
    %4138 = vmatprep.subr.bf16.mxu0 0
    %4139 = vmatpush1.bf16.msra.mxu0 0
    %4140 = vmatprep.mubr.bf16.mxu0 0
    %4141 = vmatmul.mubr.bf16.gmra.mrb[0].mxu0 %v4053
    %v4142 = vpop.f32.mrb[0].mxu0
    %v4143 = vadd.f32 %v4058, %v4142
    %v4144 = vpop.f32.mrb[0].mxu0
    %v4145 = vpop.f32.mrb[0].mxu0
    %v4146 = vadd.f32 %v4058, %v4145
    %v4147 = vpop.f32.mrb[0].mxu0
    %4148 = vdwg.mxu0
    %v4149 = vadd.f32 %v4143, %v3093
    %v4150 = vadd.f32 %v4146, %v3094
    %v4151 = vpack.c.bf16 %v4150, %v4149
    %v4153 = vlaneseq
    %v4154 = vshrl.u32 %v4153, 7
    %v4155 = vsub.s32 0, %v4154
    %v4156 = vrot.slane %v772, %v4155
    %v4174 = vunpack.c.l.b16 %v756
    %v4175 = vunpack.c.l.b16 %v757
    %v4176 = vunpack.c.l.b16 %v758
    %v4177 = vunpack.c.l.b16 %v759
    %v4178 = vunpack.c.l.b16 %v760
    %v4179 = vunpack.c.l.b16 %v761
    %v4180 = vunpack.c.l.b16 %v762
    %v4181 = vunpack.c.l.b16 %v763
    %v4182 = vunpack.c.l.b16 %v764
    %v4183 = vunpack.c.l.b16 %v765
    %v4184 = vunpack.c.l.b16 %v766
    %v4185 = vunpack.c.l.b16 %v767
    %v4186 = vunpack.c.l.b16 %v768
    %v4187 = vunpack.c.l.b16 %v769
    %v4188 = vunpack.c.l.b16 %v770
    %v4189 = vunpack.c.l.b16 %v771
    %v4190 = vpack.c.b16 %v4175, %v4174
    %v4191 = vpack.c.b16 %v4177, %v4176
    %v4192 = vpack.c.b16 %v4179, %v4178
    %v4193 = vpack.c.b16 %v4181, %v4180
    %v4194 = vpack.c.b16 %v4183, %v4182
    %v4195 = vpack.c.b16 %v4185, %v4184
    %v4196 = vpack.c.b16 %v4187, %v4186
    %v4197 = vpack.c.b16 %v4189, %v4188
    %4206 = vmatprep.subr.bf16.mxu0 0
    %4207 = vmatpush1.bf16.msra.mxu0 %v4190
    %4208 = vmatprep.subr.bf16.mxu0 0
    %4209 = vmatpush1.bf16.msra.mxu0 %v4191
    %4210 = vmatprep.subr.bf16.mxu0 0
    %4211 = vmatpush1.bf16.msra.mxu0 %v4192
    %4212 = vmatprep.subr.bf16.mxu0 0
    %4213 = vmatpush1.bf16.msra.mxu0 %v4193
    %4214 = vmatprep.subr.bf16.mxu0 0
    %4215 = vmatpush1.bf16.msra.mxu0 %v4194
    %4216 = vmatprep.subr.bf16.mxu0 0
    %4217 = vmatpush1.bf16.msra.mxu0 %v4195
    %4218 = vmatprep.subr.bf16.mxu0 0
    %4219 = vmatpush1.bf16.msra.mxu0 %v4196
    %4220 = vmatprep.subr.bf16.mxu0 0
    %4221 = vmatpush1.bf16.msra.mxu0 %v4197
    %4222 = vmatprep.subr.bf16.mxu0 0
    %4223 = vmatpush1.bf16.msra.mxu0 0
    %4224 = vmatprep.subr.bf16.mxu0 0
    %4225 = vmatpush1.bf16.msra.mxu0 0
    %4226 = vmatprep.subr.bf16.mxu0 0
    %4227 = vmatpush1.bf16.msra.mxu0 0
    %4228 = vmatprep.subr.bf16.mxu0 0
    %4229 = vmatpush1.bf16.msra.mxu0 0
    %4230 = vmatprep.subr.bf16.mxu0 0
    %4231 = vmatpush1.bf16.msra.mxu0 0
    %4232 = vmatprep.subr.bf16.mxu0 0
    %4233 = vmatpush1.bf16.msra.mxu0 0
    %4234 = vmatprep.subr.bf16.mxu0 0
    %4235 = vmatpush1.bf16.msra.mxu0 0
    %4236 = vmatprep.subr.bf16.mxu0 0
    %4237 = vmatpush1.bf16.msra.mxu0 0
    %4238 = vmatprep.mubr.bf16.mxu0 0
    %4239 = vmatmul.mubr.bf16.gmra.mrb[0].mxu0 %v4151
    %v4240 = vpop.f32.mrb[0].mxu0
    %v4241 = vadd.f32 %v4156, %v4240
    %v4242 = vpop.f32.mrb[0].mxu0
    %v4243 = vpop.f32.mrb[0].mxu0
    %v4244 = vadd.f32 %v4156, %v4243
    %v4245 = vpop.f32.mrb[0].mxu0
    %4246 = vdwg.mxu0
    %v4247 = vmax.f32 %v4241, 0.0
    %v4248 = vmax.f32 %v4244, 0.0
    %v4249 = vpack.c.bf16 %v4248, %v4247
    %v4251 = vlaneseq
    %v4252 = vshrl.u32 %v4251, 7
    %v4253 = vsub.s32 0, %v4252
    %v4254 = vrot.slane %v789, %v4253
    %v4272 = vunpack.c.l.b16 %v773
    %v4273 = vunpack.c.l.b16 %v774
    %v4274 = vunpack.c.l.b16 %v775
    %v4275 = vunpack.c.l.b16 %v776
    %v4276 = vunpack.c.l.b16 %v777
    %v4277 = vunpack.c.l.b16 %v778
    %v4278 = vunpack.c.l.b16 %v779
    %v4279 = vunpack.c.l.b16 %v780
    %v4280 = vunpack.c.l.b16 %v781
    %v4281 = vunpack.c.l.b16 %v782
    %v4282 = vunpack.c.l.b16 %v783
    %v4283 = vunpack.c.l.b16 %v784
    %v4284 = vunpack.c.l.b16 %v785
    %v4285 = vunpack.c.l.b16 %v786
    %v4286 = vunpack.c.l.b16 %v787
    %v4287 = vunpack.c.l.b16 %v788
    %v4288 = vpack.c.b16 %v4273, %v4272
    %v4289 = vpack.c.b16 %v4275, %v4274
    %v4290 = vpack.c.b16 %v4277, %v4276
    %v4291 = vpack.c.b16 %v4279, %v4278
    %v4292 = vpack.c.b16 %v4281, %v4280
    %v4293 = vpack.c.b16 %v4283, %v4282
    %v4294 = vpack.c.b16 %v4285, %v4284
    %v4295 = vpack.c.b16 %v4287, %v4286
    %4304 = vmatprep.subr.bf16.mxu0 0
    %4305 = vmatpush1.bf16.msra.mxu0 %v4288
    %4306 = vmatprep.subr.bf16.mxu0 0
    %4307 = vmatpush1.bf16.msra.mxu0 %v4289
    %4308 = vmatprep.subr.bf16.mxu0 0
    %4309 = vmatpush1.bf16.msra.mxu0 %v4290
    %4310 = vmatprep.subr.bf16.mxu0 0
    %4311 = vmatpush1.bf16.msra.mxu0 %v4291
    %4312 = vmatprep.subr.bf16.mxu0 0
    %4313 = vmatpush1.bf16.msra.mxu0 %v4292
    %4314 = vmatprep.subr.bf16.mxu0 0
    %4315 = vmatpush1.bf16.msra.mxu0 %v4293
    %4316 = vmatprep.subr.bf16.mxu0 0
    %4317 = vmatpush1.bf16.msra.mxu0 %v4294
    %4318 = vmatprep.subr.bf16.mxu0 0
    %4319 = vmatpush1.bf16.msra.mxu0 %v4295
    %4320 = vmatprep.subr.bf16.mxu0 0
    %4321 = vmatpush1.bf16.msra.mxu0 0
    %4322 = vmatprep.subr.bf16.mxu0 0
    %4323 = vmatpush1.bf16.msra.mxu0 0
    %4324 = vmatprep.subr.bf16.mxu0 0
    %4325 = vmatpush1.bf16.msra.mxu0 0
    %4326 = vmatprep.subr.bf16.mxu0 0
    %4327 = vmatpush1.bf16.msra.mxu0 0
    %4328 = vmatprep.subr.bf16.mxu0 0
    %4329 = vmatpush1.bf16.msra.mxu0 0
    %4330 = vmatprep.subr.bf16.mxu0 0
    %4331 = vmatpush1.bf16.msra.mxu0 0
    %4332 = vmatprep.subr.bf16.mxu0 0
    %4333 = vmatpush1.bf16.msra.mxu0 0
    %4334 = vmatprep.subr.bf16.mxu0 0
    %4335 = vmatpush1.bf16.msra.mxu0 0
    %4336 = vmatprep.mubr.bf16.mxu0 0
    %4337 = vmatmul.mubr.bf16.gmra.mrb[0].mxu0 %v4249
    %v4338 = vpop.f32.mrb[0].mxu0
    %v4339 = vadd.f32 %v4254, %v4338
    %v4340 = vpop.f32.mrb[0].mxu0
    %v4341 = vpop.f32.mrb[0].mxu0
    %v4342 = vadd.f32 %v4254, %v4341
    %v4343 = vpop.f32.mrb[0].mxu0
    %4344 = vdwg.mxu0
    %v4345 = vpack.c.bf16 %v4342, %v4339
    %4346 = vmatprep.subr.bf16.mxu0 0
    %4347 = vmatpush1.bf16.msra.mxu0 %v4345
    %4348 = vmatprep.subr.bf16.mxu0 0
    %4349 = vmatpush1.bf16.msra.mxu0 0
    %4350 = vmatprep.subr.bf16.mxu0 0
    %4351 = vmatpush1.bf16.msra.mxu0 0
    %4352 = vmatprep.subr.bf16.mxu0 0
    %4353 = vmatpush1.bf16.msra.mxu0 0
    %4354 = vmatprep.subr.bf16.mxu0 0
    %4355 = vmatpush1.bf16.msra.mxu0 0
    %4356 = vmatprep.subr.bf16.mxu0 0
    %4357 = vmatpush1.bf16.msra.mxu0 0
    %4358 = vmatprep.subr.bf16.mxu0 0
    %4359 = vmatpush1.bf16.msra.mxu0 0
    %4360 = vmatprep.subr.bf16.mxu0 0
    %4361 = vmatpush1.bf16.msra.mxu0 0
    %4362 = vmatprep.subr.bf16.mxu0 0
    %4363 = vmatpush1.bf16.msra.mxu0 0
    %4364 = vmatprep.subr.bf16.mxu0 0
    %4365 = vmatpush1.bf16.msra.mxu0 0
    %4366 = vmatprep.subr.bf16.mxu0 0
    %4367 = vmatpush1.bf16.msra.mxu0 0
    %4368 = vmatprep.subr.bf16.mxu0 0
    %4369 = vmatpush1.bf16.msra.mxu0 0
    %4370 = vmatprep.subr.bf16.mxu0 0
    %4371 = vmatpush1.bf16.msra.mxu0 0
    %4372 = vmatprep.subr.bf16.mxu0 0
    %4373 = vmatpush1.bf16.msra.mxu0 0
    %4374 = vmatprep.subr.bf16.mxu0 0
    %4375 = vmatpush1.bf16.msra.mxu0 0
    %4376 = vmatprep.subr.bf16.mxu0 0
    %4377 = vmatpush1.bf16.msra.mxu0 0
    %4378 = vmatprep.mubr.bf16.mxu0 0
    %4379 = vmatmul.mubr.bf16.gmra.mrb[0].mxu0 %v1039
    %v4380 = vpop.f32.mrb[0].mxu0
    %v4381 = vadd.f32 0.0, %v4380
    %v4382 = vpop.f32.mrb[0].mxu0
    %v4383 = vpop.f32.mrb[0].mxu0
    %v4384 = vpop.f32.mrb[0].mxu0
    %4385 = vdwg.mxu0
    %4387 = vset.pattern.permute.xlu0 0
    %4388 = vperm.xlu0 %4387, %v1142
    %v4389 = vpop.permute.xlu0 %4388
    %v4391 = vmul.f32 %v4381, %v4389
    %4392 = vmatprep.subr.bf16.mxu0 0
    %4393 = vmatpush1.bf16.msra.mxu0 %v3684
    %4394 = vmatprep.subr.bf16.mxu0 0
    %4395 = vmatpush1.bf16.msra.mxu0 %v3685
    %4396 = vmatprep.subr.bf16.mxu0 0
    %4397 = vmatpush1.bf16.msra.mxu0 0
    %4398 = vmatprep.subr.bf16.mxu0 0
    %4399 = vmatpush1.bf16.msra.mxu0 0
    %4400 = vmatprep.subr.bf16.mxu0 0
    %4401 = vmatpush1.bf16.msra.mxu0 0
    %4402 = vmatprep.subr.bf16.mxu0 0
    %4403 = vmatpush1.bf16.msra.mxu0 0
    %4404 = vmatprep.subr.bf16.mxu0 0
    %4405 = vmatpush1.bf16.msra.mxu0 0
    %4406 = vmatprep.subr.bf16.mxu0 0
    %4407 = vmatpush1.bf16.msra.mxu0 0
    %4408 = vmatprep.subr.bf16.mxu0 0
    %4409 = vmatpush1.bf16.msra.mxu0 0
    %4410 = vmatprep.subr.bf16.mxu0 0
    %4411 = vmatpush1.bf16.msra.mxu0 0
    %4412 = vmatprep.subr.bf16.mxu0 0
    %4413 = vmatpush1.bf16.msra.mxu0 0
    %4414 = vmatprep.subr.bf16.mxu0 0
    %4415 = vmatpush1.bf16.msra.mxu0 0
    %4416 = vmatprep.subr.bf16.mxu0 0
    %4417 = vmatpush1.bf16.msra.mxu0 0
    %4418 = vmatprep.subr.bf16.mxu0 0
    %4419 = vmatpush1.bf16.msra.mxu0 0
    %4420 = vmatprep.subr.bf16.mxu0 0
    %4421 = vmatpush1.bf16.msra.mxu0 0
    %4422 = vmatprep.subr.bf16.mxu0 0
    %4423 = vmatpush1.bf16.msra.mxu0 0
    %4424 = vmatprep.mubr.bf16.mxu0 0
    %4425 = vmatmul.mubr.bf16.gmra.mrb[0].mxu0 %v1098
    %v4426 = vpop.f32.mrb[0].mxu0
    %v4427 = vadd.f32 0.0, %v4426
    %v4428 = vpop.f32.mrb[0].mxu0
    %v4429 = vpop.f32.mrb[0].mxu0
    %v4430 = vpop.f32.mrb[0].mxu0
    %4431 = vdwg.mxu0
    %4433 = vset.pattern.permute.xlu0 0
    %4434 = vperm.xlu0 %4433, %v1145
    %v4435 = vpop.permute.xlu0 %4434
    %v4437 = vmul.f32 %v4427, %v4435
    %v4438 = vpack.c.bf16 %v4391, %v4391
    %v4439 = vpack.c.bf16 %v4437, %v4437
    %v4441 = vlaneseq
    %v4442 = vshrl.u32 %v4441, 7
    %v4443 = vsub.s32 0, %v4442
    %v4444 = vrot.slane %v822, %v4443
    %v4478 = vunpack.c.l.b16 %v790
    %v4479 = vunpack.c.l.b16 %v791
    %v4480 = vunpack.c.l.b16 %v792
    %v4481 = vunpack.c.l.b16 %v793
    %v4482 = vunpack.c.l.b16 %v794
    %v4483 = vunpack.c.l.b16 %v795
    %v4484 = vunpack.c.l.b16 %v796
    %v4485 = vunpack.c.l.b16 %v797
    %v4486 = vunpack.c.l.b16 %v798
    %v4487 = vunpack.c.l.b16 %v799
    %v4488 = vunpack.c.l.b16 %v800
    %v4489 = vunpack.c.l.b16 %v801
    %v4490 = vunpack.c.l.b16 %v802
    %v4491 = vunpack.c.l.b16 %v803
    %v4492 = vunpack.c.l.b16 %v804
    %v4493 = vunpack.c.l.b16 %v805
    %v4494 = vunpack.c.l.b16 %v806
    %v4495 = vunpack.c.l.b16 %v807
    %v4496 = vunpack.c.l.b16 %v808
    %v4497 = vunpack.c.l.b16 %v809
    %v4498 = vunpack.c.l.b16 %v810
    %v4499 = vunpack.c.l.b16 %v811
    %v4500 = vunpack.c.l.b16 %v812
    %v4501 = vunpack.c.l.b16 %v813
    %v4502 = vunpack.c.l.b16 %v814
    %v4503 = vunpack.c.l.b16 %v815
    %v4504 = vunpack.c.l.b16 %v816
    %v4505 = vunpack.c.l.b16 %v817
    %v4506 = vunpack.c.l.b16 %v818
    %v4507 = vunpack.c.l.b16 %v819
    %v4508 = vunpack.c.l.b16 %v820
    %v4509 = vunpack.c.l.b16 %v821
    %v4510 = vpack.c.b16 %v4479, %v4478
    %v4511 = vpack.c.b16 %v4481, %v4480
    %v4512 = vpack.c.b16 %v4483, %v4482
    %v4513 = vpack.c.b16 %v4485, %v4484
    %v4514 = vpack.c.b16 %v4487, %v4486
    %v4515 = vpack.c.b16 %v4489, %v4488
    %v4516 = vpack.c.b16 %v4491, %v4490
    %v4517 = vpack.c.b16 %v4493, %v4492
    %v4518 = vpack.c.b16 %v4495, %v4494
    %v4519 = vpack.c.b16 %v4497, %v4496
    %v4520 = vpack.c.b16 %v4499, %v4498
    %v4521 = vpack.c.b16 %v4501, %v4500
    %v4522 = vpack.c.b16 %v4503, %v4502
    %v4523 = vpack.c.b16 %v4505, %v4504
    %v4524 = vpack.c.b16 %v4507, %v4506
    %v4525 = vpack.c.b16 %v4509, %v4508
    %4542 = vmatprep.subr.bf16.mxu0 0
    %4543 = vmatpush1.bf16.msra.mxu0 %v4510
    %4544 = vmatprep.subr.bf16.mxu0 0
    %4545 = vmatpush1.bf16.msra.mxu0 %v4511
    %4546 = vmatprep.subr.bf16.mxu0 0
    %4547 = vmatpush1.bf16.msra.mxu0 %v4512
    %4548 = vmatprep.subr.bf16.mxu0 0
    %4549 = vmatpush1.bf16.msra.mxu0 %v4513
    %4550 = vmatprep.subr.bf16.mxu0 0
    %4551 = vmatpush1.bf16.msra.mxu0 %v4514
    %4552 = vmatprep.subr.bf16.mxu0 0
    %4553 = vmatpush1.bf16.msra.mxu0 %v4515
    %4554 = vmatprep.subr.bf16.mxu0 0
    %4555 = vmatpush1.bf16.msra.mxu0 %v4516
    %4556 = vmatprep.subr.bf16.mxu0 0
    %4557 = vmatpush1.bf16.msra.mxu0 %v4517
    %4558 = vmatprep.subr.bf16.mxu0 0
    %4559 = vmatpush1.bf16.msra.mxu0 %v4518
    %4560 = vmatprep.subr.bf16.mxu0 0
    %4561 = vmatpush1.bf16.msra.mxu0 %v4519
    %4562 = vmatprep.subr.bf16.mxu0 0
    %4563 = vmatpush1.bf16.msra.mxu0 %v4520
    %4564 = vmatprep.subr.bf16.mxu0 0
    %4565 = vmatpush1.bf16.msra.mxu0 %v4521
    %4566 = vmatprep.subr.bf16.mxu0 0
    %4567 = vmatpush1.bf16.msra.mxu0 %v4522
    %4568 = vmatprep.subr.bf16.mxu0 0
    %4569 = vmatpush1.bf16.msra.mxu0 %v4523
    %4570 = vmatprep.subr.bf16.mxu0 0
    %4571 = vmatpush1.bf16.msra.mxu0 %v4524
    %4572 = vmatprep.subr.bf16.mxu0 0
    %4573 = vmatpush1.bf16.msra.mxu0 %v4525
    %4574 = vmatprep.mubr.bf16.mxu0 %v4439
    %4575 = vmatmul.mubr.bf16.gmra.mrb[0].mxu0 %v4438
    %v4576 = vpop.f32.mrb[0].mxu0
    %v4577 = vadd.f32 %v4444, %v4576
    %v4578 = vpop.f32.mrb[0].mxu0
    %v4579 = vpop.f32.mrb[0].mxu0
    %v4580 = vpop.f32.mrb[0].mxu0
    %4581 = vdwg.mxu0
    %v4582 = vmax.f32 %v4577, 0.0
    %v4583 = vpack.c.bf16 %v4582, %v4582
    %v4585 = vlaneseq
    %v4586 = vshrl.u32 %v4585, 7
    %v4587 = vsub.s32 0, %v4586
    %v4588 = vrot.slane %v839, %v4587
    %v4606 = vunpack.c.l.b16 %v823
    %v4607 = vunpack.c.l.b16 %v824
    %v4608 = vunpack.c.l.b16 %v825
    %v4609 = vunpack.c.l.b16 %v826
    %v4610 = vunpack.c.l.b16 %v827
    %v4611 = vunpack.c.l.b16 %v828
    %v4612 = vunpack.c.l.b16 %v829
    %v4613 = vunpack.c.l.b16 %v830
    %v4614 = vunpack.c.l.b16 %v831
    %v4615 = vunpack.c.l.b16 %v832
    %v4616 = vunpack.c.l.b16 %v833
    %v4617 = vunpack.c.l.b16 %v834
    %v4618 = vunpack.c.l.b16 %v835
    %v4619 = vunpack.c.l.b16 %v836
    %v4620 = vunpack.c.l.b16 %v837
    %v4621 = vunpack.c.l.b16 %v838
    %v4622 = vpack.c.b16 %v4607, %v4606
    %v4623 = vpack.c.b16 %v4609, %v4608
    %v4624 = vpack.c.b16 %v4611, %v4610
    %v4625 = vpack.c.b16 %v4613, %v4612
    %v4626 = vpack.c.b16 %v4615, %v4614
    %v4627 = vpack.c.b16 %v4617, %v4616
    %v4628 = vpack.c.b16 %v4619, %v4618
    %v4629 = vpack.c.b16 %v4621, %v4620
    %4638 = vmatprep.subr.bf16.mxu0 0
    %4639 = vmatpush1.bf16.msra.mxu0 %v4622
    %4640 = vmatprep.subr.bf16.mxu0 0
    %4641 = vmatpush1.bf16.msra.mxu0 %v4623
    %4642 = vmatprep.subr.bf16.mxu0 0
    %4643 = vmatpush1.bf16.msra.mxu0 %v4624
    %4644 = vmatprep.subr.bf16.mxu0 0
    %4645 = vmatpush1.bf16.msra.mxu0 %v4625
    %4646 = vmatprep.subr.bf16.mxu0 0
    %4647 = vmatpush1.bf16.msra.mxu0 %v4626
    %4648 = vmatprep.subr.bf16.mxu0 0
    %4649 = vmatpush1.bf16.msra.mxu0 %v4627
    %4650 = vmatprep.subr.bf16.mxu0 0
    %4651 = vmatpush1.bf16.msra.mxu0 %v4628
    %4652 = vmatprep.subr.bf16.mxu0 0
    %4653 = vmatpush1.bf16.msra.mxu0 %v4629
    %4654 = vmatprep.subr.bf16.mxu0 0
    %4655 = vmatpush1.bf16.msra.mxu0 0
    %4656 = vmatprep.subr.bf16.mxu0 0
    %4657 = vmatpush1.bf16.msra.mxu0 0
    %4658 = vmatprep.subr.bf16.mxu0 0
    %4659 = vmatpush1.bf16.msra.mxu0 0
    %4660 = vmatprep.subr.bf16.mxu0 0
    %4661 = vmatpush1.bf16.msra.mxu0 0
    %4662 = vmatprep.subr.bf16.mxu0 0
    %4663 = vmatpush1.bf16.msra.mxu0 0
    %4664 = vmatprep.subr.bf16.mxu0 0
    %4665 = vmatpush1.bf16.msra.mxu0 0
    %4666 = vmatprep.subr.bf16.mxu0 0
    %4667 = vmatpush1.bf16.msra.mxu0 0
    %4668 = vmatprep.subr.bf16.mxu0 0
    %4669 = vmatpush1.bf16.msra.mxu0 0
    %4670 = vmatprep.mubr.bf16.mxu0 0
    %4671 = vmatmul.mubr.bf16.gmra.mrb[0].mxu0 %v4583
    %v4672 = vpop.f32.mrb[0].mxu0
    %v4673 = vadd.f32 %v4588, %v4672
    %v4674 = vpop.f32.mrb[0].mxu0
    %v4675 = vpop.f32.mrb[0].mxu0
    %v4676 = vpop.f32.mrb[0].mxu0
    %4677 = vdwg.mxu0
    %4678 = vst [vmem:[#allocation19] sm:$0xff] %v4339
    %4679 = vst [vmem:[#allocation19 + $0x8] sm:$0xff] %v4342
    %vm4680 = vcmask 33792
    %4681 = vst.msk [vmem:[#allocation20] sm:$0x3] %vm4680, %v4673
    // Predicated region
    $region262: #{forward.1} parent=1 // pred_check
      _
    $region263: #{forward.1} parent=1 // pred_check_branch
      %4683 = sbr.rel (0) target = $region265
    $region264: #{forward.1} parent=1 // pred_region
      %s4685 = ssub.s32 256, 256
      %4686 = vsyncadd [#allocation4], %s4685
      %s4687 = sshll.u32 [#allocation19], 4
      %s4688 = int_to_ptr.vmem [resolvable:$true] %s4687
      %4693 = dma.vmem_to_hbm [thread:$0]  %s4688, 256, %s111, [#allocation4], 128, 128, 8
    $region265: #{forward.1} parent=1 // pred_fallthru
      _
    // Predicated region
    $region266: #{forward.1} parent=1 // pred_check
      _
    $region267: #{forward.1} parent=1 // pred_check_branch
      %4695 = sbr.rel (0) target = $region269
    $region268: #{forward.1} parent=1 // pred_region
      %s4697 = ssub.s32 32, 32
      %4698 = vsyncadd [#allocation21], %s4697
      %s4700 = sshll.u32 [#allocation20], 4
      %s4701 = int_to_ptr.vmem [resolvable:$true] %s4700
      %4703 = dma.vmem_to_hbm [thread:$0]  %s4701, 32, %s113, [#allocation21]
    $region269: #{forward.1} parent=1 // pred_fallthru
      _
    // Predicated region
    $region270: #{forward.1} parent=1 // pred_check
      _
    $region271: #{forward.1} parent=1 // pred_check_branch
      %4705 = sbr.rel (0) target = $region273
    $region272: #{forward.1} parent=1 // pred_region
      %4706 = dma.done [#allocation4], 256
    $region273: #{forward.1} parent=1 // pred_fallthru
      _
    // Predicated region
    $region274: #{forward.1} parent=1 // pred_check
      _
    $region275: #{forward.1} parent=1 // pred_check_branch
      %4708 = sbr.rel (0) target = $region277
    $region276: #{forward.1} parent=1 // pred_region
      %4709 = dma.done [#allocation21], 32
    $region277: #{forward.1} parent=1 // pred_fallthru
      _
    %4710 = vsyncpa [#allocation3], 1
    %4711 = vsyncpa [#allocation6], 1
    %4712 = vsyncpa [#allocation9], 1
    %4713 = vsyncpa [#allocation12], 1
    %4714 = vsyncpa [#allocation15], 1
    %4715 = vsyncpa [#allocation18], 1
    %4716 = vsyncpa [#allocation4], 1
    %4717 = vsyncpa [#allocation21], 1

</llo_original>
